<compile_context>
chip_gen: v6e
topology: v6e:2x2x1
jax: 0.10.0
libtpu: 0.0.40
codegen_flags: <defaults>
</compile_context>

<pallas_src>
import numpy as np

import jax
import jax.numpy as jnp
from jax.experimental import pallas as pl
from jax.experimental.pallas import tpu as pltpu


# ----------------------------------------------------------------------------
# Spec helpers (match the PyTorch module)
# ----------------------------------------------------------------------------
def conv2d_size_out(size, kernel_size=5, stride=2):
    return (size - (kernel_size - 1) - 1) // stride + 1


def _round_up(v, m):
    return ((v + m - 1) // m) * m


def _cdiv(a, b):
    return -(-a // b)


# ----------------------------------------------------------------------------
# One-time parameter preparation
# ----------------------------------------------------------------------------
def _conv1_band_matrix(weight, bias, w_in, stride):
    """im2col operator for ONE output row of a valid conv: maps the KH-row
    input strip (ci, dh, w) to all (co, ow) outputs of that row.  It is the
    same matrix for every output row, so it is built and stored once."""
    w = np.asarray(weight, np.float32)                 # (Cout, Cin, KH, KW)
    c_out, c_in, kh, kw = w.shape
    ow = (w_in - kw) // stride + 1
    band = np.zeros((c_in, kh, w_in, c_out, ow), np.float32)
    for dw in range(kw):
        for j in range(ow):
            # band[ci, dh, stride*j+dw, co, j] = w[co, ci, dh, dw]
            band[:, :, stride * j + dw, :, j] = np.transpose(w[:, :, :, dw], (1, 2, 0))
    band = band.reshape(c_in * kh * w_in, c_out * ow)  # rows (ci,dh,w), cols (co,ow)
    b_band = np.repeat(np.asarray(bias, np.float32), ow)   # [co*ow + j] = bias[co]
    return band, b_band


def _conv_to_dense(weight, bias, h_in, w_in, stride):
    """Exact dense operator for a valid conv on the torch-flattened activation:
    y_flat = x_flat @ T + b_full.  Rows: (ci,h,w); cols: (co,oh,ow)."""
    w = np.asarray(weight, dtype=np.float32)           # (Cout, Cin, KH, KW)
    b = np.asarray(bias, dtype=np.float32)
    c_out, c_in, kh, kw = w.shape
    oh = (h_in - kh) // stride + 1
    ow = (w_in - kw) // stride + 1

    t = np.zeros((c_in, h_in, w_in, c_out, oh, ow), dtype=np.float32)
    oh_idx = np.arange(oh)
    ow_idx = np.arange(ow)
    for i in range(kh):
        for j in range(kw):
            t[:, (stride * oh_idx + i)[:, None], (stride * ow_idx + j)[None, :],
              :, oh_idx[:, None], ow_idx[None, :]] = np.transpose(w[:, :, i, j])

    t = t.reshape(c_in * h_in * w_in, c_out * oh * ow)
    b_full = np.repeat(b, oh * ow)
    return t, b_full, oh, ow


def prepare_params(params, *, w=45, h=30, param_dtype=jnp.bfloat16):
    """Convert PyTorch-layout parameters to the fused-kernel layout (run once)."""
    conv1_w = np.asarray(params["conv1_w"], np.float32)    # (32, C, 8, 8)
    c1_out, c_in, kh1, kw1 = conv1_w.shape
    s1 = 4
    oh1 = (h - kh1) // s1 + 1
    ow1 = (w - kw1) // s1 + 1

    # conv1: one shared row-band operator + bias in (oh, co, ow) order.
    wb, b_band = _conv1_band_matrix(conv1_w, params["conv1_b"], w, s1)
    b1_full = np.tile(b_band, oh1)

    # conv2: dense operator; permute its rows from (co, oh, ow) -> (oh, co, ow)
    # to match the column order the banded conv1 emits.
    t2, b2, oh2, ow2 = _conv_to_dense(params["conv2_w"], params["conv2_b"],
                                      oh1, ow1, 2)
    perm = (np.arange(c1_out * oh1 * ow1)
              .reshape(c1_out, oh1, ow1).transpose(1, 0, 2).reshape(-1))
    t2 = t2[perm]

    fc_w = np.asarray(params["fc_w"], np.float32).T        # (lin_in, 512)
    assert fc_w.shape[0] == t2.shape[1], (fc_w.shape, t2.shape)

    # Output head, lane-padded to 128 columns for a lane-dense store.
    out_w = np.asarray(params["out_w"], np.float32).T      # (512, n_out)
    out_b = np.asarray(params["out_b"], np.float32)
    n_out = out_w.shape[1]
    n_out_pad = _round_up(max(n_out, 128), 128)
    wo = np.zeros((out_w.shape[0], n_out_pad), np.float32)
    wo[:, :n_out] = out_w
    bo = np.zeros((n_out_pad,), np.float32)
    bo[:n_out] = out_b

    def as_w(a):   # MXU operands
        return jnp.asarray(a, dtype=param_dtype)

    def as_b(a):   # VPU bias math stays f32
        return jnp.asarray(np.asarray(a, np.float32).reshape(1, -1))

    return dict(
        wb=as_w(wb), b1=as_b(b1_full),
        t2=as_w(t2), b2=as_b(b2),
        wf=as_w(fc_w), bf=as_b(params["fc_b"]),
        wo=as_w(wo), bo=as_b(bo),
        meta=dict(c_in=c_in, h=h, w=w, kh=kh1, stride=s1,
                  oh=oh1, ow=ow1, n_out=n_out),
    )


# ----------------------------------------------------------------------------
# The single fused kernel: banded conv1 + 3 lane-dense matmuls, f32 accumulate,
# f32 bias+ReLU epilogues, intermediates never leave VMEM.
# ----------------------------------------------------------------------------
def _make_kernel(band_slices):
    """band_slices: per output row `oh`, the static (start, length) column
    slices of the flattened input that form that row's KH-row strip."""
    def kernel(x_ref, wb_ref, b1_ref, t2_ref, b2_ref,
               wf_ref, bf_ref, wo_ref, bo_ref, o_ref):
        wdt = wb_ref.dtype
        wb = wb_ref[...]                                      # (band_k, co*ow)

        # conv1: one shared band operator per 8-row input strip.
        parts = []
        for slices in band_slices:
            pieces = [x_ref[:, s:s + ln] for (s, ln) in slices]
            xb = pieces[0] if len(pieces) == 1 else jnp.concatenate(pieces, axis=-1)
            parts.append(jnp.dot(xb.astype(wdt), wb,
                                 preferred_element_type=jnp.float32))
        h1 = parts[0] if len(parts) == 1 else jnp.concatenate(parts, axis=-1)
        h1 = jnp.maximum(h1 + b1_ref[...], 0.0)               # conv1 bias + ReLU

        h2 = jnp.dot(h1.astype(wdt), t2_ref[...], preferred_element_type=jnp.float32)
        h2 = jnp.maximum(h2 + b2_ref[...], 0.0)               # conv2 bias + ReLU

        h3 = jnp.dot(h2.astype(wdt), wf_ref[...], preferred_element_type=jnp.float32)
        h3 = jnp.maximum(h3 + bf_ref[...], 0.0)               # fc bias + ReLU

        y = jnp.dot(h3.astype(wdt), wo_ref[...], preferred_element_type=jnp.float32)
        o_ref[...] = (y + bo_ref[...]).astype(o_ref.dtype)    # lane-padded head
    return kernel


def convnet2_forward(prep, x, *, block_b=512):
    """x: (N, stack_size, H, W) float32 -> (N, out) float32."""
    meta = prep["meta"]
    b = int(x.shape[0])
    c, h, w = int(x.shape[1]), int(x.shape[2]), int(x.shape[3])
    assert (c, h, w) == (meta["c_in"], meta["h"], meta["w"]), (x.shape, meta)
    k0 = c * h * w
    x_flat = x.reshape(b, k0)                 # contiguous NCHW flatten (free)

    # Static input strips per conv1 output row (contiguous for stack_size==1).
    hw = h * w
    band_len = meta["kh"] * w
    band_slices = tuple(
        tuple((ci * hw + meta["stride"] * oh_i * w, band_len) for ci in range(c))
        for oh_i in range(meta["oh"]))

    # Batch tiling: big tiles for MXU occupancy, >=2 grid steps when possible
    # (so "parallel" shards across v7x's two TensorCores), and NO HBM padding
    # pass -- the ragged last block is clamped by Pallas (rows are independent
    # and out-of-range rows are never written back).
    if b <= 8:
        bm = b                                           # single full-array block
    elif b <= 2 * block_b:
        bm = min(block_b, _round_up(_cdiv(b, 2), 8))
    else:
        bm = block_b
    grid_m = _cdiv(b, bm)

    band_k, band_n = (int(d) for d in prep["wb"].shape)
    n1, n2 = (int(d) for d in prep["t2"].shape)
    nf = int(prep["wf"].shape[1])
    no_pad = int(prep["wo"].shape[1])

    flops = int(2 * b * (meta["oh"] * band_k * band_n + n1 * n2 + n2 * nf + nf * no_pad))
    weight_bytes = sum(int(v.size) * v.dtype.itemsize
                       for k, v in prep.items() if k != "meta")
    bytes_accessed = int(x_flat.size * x_flat.dtype.itemsize
                         + weight_bytes + b * no_pad * 4)

    # Weights/biases: constant index_map, single buffer (double-buffering a
    # constant-resident operand is pure VMEM waste, esp. on v7x's 64 MiB).
    def wspec(a):
        return pl.BlockSpec(tuple(a.shape), lambda i: (0, 0),
                            pipeline_mode=pl.Buffered(1))

    out = pl.pallas_call(
        _make_kernel(band_slices),
        out_shape=jax.ShapeDtypeStruct((b, no_pad), jnp.float32),
        grid=(grid_m,),
        in_specs=[
            pl.BlockSpec((bm, k0), lambda i: (i, 0)),
            wspec(prep["wb"]), wspec(prep["b1"]),
            wspec(prep["t2"]), wspec(prep["b2"]),
            wspec(prep["wf"]), wspec(prep["bf"]),
            wspec(prep["wo"]), wspec(prep["bo"]),
        ],
        out_specs=pl.BlockSpec((bm, no_pad), lambda i: (i, 0)),
        compiler_params=pltpu.CompilerParams(
            dimension_semantics=("parallel",),       # shard batch on v7x megacore
            vmem_limit_bytes=48 * 1024 * 1024,       # fits v7x 64 MiB; ample on v5e/v6e
        ),
        cost_estimate=pl.CostEstimate(
            flops=flops, transcendentals=0, bytes_accessed=bytes_accessed),
    )(x_flat, prep["wb"], prep["b1"], prep["t2"], prep["b2"],
      prep["wf"], prep["bf"], prep["wo"], prep["bo"])

    return out[:, :meta["n_out"]]


# ----------------------------------------------------------------------------
# Deterministic PyTorch-layout init and a plain-JAX reference (for checking)
# ----------------------------------------------------------------------------
def init_params(key, w=45, h=30, stack_size=1, out=3):
    ks = jax.random.split(key, 8)
    scale = 0.05
    conv1_w = scale * jax.random.normal(ks[0], (32, stack_size, 8, 8), jnp.float32)
    conv1_b = scale * jax.random.normal(ks[1], (32,), jnp.float32)
    conv2_w = scale * jax.random.normal(ks[2], (64, 32, 4, 4), jnp.float32)
    conv2_b = scale * jax.random.normal(ks[3], (64,), jnp.float32)
    convw = conv2d_size_out(conv2d_size_out(w, 8, 4), 4, 2)
    convh = conv2d_size_out(conv2d_size_out(h, 8, 4), 4, 2)
    linear_input_size = convw * convh * 64
    fc_w = scale * jax.random.normal(ks[4], (512, linear_input_size), jnp.float32)
    fc_b = scale * jax.random.normal(ks[5], (512,), jnp.float32)
    out_w = scale * jax.random.normal(ks[6], (out, 512), jnp.float32)
    out_b = scale * jax.random.normal(ks[7], (out,), jnp.float32)
    return dict(conv1_w=conv1_w, conv1_b=conv1_b,
                conv2_w=conv2_w, conv2_b=conv2_b,
                fc_w=fc_w, fc_b=fc_b, out_w=out_w, out_b=out_b)


def _reference_forward(params, x):
    dn = ("NCHW", "OIHW", "NCHW")
    h = jax.lax.conv_general_dilated(x, params["conv1_w"], (4, 4), "VALID",
                                     dimension_numbers=dn)
    h = jax.nn.relu(h + params["conv1_b"][None, :, None, None])
    h = jax.lax.conv_general_dilated(h, params["conv2_w"], (2, 2), "VALID",
                                     dimension_numbers=dn)
    h = jax.nn.relu(h + params["conv2_b"][None, :, None, None])
    h = h.reshape(h.shape[0], -1)
    h = jax.nn.relu(h @ params["fc_w"].T + params["fc_b"])
    return h @ params["out_w"].T + params["out_b"]


if __name__ == "__main__":
    key = jax.random.PRNGKey(0)
    pkey, xkey = jax.random.split(key)

    params = init_params(pkey, w=45, h=30, stack_size=1, out=3)
    prep = prepare_params(params, w=45, h=30, param_dtype=jnp.bfloat16)

    # PyTorch NCHW input: (batch=2, stack_size=1, H=30, W=45)
    x = jax.random.normal(xkey, (2, 1, 30, 45), jnp.float32)

    y = jax.block_until_ready(convnet2_forward(prep, x))
    assert y.shape == (2, 3), y.shape

    # Check against a plain-JAX f32 reference (bf16 MXU operands -> loose tol).
    y_ref = jax.block_until_ready(_reference_forward(params, x))
    assert bool(jnp.all(jnp.isfinite(y)))
    assert bool(jnp.allclose(y, y_ref, rtol=5e-2, atol=5e-2)), (y, y_ref)

    print("KERNEL_OK")
</pallas_src>

<mosaic_0001>
module attributes {stable_mosaic.version = 11 : i64} {
  func.func @kernel(%arg0: i32, %arg1: memref<2x1350xf32, #tpu.memory_space<vmem>>, %arg2: memref<360x320xbf16, #tpu.memory_space<vmem>>, %arg3: memref<1x1920xf32, #tpu.memory_space<vmem>>, %arg4: memref<1920x512xbf16, #tpu.memory_space<vmem>>, %arg5: memref<1x512xf32, #tpu.memory_space<vmem>>, %arg6: memref<512x512xbf16, #tpu.memory_space<vmem>>, %arg7: memref<1x512xf32, #tpu.memory_space<vmem>>, %arg8: memref<512x128xbf16, #tpu.memory_space<vmem>>, %arg9: memref<1x128xf32, #tpu.memory_space<vmem>>, %arg10: memref<2x128xf32, #tpu.memory_space<vmem>>) attributes {dimension_semantics = [#tpu.dimension_semantics<parallel>], iteration_bounds = array<i64: 1>, scalar_prefetch = 0 : i64, scratch_operands = 0 : i64, tpu.core_type = #tpu.core_type<tc>, window_params = [{transform_indices = @transform_0, window_bounds = array<i64: 2, 1350>}, {pipeline_mode = #tpu.pipeline_mode<synchronous>, transform_indices = @transform_1, window_bounds = array<i64: 360, 320>}, {pipeline_mode = #tpu.pipeline_mode<synchronous>, transform_indices = @transform_2, window_bounds = array<i64: 1, 1920>}, {pipeline_mode = #tpu.pipeline_mode<synchronous>, transform_indices = @transform_3, window_bounds = array<i64: 1920, 512>}, {pipeline_mode = #tpu.pipeline_mode<synchronous>, transform_indices = @transform_4, window_bounds = array<i64: 1, 512>}, {pipeline_mode = #tpu.pipeline_mode<synchronous>, transform_indices = @transform_5, window_bounds = array<i64: 512, 512>}, {pipeline_mode = #tpu.pipeline_mode<synchronous>, transform_indices = @transform_6, window_bounds = array<i64: 1, 512>}, {pipeline_mode = #tpu.pipeline_mode<synchronous>, transform_indices = @transform_7, window_bounds = array<i64: 512, 128>}, {pipeline_mode = #tpu.pipeline_mode<synchronous>, transform_indices = @transform_8, window_bounds = array<i64: 1, 128>}, {transform_indices = @transform_9, window_bounds = array<i64: 2, 128>}]} {
    %c0 = arith.constant 0 : index
    %c0_0 = arith.constant 0 : index
    %0 = vector.load %arg2[%c0, %c0_0] : memref<360x320xbf16, #tpu.memory_space<vmem>>, vector<360x320xbf16>
    %c0_1 = arith.constant 0 : index
    %c0_2 = arith.constant 0 : index
    %1 = vector.load %arg1[%c0_1, %c0_2] : memref<2x1350xf32, #tpu.memory_space<vmem>>, vector<2x360xf32>
    %2 = arith.truncf %1 : vector<2x360xf32> to vector<2x360xbf16>
    %cst = arith.constant dense<0.000000e+00> : vector<2x320xf32>
    %3 = tpu.matmul %2, %0, %cst {dimension_numbers = #tpu.dot_dimension_numbers<[1], [0], [0], [1], [0, 0, 1, 1], [], []>} : vector<2x360xbf16>, vector<360x320xbf16>, vector<2x320xf32> -> vector<2x320xf32>
    %c0_3 = arith.constant 0 : index
    %c180 = arith.constant 180 : index
    %4 = vector.load %arg1[%c0_3, %c180] : memref<2x1350xf32, #tpu.memory_space<vmem>>, vector<2x360xf32>
    %5 = arith.truncf %4 : vector<2x360xf32> to vector<2x360xbf16>
    %cst_4 = arith.constant dense<0.000000e+00> : vector<2x320xf32>
    %6 = tpu.matmul %5, %0, %cst_4 {dimension_numbers = #tpu.dot_dimension_numbers<[1], [0], [0], [1], [0, 0, 1, 1], [], []>} : vector<2x360xbf16>, vector<360x320xbf16>, vector<2x320xf32> -> vector<2x320xf32>
    %c0_5 = arith.constant 0 : index
    %c360 = arith.constant 360 : index
    %7 = vector.load %arg1[%c0_5, %c360] : memref<2x1350xf32, #tpu.memory_space<vmem>>, vector<2x360xf32>
    %8 = arith.truncf %7 : vector<2x360xf32> to vector<2x360xbf16>
    %cst_6 = arith.constant dense<0.000000e+00> : vector<2x320xf32>
    %9 = tpu.matmul %8, %0, %cst_6 {dimension_numbers = #tpu.dot_dimension_numbers<[1], [0], [0], [1], [0, 0, 1, 1], [], []>} : vector<2x360xbf16>, vector<360x320xbf16>, vector<2x320xf32> -> vector<2x320xf32>
    %c0_7 = arith.constant 0 : index
    %c540 = arith.constant 540 : index
    %10 = vector.load %arg1[%c0_7, %c540] : memref<2x1350xf32, #tpu.memory_space<vmem>>, vector<2x360xf32>
    %11 = arith.truncf %10 : vector<2x360xf32> to vector<2x360xbf16>
    %cst_8 = arith.constant dense<0.000000e+00> : vector<2x320xf32>
    %12 = tpu.matmul %11, %0, %cst_8 {dimension_numbers = #tpu.dot_dimension_numbers<[1], [0], [0], [1], [0, 0, 1, 1], [], []>} : vector<2x360xbf16>, vector<360x320xbf16>, vector<2x320xf32> -> vector<2x320xf32>
    %c0_9 = arith.constant 0 : index
    %c720 = arith.constant 720 : index
    %13 = vector.load %arg1[%c0_9, %c720] : memref<2x1350xf32, #tpu.memory_space<vmem>>, vector<2x360xf32>
    %14 = arith.truncf %13 : vector<2x360xf32> to vector<2x360xbf16>
    %cst_10 = arith.constant dense<0.000000e+00> : vector<2x320xf32>
    %15 = tpu.matmul %14, %0, %cst_10 {dimension_numbers = #tpu.dot_dimension_numbers<[1], [0], [0], [1], [0, 0, 1, 1], [], []>} : vector<2x360xbf16>, vector<360x320xbf16>, vector<2x320xf32> -> vector<2x320xf32>
    %c0_11 = arith.constant 0 : index
    %c900 = arith.constant 900 : index
    %16 = vector.load %arg1[%c0_11, %c900] : memref<2x1350xf32, #tpu.memory_space<vmem>>, vector<2x360xf32>
    %17 = arith.truncf %16 : vector<2x360xf32> to vector<2x360xbf16>
    %cst_12 = arith.constant dense<0.000000e+00> : vector<2x320xf32>
    %18 = tpu.matmul %17, %0, %cst_12 {dimension_numbers = #tpu.dot_dimension_numbers<[1], [0], [0], [1], [0, 0, 1, 1], [], []>} : vector<2x360xbf16>, vector<360x320xbf16>, vector<2x320xf32> -> vector<2x320xf32>
    %19 = tpu.concatenate %3, %6, %9, %12, %15, %18 in 1 : vector<2x320xf32>, vector<2x320xf32>, vector<2x320xf32>, vector<2x320xf32>, vector<2x320xf32>, vector<2x320xf32> -> vector<2x1920xf32>
    %c0_13 = arith.constant 0 : index
    %c0_14 = arith.constant 0 : index
    %20 = vector.load %arg3[%c0_13, %c0_14] : memref<1x1920xf32, #tpu.memory_space<vmem>>, vector<1x1920xf32>
    %21 = vector.broadcast %20 : vector<1x1920xf32> to vector<2x1920xf32>
    %22 = arith.addf %19, %21 : vector<2x1920xf32>
    %cst_15 = arith.constant 0.000000e+00 : f32
    %23 = vector.broadcast %cst_15 : f32 to vector<2x1920xf32>
    %24 = arith.maximumf %22, %23 : vector<2x1920xf32>
    %25 = arith.truncf %24 : vector<2x1920xf32> to vector<2x1920xbf16>
    %c0_16 = arith.constant 0 : index
    %c0_17 = arith.constant 0 : index
    %26 = vector.load %arg4[%c0_16, %c0_17] : memref<1920x512xbf16, #tpu.memory_space<vmem>>, vector<1920x512xbf16>
    %cst_18 = arith.constant dense<0.000000e+00> : vector<2x512xf32>
    %27 = tpu.matmul %25, %26, %cst_18 {dimension_numbers = #tpu.dot_dimension_numbers<[1], [0], [0], [1], [0, 0, 1, 1], [], []>} : vector<2x1920xbf16>, vector<1920x512xbf16>, vector<2x512xf32> -> vector<2x512xf32>
    %c0_19 = arith.constant 0 : index
    %c0_20 = arith.constant 0 : index
    %28 = vector.load %arg5[%c0_19, %c0_20] : memref<1x512xf32, #tpu.memory_space<vmem>>, vector<1x512xf32>
    %29 = vector.broadcast %28 : vector<1x512xf32> to vector<2x512xf32>
    %30 = arith.addf %27, %29 : vector<2x512xf32>
    %cst_21 = arith.constant 0.000000e+00 : f32
    %31 = vector.broadcast %cst_21 : f32 to vector<2x512xf32>
    %32 = arith.maximumf %30, %31 : vector<2x512xf32>
    %33 = arith.truncf %32 : vector<2x512xf32> to vector<2x512xbf16>
    %c0_22 = arith.constant 0 : index
    %c0_23 = arith.constant 0 : index
    %34 = vector.load %arg6[%c0_22, %c0_23] : memref<512x512xbf16, #tpu.memory_space<vmem>>, vector<512x512xbf16>
    %cst_24 = arith.constant dense<0.000000e+00> : vector<2x512xf32>
    %35 = tpu.matmul %33, %34, %cst_24 {dimension_numbers = #tpu.dot_dimension_numbers<[1], [0], [0], [1], [0, 0, 1, 1], [], []>} : vector<2x512xbf16>, vector<512x512xbf16>, vector<2x512xf32> -> vector<2x512xf32>
    %c0_25 = arith.constant 0 : index
    %c0_26 = arith.constant 0 : index
    %36 = vector.load %arg7[%c0_25, %c0_26] : memref<1x512xf32, #tpu.memory_space<vmem>>, vector<1x512xf32>
    %37 = vector.broadcast %36 : vector<1x512xf32> to vector<2x512xf32>
    %38 = arith.addf %35, %37 : vector<2x512xf32>
    %cst_27 = arith.constant 0.000000e+00 : f32
    %39 = vector.broadcast %cst_27 : f32 to vector<2x512xf32>
    %40 = arith.maximumf %38, %39 : vector<2x512xf32>
    %41 = arith.truncf %40 : vector<2x512xf32> to vector<2x512xbf16>
    %c0_28 = arith.constant 0 : index
    %c0_29 = arith.constant 0 : index
    %42 = vector.load %arg8[%c0_28, %c0_29] : memref<512x128xbf16, #tpu.memory_space<vmem>>, vector<512x128xbf16>
    %cst_30 = arith.constant dense<0.000000e+00> : vector<2x128xf32>
    %43 = tpu.matmul %41, %42, %cst_30 {dimension_numbers = #tpu.dot_dimension_numbers<[1], [0], [0], [1], [0, 0, 1, 1], [], []>} : vector<2x512xbf16>, vector<512x128xbf16>, vector<2x128xf32> -> vector<2x128xf32>
    %c0_31 = arith.constant 0 : index
    %c0_32 = arith.constant 0 : index
    %44 = vector.load %arg9[%c0_31, %c0_32] : memref<1x128xf32, #tpu.memory_space<vmem>>, vector<1x128xf32>
    %45 = vector.broadcast %44 : vector<1x128xf32> to vector<2x128xf32>
    %46 = arith.addf %43, %45 : vector<2x128xf32>
    %c0_33 = arith.constant 0 : index
    %c0_34 = arith.constant 0 : index
    %47 = vector.load %arg10[%c0_33, %c0_34] : memref<2x128xf32, #tpu.memory_space<vmem>>, vector<2x128xf32>
    tpu.vector_store %arg10[%c0_33, %c0_34], %46 {strides = array<i32>} : memref<2x128xf32, #tpu.memory_space<vmem>>, vector<2x128xf32>,
    return
  }
  func.func @transform_0(%arg0: i32) -> (i32, i32) {
    %c0_i32 = arith.constant 0 : i32
    %c0_i32_0 = arith.constant 0 : i32
    return %arg0, %c0_i32 : i32, i32
  }
  func.func @transform_1(%arg0: i32) -> (i32, i32) {
    %c0_i32 = arith.constant 0 : i32
    %c0_i32_0 = arith.constant 0 : i32
    %c0_i32_1 = arith.constant 0 : i32
    return %c0_i32, %c0_i32_0 : i32, i32
  }
  func.func @transform_2(%arg0: i32) -> (i32, i32) {
    %c0_i32 = arith.constant 0 : i32
    %c0_i32_0 = arith.constant 0 : i32
    %c0_i32_1 = arith.constant 0 : i32
    return %c0_i32, %c0_i32_0 : i32, i32
  }
  func.func @transform_3(%arg0: i32) -> (i32, i32) {
    %c0_i32 = arith.constant 0 : i32
    %c0_i32_0 = arith.constant 0 : i32
    %c0_i32_1 = arith.constant 0 : i32
    return %c0_i32, %c0_i32_0 : i32, i32
  }
  func.func @transform_4(%arg0: i32) -> (i32, i32) {
    %c0_i32 = arith.constant 0 : i32
    %c0_i32_0 = arith.constant 0 : i32
    %c0_i32_1 = arith.constant 0 : i32
    return %c0_i32, %c0_i32_0 : i32, i32
  }
  func.func @transform_5(%arg0: i32) -> (i32, i32) {
    %c0_i32 = arith.constant 0 : i32
    %c0_i32_0 = arith.constant 0 : i32
    %c0_i32_1 = arith.constant 0 : i32
    return %c0_i32, %c0_i32_0 : i32, i32
  }
  func.func @transform_6(%arg0: i32) -> (i32, i32) {
    %c0_i32 = arith.constant 0 : i32
    %c0_i32_0 = arith.constant 0 : i32
    %c0_i32_1 = arith.constant 0 : i32
    return %c0_i32, %c0_i32_0 : i32, i32
  }
  func.func @transform_7(%arg0: i32) -> (i32, i32) {
    %c0_i32 = arith.constant 0 : i32
    %c0_i32_0 = arith.constant 0 : i32
    %c0_i32_1 = arith.constant 0 : i32
    return %c0_i32, %c0_i32_0 : i32, i32
  }
  func.func @transform_8(%arg0: i32) -> (i32, i32) {
    %c0_i32 = arith.constant 0 : i32
    %c0_i32_0 = arith.constant 0 : i32
    %c0_i32_1 = arith.constant 0 : i32
    return %c0_i32, %c0_i32_0 : i32, i32
  }
  func.func @transform_9(%arg0: i32) -> (i32, i32) {
    %c0_i32 = arith.constant 0 : i32
    %c0_i32_0 = arith.constant 0 : i32
    return %arg0, %c0_i32 : i32, i32
  }
}

</mosaic_0001>

<llo_original>
// kernel: tpu_custom_call.1
$region0: #{tpu_custom_call.1}
  #allocation0 [shape = 'u32[]', space=smem, size = 0x4, offset = 0x4, fixed_abs, tag = 'smem constant byte address 0x4 - core index']
  #allocation1 [shape = 'u32[144,128]{1,0:T(1,128)}', space=vmem, size = 0x12000, scoped, tag = 'internal scratch']
  %s0 = inlined_call_operand.hbm [shape: f32[2,1350], index: 0, kind: input, shape index: {}]
  %s1 = inlined_call_operand.vmem [shape: bf16[360,320], index: 1, kind: input, shape index: {}]
  %s2 = inlined_call_operand.hbm [shape: f32[1,1920], index: 2, kind: input, shape index: {}]
  %s3 = inlined_call_operand.hbm [shape: bf16[1920,512], index: 3, kind: input, shape index: {}]
  %s4 = inlined_call_operand.hbm [shape: f32[1,512], index: 4, kind: input, shape index: {}]
  %s5 = inlined_call_operand.hbm [shape: bf16[512,512], index: 5, kind: input, shape index: {}]
  %s6 = inlined_call_operand.hbm [shape: f32[1,512], index: 6, kind: input, shape index: {}]
  %s7 = inlined_call_operand.hbm [shape: bf16[512,128], index: 7, kind: input, shape index: {}]
  %s8 = inlined_call_operand.hbm [shape: f32[1,128], index: 8, kind: input, shape index: {}]
  %s9 = inlined_call_operand.hbm [shape: f32[2,128], index: 9, kind: output, shape index: {}]
  %s10 = sld [smem:[#allocation0]]
  $region78: #{tpu_custom_call.1} parent=0
    _
  %s12 = ssub.s32 1, %s10
  %s13 = scalar_select 0, %s12, %s10
  $region1: #{tpu_custom_call.1} parent=0
    #allocation2 [shape = 'u8[11264]{0}', space=vmem, size = 0x2c00, scoped, tag = 'input window, operand 0, single buffered']
    #allocation3 [shape = 's32[1]{0}', space=sflag, size = 0x4, scoped, tag = 'scoped memory for tpu_custom_call.1']
    #allocation4 [shape = 's32[1]{0}', space=sflag, size = 0x4, scoped, tag = 'scoped memory for tpu_custom_call.1']
    #allocation5 [shape = 'u8[7680]{0}', space=vmem, size = 0x2000, scoped, tag = 'input window, operand 2, single buffered']
    #allocation6 [shape = 's32[1]{0}', space=sflag, size = 0x4, scoped, tag = 'scoped memory for tpu_custom_call.1']
    #allocation7 [shape = 'u8[1966080]{0}', space=vmem, size = 0x1e0000, scoped, tag = 'input window, operand 3, single buffered']
    #allocation8 [shape = 'u8[2048]{0}', space=vmem, size = 0x800, scoped, tag = 'input window, operand 4, single buffered']
    #allocation9 [shape = 's32[1]{0}', space=sflag, size = 0x4, scoped, tag = 'scoped memory for tpu_custom_call.1']
    #allocation10 [shape = 'u8[524288]{0}', space=vmem, size = 0x80000, scoped, tag = 'input window, operand 5, single buffered']
    #allocation11 [shape = 'u8[2048]{0}', space=vmem, size = 0x800, scoped, tag = 'input window, operand 6, single buffered']
    #allocation12 [shape = 's32[1]{0}', space=sflag, size = 0x4, scoped, tag = 'scoped memory for tpu_custom_call.1']
    #allocation13 [shape = 'u8[131072]{0}', space=vmem, size = 0x20000, scoped, tag = 'input window, operand 7, single buffered']
    #allocation14 [shape = 'u8[512]{0}', space=vmem, size = 0x400, scoped, tag = 'input window, operand 8, single buffered']
    #allocation15 [shape = 's32[1]{0}', space=sflag, size = 0x4, scoped, tag = 'scoped memory for tpu_custom_call.1']
    #allocation16 [shape = 'u8[1024]{0}', space=vmem, size = 0x400, scoped, tag = 'output window, operand 0, single buffered']
    %14 = vsyncpa [#allocation3], 0
    %15 = vsyncpa [#allocation6], 0
    %16 = vsyncpa [#allocation9], 0
    %17 = vsyncpa [#allocation12], 0
    %18 = vsyncpa [#allocation15], 0
    %19 = vsyncpa [#allocation4], 0
    // Predicated region
    $region2: #{tpu_custom_call.1} parent=1 // pred_check
      _
    $region3: #{tpu_custom_call.1} parent=1 // pred_check_branch
      %21 = sbr.rel (0) target = $region5
    $region4: #{tpu_custom_call.1} parent=1 // pred_region
      %s23 = ssub.s32 352, 352
      %24 = vsyncadd [#allocation3], %s23
      %s26 = sshll.u32 [#allocation2], 4
      %s27 = int_to_ptr.vmem [resolvable:$true] %s26
      %29 = dma.hbm_to_vmem [thread:$0]  %s0, 352, %s27, [#allocation3]
    $region5: #{tpu_custom_call.1} parent=1 // pred_fallthru
      _
    // Predicated region
    $region6: #{tpu_custom_call.1} parent=1 // pred_check
      _
    $region7: #{tpu_custom_call.1} parent=1 // pred_check_branch
      %31 = sbr.rel (0) target = $region9
    $region8: #{tpu_custom_call.1} parent=1 // pred_region
      _
    $region9: #{tpu_custom_call.1} parent=1 // pred_fallthru
      _
    // Predicated region
    $region10: #{tpu_custom_call.1} parent=1 // pred_check
      _
    $region11: #{tpu_custom_call.1} parent=1 // pred_check_branch
      %33 = sbr.rel (0) target = $region13
    $region12: #{tpu_custom_call.1} parent=1 // pred_region
      %s35 = ssub.s32 240, 240
      %36 = vsyncadd [#allocation6], %s35
      %s38 = sshll.u32 [#allocation5], 4
      %s39 = int_to_ptr.vmem [resolvable:$true] %s38
      %41 = dma.hbm_to_vmem [thread:$0]  %s2, 240, %s39, [#allocation6]
    $region13: #{tpu_custom_call.1} parent=1 // pred_fallthru
      _
    // Predicated region
    $region14: #{tpu_custom_call.1} parent=1 // pred_check
      _
    $region15: #{tpu_custom_call.1} parent=1 // pred_check_branch
      %43 = sbr.rel (0) target = $region17
    $region16: #{tpu_custom_call.1} parent=1 // pred_region
      %s45 = ssub.s32 61440, 61440
      %46 = vsyncadd [#allocation6], %s45
      %s47 = sshll.u32 [#allocation7], 4
      %s48 = int_to_ptr.vmem [resolvable:$true] %s47
      %53 = dma.hbm_to_vmem [thread:$0]  %s3, 61440, %s48, [#allocation6], 256, 256, 16
    $region17: #{tpu_custom_call.1} parent=1 // pred_fallthru
      _
    // Predicated region
    $region18: #{tpu_custom_call.1} parent=1 // pred_check
      _
    $region19: #{tpu_custom_call.1} parent=1 // pred_check_branch
      %55 = sbr.rel (0) target = $region21
    $region20: #{tpu_custom_call.1} parent=1 // pred_region
      %s57 = ssub.s32 64, 64
      %58 = vsyncadd [#allocation9], %s57
      %s60 = sshll.u32 [#allocation8], 4
      %s61 = int_to_ptr.vmem [resolvable:$true] %s60
      %63 = dma.hbm_to_vmem [thread:$0]  %s4, 64, %s61, [#allocation9]
    $region21: #{tpu_custom_call.1} parent=1 // pred_fallthru
      _
    // Predicated region
    $region22: #{tpu_custom_call.1} parent=1 // pred_check
      _
    $region23: #{tpu_custom_call.1} parent=1 // pred_check_branch
      %65 = sbr.rel (0) target = $region25
    $region24: #{tpu_custom_call.1} parent=1 // pred_region
      %s67 = ssub.s32 16384, 16384
      %68 = vsyncadd [#allocation9], %s67
      %s69 = sshll.u32 [#allocation10], 4
      %s70 = int_to_ptr.vmem [resolvable:$true] %s69
      %75 = dma.hbm_to_vmem [thread:$0]  %s5, 16384, %s70, [#allocation9], 256, 256, 16
    $region25: #{tpu_custom_call.1} parent=1 // pred_fallthru
      _
    // Predicated region
    $region26: #{tpu_custom_call.1} parent=1 // pred_check
      _
    $region27: #{tpu_custom_call.1} parent=1 // pred_check_branch
      %77 = sbr.rel (0) target = $region29
    $region28: #{tpu_custom_call.1} parent=1 // pred_region
      %s79 = ssub.s32 64, 64
      %80 = vsyncadd [#allocation12], %s79
      %s82 = sshll.u32 [#allocation11], 4
      %s83 = int_to_ptr.vmem [resolvable:$true] %s82
      %85 = dma.hbm_to_vmem [thread:$0]  %s6, 64, %s83, [#allocation12]
    $region29: #{tpu_custom_call.1} parent=1 // pred_fallthru
      _
    // Predicated region
    $region30: #{tpu_custom_call.1} parent=1 // pred_check
      _
    $region31: #{tpu_custom_call.1} parent=1 // pred_check_branch
      %87 = sbr.rel (0) target = $region33
    $region32: #{tpu_custom_call.1} parent=1 // pred_region
      %s89 = ssub.s32 4096, 4096
      %90 = vsyncadd [#allocation12], %s89
      %s91 = sshll.u32 [#allocation13], 4
      %s92 = int_to_ptr.vmem [resolvable:$true] %s91
      %97 = dma.hbm_to_vmem [thread:$0]  %s7, 4096, %s92, [#allocation12], 64, 64, 4
    $region33: #{tpu_custom_call.1} parent=1 // pred_fallthru
      _
    // Predicated region
    $region34: #{tpu_custom_call.1} parent=1 // pred_check
      _
    $region35: #{tpu_custom_call.1} parent=1 // pred_check_branch
      %99 = sbr.rel (0) target = $region37
    $region36: #{tpu_custom_call.1} parent=1 // pred_region
      %s101 = ssub.s32 16, 16
      %102 = vsyncadd [#allocation15], %s101
      %s104 = sshll.u32 [#allocation14], 4
      %s105 = int_to_ptr.vmem [resolvable:$true] %s104
      %107 = dma.hbm_to_vmem [thread:$0]  %s8, 16, %s105, [#allocation15]
    $region37: #{tpu_custom_call.1} parent=1 // pred_fallthru
      _
    // Predicated region
    $region38: #{tpu_custom_call.1} parent=1 // pred_check
      _
    $region39: #{tpu_custom_call.1} parent=1 // pred_check_branch
      %109 = sbr.rel (0) target = $region41
    $region40: #{tpu_custom_call.1} parent=1 // pred_region
      %110 = dma.done [#allocation3], 352
    $region41: #{tpu_custom_call.1} parent=1 // pred_fallthru
      _
    // Predicated region
    $region42: #{tpu_custom_call.1} parent=1 // pred_check
      _
    $region43: #{tpu_custom_call.1} parent=1 // pred_check_branch
      %112 = sbr.rel (0) target = $region45
    $region44: #{tpu_custom_call.1} parent=1 // pred_region
      %113 = dma.done [#allocation6], 240
    $region45: #{tpu_custom_call.1} parent=1 // pred_fallthru
      _
    // Predicated region
    $region46: #{tpu_custom_call.1} parent=1 // pred_check
      _
    $region47: #{tpu_custom_call.1} parent=1 // pred_check_branch
      %115 = sbr.rel (0) target = $region49
    $region48: #{tpu_custom_call.1} parent=1 // pred_region
      %116 = dma.done [#allocation6], 61440
    $region49: #{tpu_custom_call.1} parent=1 // pred_fallthru
      _
    // Predicated region
    $region50: #{tpu_custom_call.1} parent=1 // pred_check
      _
    $region51: #{tpu_custom_call.1} parent=1 // pred_check_branch
      %118 = sbr.rel (0) target = $region53
    $region52: #{tpu_custom_call.1} parent=1 // pred_region
      %119 = dma.done [#allocation9], 64
    $region53: #{tpu_custom_call.1} parent=1 // pred_fallthru
      _
    // Predicated region
    $region54: #{tpu_custom_call.1} parent=1 // pred_check
      _
    $region55: #{tpu_custom_call.1} parent=1 // pred_check_branch
      %121 = sbr.rel (0) target = $region57
    $region56: #{tpu_custom_call.1} parent=1 // pred_region
      %122 = dma.done [#allocation9], 16384
    $region57: #{tpu_custom_call.1} parent=1 // pred_fallthru
      _
    // Predicated region
    $region58: #{tpu_custom_call.1} parent=1 // pred_check
      _
    $region59: #{tpu_custom_call.1} parent=1 // pred_check_branch
      %124 = sbr.rel (0) target = $region61
    $region60: #{tpu_custom_call.1} parent=1 // pred_region
      %125 = dma.done [#allocation12], 64
    $region61: #{tpu_custom_call.1} parent=1 // pred_fallthru
      _
    // Predicated region
    $region62: #{tpu_custom_call.1} parent=1 // pred_check
      _
    $region63: #{tpu_custom_call.1} parent=1 // pred_check_branch
      %127 = sbr.rel (0) target = $region65
    $region64: #{tpu_custom_call.1} parent=1 // pred_region
      %128 = dma.done [#allocation12], 4096
    $region65: #{tpu_custom_call.1} parent=1 // pred_fallthru
      _
    // Predicated region
    $region66: #{tpu_custom_call.1} parent=1 // pred_check
      _
    $region67: #{tpu_custom_call.1} parent=1 // pred_check_branch
      %130 = sbr.rel (0) target = $region69
    $region68: #{tpu_custom_call.1} parent=1 // pred_region
      %131 = dma.done [#allocation15], 16
    $region69: #{tpu_custom_call.1} parent=1 // pred_fallthru
      _
    %v133 = vld [vmem:[%s1] sm:$0xff]
    %v134 = vld [vmem:[%s1 + $0x8] sm:$0xf]
    %v135 = vld [vmem:[%s1 + $0xc] sm:$0xff]
    %v136 = vld [vmem:[%s1 + $0x14] sm:$0xf]
    %v137 = vld [vmem:[%s1 + $0x18] sm:$0xff]
    %v138 = vld [vmem:[%s1 + $0x20] sm:$0xf]
    %v139 = vld [vmem:[%s1 + $0x24] sm:$0xff]
    %v140 = vld [vmem:[%s1 + $0x2c] sm:$0xf]
    %v141 = vld [vmem:[%s1 + $0x30] sm:$0xff]
    %v142 = vld [vmem:[%s1 + $0x38] sm:$0xf]
    %v143 = vld [vmem:[%s1 + $0x3c] sm:$0xff]
    %v144 = vld [vmem:[%s1 + $0x44] sm:$0xf]
    %v145 = vld [vmem:[%s1 + $0x48] sm:$0xff]
    %v146 = vld [vmem:[%s1 + $0x50] sm:$0xf]
    %v147 = vld [vmem:[%s1 + $0x54] sm:$0xff]
    %v148 = vld [vmem:[%s1 + $0x5c] sm:$0xf]
    %v149 = vld [vmem:[%s1 + $0x60] sm:$0xff]
    %v150 = vld [vmem:[%s1 + $0x68] sm:$0xf]
    %v151 = vld [vmem:[%s1 + $0x6c] sm:$0xff]
    %v152 = vld [vmem:[%s1 + $0x74] sm:$0xf]
    %v153 = vld [vmem:[%s1 + $0x78] sm:$0xff]
    %v154 = vld [vmem:[%s1 + $0x80] sm:$0xf]
    %v155 = vld [vmem:[%s1 + $0x84] sm:$0xff]
    %v156 = vld [vmem:[%s1 + $0x8c] sm:$0xf]
    %v157 = vld [vmem:[%s1 + $0x90] sm:$0xff]
    %v158 = vld [vmem:[%s1 + $0x98] sm:$0xf]
    %v159 = vld [vmem:[%s1 + $0x9c] sm:$0xff]
    %v160 = vld [vmem:[%s1 + $0xa4] sm:$0xf]
    %v161 = vld [vmem:[%s1 + $0xa8] sm:$0xff]
    %v162 = vld [vmem:[%s1 + $0xb0] sm:$0xf]
    %v163 = vld [vmem:[%s1 + $0xb4] sm:$0xff]
    %v164 = vld [vmem:[%s1 + $0xbc] sm:$0xf]
    %v165 = vld [vmem:[%s1 + $0xc0] sm:$0xff]
    %v166 = vld [vmem:[%s1 + $0xc8] sm:$0xf]
    %v167 = vld [vmem:[%s1 + $0xcc] sm:$0xff]
    %v168 = vld [vmem:[%s1 + $0xd4] sm:$0xf]
    %v169 = vld [vmem:[%s1 + $0xd8] sm:$0xff]
    %v170 = vld [vmem:[%s1 + $0xe0] sm:$0xf]
    %v171 = vld [vmem:[%s1 + $0xe4] sm:$0xff]
    %v172 = vld [vmem:[%s1 + $0xec] sm:$0xf]
    %v173 = vld [vmem:[%s1 + $0xf0] sm:$0xff]
    %v174 = vld [vmem:[%s1 + $0xf8] sm:$0xf]
    %v175 = vld [vmem:[%s1 + $0xfc] sm:$0xff]
    %v176 = vld [vmem:[%s1 + $0x104] sm:$0xf]
    %v177 = vld [vmem:[%s1 + $0x108] sm:$0xff]
    %v178 = vld [vmem:[%s1 + $0x110] sm:$0xf]
    %v179 = vld [vmem:[%s1 + $0x114] sm:$0xff]
    %v180 = vld [vmem:[%s1 + $0x11c] sm:$0xf]
    %v181 = vld [vmem:[%s1 + $0x120] sm:$0xff]
    %v182 = vld [vmem:[%s1 + $0x128] sm:$0xf]
    %v183 = vld [vmem:[%s1 + $0x12c] sm:$0xff]
    %v184 = vld [vmem:[%s1 + $0x134] sm:$0xf]
    %v185 = vld [vmem:[%s1 + $0x138] sm:$0xff]
    %v186 = vld [vmem:[%s1 + $0x140] sm:$0xf]
    %v187 = vld [vmem:[%s1 + $0x144] sm:$0xff]
    %v188 = vld [vmem:[%s1 + $0x14c] sm:$0xf]
    %v189 = vld [vmem:[%s1 + $0x150] sm:$0xff]
    %v190 = vld [vmem:[%s1 + $0x158] sm:$0xf]
    %v191 = vld [vmem:[%s1 + $0x15c] sm:$0xff]
    %v192 = vld [vmem:[%s1 + $0x164] sm:$0xf]
    %v193 = vld [vmem:[%s1 + $0x168] sm:$0xff]
    %v194 = vld [vmem:[%s1 + $0x170] sm:$0xf]
    %v195 = vld [vmem:[%s1 + $0x174] sm:$0xff]
    %v196 = vld [vmem:[%s1 + $0x17c] sm:$0xf]
    %v197 = vld [vmem:[%s1 + $0x180] sm:$0xff]
    %v198 = vld [vmem:[%s1 + $0x188] sm:$0xf]
    %v199 = vld [vmem:[%s1 + $0x18c] sm:$0xff]
    %v200 = vld [vmem:[%s1 + $0x194] sm:$0xf]
    %v201 = vld [vmem:[%s1 + $0x198] sm:$0xff]
    %v202 = vld [vmem:[%s1 + $0x1a0] sm:$0xf]
    %v203 = vld [vmem:[%s1 + $0x1a4] sm:$0xff]
    %v204 = vld [vmem:[%s1 + $0x1ac] sm:$0xf]
    %v205 = vld [vmem:[%s1 + $0x1b0] sm:$0xff]
    %v206 = vld [vmem:[%s1 + $0x1b8] sm:$0xf]
    %v207 = vld [vmem:[%s1 + $0x1bc] sm:$0xff]
    %v208 = vld [vmem:[%s1 + $0x1c4] sm:$0xf]
    %v209 = vld [vmem:[%s1 + $0x1c8] sm:$0xff]
    %v210 = vld [vmem:[%s1 + $0x1d0] sm:$0xf]
    %v211 = vld [vmem:[%s1 + $0x1d4] sm:$0xff]
    %v212 = vld [vmem:[%s1 + $0x1dc] sm:$0xf]
    %v213 = vld [vmem:[%s1 + $0x1e0] sm:$0xff]
    %v214 = vld [vmem:[%s1 + $0x1e8] sm:$0xf]
    %v215 = vld [vmem:[%s1 + $0x1ec] sm:$0xff]
    %v216 = vld [vmem:[%s1 + $0x1f4] sm:$0xf]
    %v217 = vld [vmem:[%s1 + $0x1f8] sm:$0xff]
    %v218 = vld [vmem:[%s1 + $0x200] sm:$0xf]
    %v219 = vld [vmem:[%s1 + $0x204] sm:$0xff]
    %v220 = vld [vmem:[%s1 + $0x20c] sm:$0xf]
    %v221 = vld [vmem:[%s1 + $0x210] sm:$0xff]
    %v222 = vld [vmem:[%s1 + $0x218] sm:$0xf]
    %v223 = vld [vmem:[#allocation2] sm:$0x3f]
    %v225 = vcombine.high %v223, %v223
    %v227 = vunpack.c.l.s4 1983009808
    %v228 = vunpack.c.0.s8 %v227
    %v229 = vlaneseq
    %v230 = vshrl.u32 %v229, 7
    %v231 = vsub.s32 %v228, %v230
    %v232 = vrot.slane %v223, %v231
    %v234 = vunpack.c.l.s4 1983009808
    %v235 = vunpack.c.0.s8 %v234
    %v236 = vlaneseq
    %v237 = vshrl.u32 %v236, 7
    %v238 = vsub.s32 %v235, %v237
    %v239 = vrot.slane %v225, %v238
    %v240 = vcombine.high %v232, %v232
    %v244 = vpack.c.bf16 %v232, %v232
    %v245 = vpack.c.bf16 %v240, %v240
    %v246 = vpack.c.bf16 %v239, %v239
    %v337 = vunpack.c.l.b16 %v133
    %v338 = vunpack.c.h.b16 %v133
    %v339 = vunpack.c.l.b16 %v134
    %v340 = vunpack.c.l.b16 %v135
    %v341 = vunpack.c.h.b16 %v135
    %v342 = vunpack.c.l.b16 %v136
    %v343 = vunpack.c.l.b16 %v137
    %v344 = vunpack.c.h.b16 %v137
    %v345 = vunpack.c.l.b16 %v138
    %v346 = vunpack.c.l.b16 %v139
    %v347 = vunpack.c.h.b16 %v139
    %v348 = vunpack.c.l.b16 %v140
    %v349 = vunpack.c.l.b16 %v141
    %v350 = vunpack.c.h.b16 %v141
    %v351 = vunpack.c.l.b16 %v142
    %v352 = vunpack.c.l.b16 %v143
    %v353 = vunpack.c.h.b16 %v143
    %v354 = vunpack.c.l.b16 %v144
    %v355 = vunpack.c.l.b16 %v145
    %v356 = vunpack.c.h.b16 %v145
    %v357 = vunpack.c.l.b16 %v146
    %v358 = vunpack.c.l.b16 %v147
    %v359 = vunpack.c.h.b16 %v147
    %v360 = vunpack.c.l.b16 %v148
    %v361 = vunpack.c.l.b16 %v149
    %v362 = vunpack.c.h.b16 %v149
    %v363 = vunpack.c.l.b16 %v150
    %v364 = vunpack.c.l.b16 %v151
    %v365 = vunpack.c.h.b16 %v151
    %v366 = vunpack.c.l.b16 %v152
    %v367 = vunpack.c.l.b16 %v153
    %v368 = vunpack.c.h.b16 %v153
    %v369 = vunpack.c.l.b16 %v154
    %v370 = vunpack.c.l.b16 %v155
    %v371 = vunpack.c.h.b16 %v155
    %v372 = vunpack.c.l.b16 %v156
    %v373 = vunpack.c.l.b16 %v157
    %v374 = vunpack.c.h.b16 %v157
    %v375 = vunpack.c.l.b16 %v158
    %v376 = vunpack.c.l.b16 %v159
    %v377 = vunpack.c.h.b16 %v159
    %v378 = vunpack.c.l.b16 %v160
    %v379 = vunpack.c.l.b16 %v161
    %v380 = vunpack.c.h.b16 %v161
    %v381 = vunpack.c.l.b16 %v162
    %v382 = vunpack.c.l.b16 %v163
    %v383 = vunpack.c.h.b16 %v163
    %v384 = vunpack.c.l.b16 %v164
    %v385 = vunpack.c.l.b16 %v165
    %v386 = vunpack.c.h.b16 %v165
    %v387 = vunpack.c.l.b16 %v166
    %v388 = vunpack.c.l.b16 %v167
    %v389 = vunpack.c.h.b16 %v167
    %v390 = vunpack.c.l.b16 %v168
    %v391 = vunpack.c.l.b16 %v169
    %v392 = vunpack.c.h.b16 %v169
    %v393 = vunpack.c.l.b16 %v170
    %v394 = vunpack.c.l.b16 %v171
    %v395 = vunpack.c.h.b16 %v171
    %v396 = vunpack.c.l.b16 %v172
    %v397 = vunpack.c.l.b16 %v173
    %v398 = vunpack.c.h.b16 %v173
    %v399 = vunpack.c.l.b16 %v174
    %v400 = vunpack.c.l.b16 %v175
    %v401 = vunpack.c.h.b16 %v175
    %v402 = vunpack.c.l.b16 %v176
    %v403 = vunpack.c.l.b16 %v177
    %v404 = vunpack.c.h.b16 %v177
    %v405 = vunpack.c.l.b16 %v178
    %v406 = vunpack.c.l.b16 %v179
    %v407 = vunpack.c.h.b16 %v179
    %v408 = vunpack.c.l.b16 %v180
    %v409 = vunpack.c.l.b16 %v181
    %v410 = vunpack.c.h.b16 %v181
    %v411 = vunpack.c.l.b16 %v182
    %v412 = vunpack.c.l.b16 %v183
    %v413 = vunpack.c.h.b16 %v183
    %v414 = vunpack.c.l.b16 %v184
    %v415 = vunpack.c.l.b16 %v185
    %v416 = vunpack.c.h.b16 %v185
    %v417 = vunpack.c.l.b16 %v186
    %v418 = vunpack.c.l.b16 %v187
    %v419 = vunpack.c.h.b16 %v187
    %v420 = vunpack.c.l.b16 %v188
    %v421 = vunpack.c.l.b16 %v189
    %v422 = vunpack.c.h.b16 %v189
    %v423 = vunpack.c.l.b16 %v190
    %v424 = vunpack.c.l.b16 %v191
    %v425 = vunpack.c.h.b16 %v191
    %v426 = vunpack.c.l.b16 %v192
    %v427 = vunpack.c.l.b16 %v193
    %v428 = vunpack.c.h.b16 %v193
    %v429 = vunpack.c.l.b16 %v194
    %v430 = vunpack.c.l.b16 %v195
    %v431 = vunpack.c.h.b16 %v195
    %v432 = vunpack.c.l.b16 %v196
    %v433 = vunpack.c.l.b16 %v197
    %v434 = vunpack.c.h.b16 %v197
    %v435 = vunpack.c.l.b16 %v198
    %v436 = vunpack.c.l.b16 %v199
    %v437 = vunpack.c.h.b16 %v199
    %v438 = vunpack.c.l.b16 %v200
    %v439 = vunpack.c.l.b16 %v201
    %v440 = vunpack.c.h.b16 %v201
    %v441 = vunpack.c.l.b16 %v202
    %v442 = vunpack.c.l.b16 %v203
    %v443 = vunpack.c.h.b16 %v203
    %v444 = vunpack.c.l.b16 %v204
    %v445 = vunpack.c.l.b16 %v205
    %v446 = vunpack.c.h.b16 %v205
    %v447 = vunpack.c.l.b16 %v206
    %v448 = vunpack.c.l.b16 %v207
    %v449 = vunpack.c.h.b16 %v207
    %v450 = vunpack.c.l.b16 %v208
    %v451 = vunpack.c.l.b16 %v209
    %v452 = vunpack.c.h.b16 %v209
    %v453 = vunpack.c.l.b16 %v210
    %v454 = vunpack.c.l.b16 %v211
    %v455 = vunpack.c.h.b16 %v211
    %v456 = vunpack.c.l.b16 %v212
    %v457 = vunpack.c.l.b16 %v213
    %v458 = vunpack.c.h.b16 %v213
    %v459 = vunpack.c.l.b16 %v214
    %v460 = vunpack.c.l.b16 %v215
    %v461 = vunpack.c.h.b16 %v215
    %v462 = vunpack.c.l.b16 %v216
    %v463 = vunpack.c.l.b16 %v217
    %v464 = vunpack.c.h.b16 %v217
    %v465 = vunpack.c.l.b16 %v218
    %v466 = vunpack.c.l.b16 %v219
    %v467 = vunpack.c.h.b16 %v219
    %v468 = vunpack.c.l.b16 %v220
    %v469 = vunpack.c.l.b16 %v221
    %v470 = vunpack.c.h.b16 %v221
    %v471 = vunpack.c.l.b16 %v222
    %v472 = vpack.c.b16 %v340, %v337
    %v473 = vpack.c.b16 %v341, %v338
    %v474 = vpack.c.b16 %v342, %v339
    %v475 = vpack.c.b16 %v346, %v343
    %v476 = vpack.c.b16 %v347, %v344
    %v477 = vpack.c.b16 %v348, %v345
    %v478 = vpack.c.b16 %v352, %v349
    %v479 = vpack.c.b16 %v353, %v350
    %v480 = vpack.c.b16 %v354, %v351
    %v481 = vpack.c.b16 %v358, %v355
    %v482 = vpack.c.b16 %v359, %v356
    %v483 = vpack.c.b16 %v360, %v357
    %v484 = vpack.c.b16 %v364, %v361
    %v485 = vpack.c.b16 %v365, %v362
    %v486 = vpack.c.b16 %v366, %v363
    %v487 = vpack.c.b16 %v370, %v367
    %v488 = vpack.c.b16 %v371, %v368
    %v489 = vpack.c.b16 %v372, %v369
    %v490 = vpack.c.b16 %v376, %v373
    %v491 = vpack.c.b16 %v377, %v374
    %v492 = vpack.c.b16 %v378, %v375
    %v493 = vpack.c.b16 %v382, %v379
    %v494 = vpack.c.b16 %v383, %v380
    %v495 = vpack.c.b16 %v384, %v381
    %v496 = vpack.c.b16 %v388, %v385
    %v497 = vpack.c.b16 %v389, %v386
    %v498 = vpack.c.b16 %v390, %v387
    %v499 = vpack.c.b16 %v394, %v391
    %v500 = vpack.c.b16 %v395, %v392
    %v501 = vpack.c.b16 %v396, %v393
    %v502 = vpack.c.b16 %v400, %v397
    %v503 = vpack.c.b16 %v401, %v398
    %v504 = vpack.c.b16 %v402, %v399
    %v505 = vpack.c.b16 %v406, %v403
    %v506 = vpack.c.b16 %v407, %v404
    %v507 = vpack.c.b16 %v408, %v405
    %v508 = vpack.c.b16 %v412, %v409
    %v509 = vpack.c.b16 %v413, %v410
    %v510 = vpack.c.b16 %v414, %v411
    %v511 = vpack.c.b16 %v418, %v415
    %v512 = vpack.c.b16 %v419, %v416
    %v513 = vpack.c.b16 %v420, %v417
    %v514 = vpack.c.b16 %v424, %v421
    %v515 = vpack.c.b16 %v425, %v422
    %v516 = vpack.c.b16 %v426, %v423
    %v517 = vpack.c.b16 %v430, %v427
    %v518 = vpack.c.b16 %v431, %v428
    %v519 = vpack.c.b16 %v432, %v429
    %v520 = vpack.c.b16 %v436, %v433
    %v521 = vpack.c.b16 %v437, %v434
    %v522 = vpack.c.b16 %v438, %v435
    %v523 = vpack.c.b16 %v442, %v439
    %v524 = vpack.c.b16 %v443, %v440
    %v525 = vpack.c.b16 %v444, %v441
    %v526 = vpack.c.b16 %v448, %v445
    %v527 = vpack.c.b16 %v449, %v446
    %v528 = vpack.c.b16 %v450, %v447
    %v529 = vpack.c.b16 %v454, %v451
    %v530 = vpack.c.b16 %v455, %v452
    %v531 = vpack.c.b16 %v456, %v453
    %v532 = vpack.c.b16 %v460, %v457
    %v533 = vpack.c.b16 %v461, %v458
    %v534 = vpack.c.b16 %v462, %v459
    %v535 = vpack.c.b16 %v466, %v463
    %v536 = vpack.c.b16 %v467, %v464
    %v537 = vpack.c.b16 %v468, %v465
    %v538 = vpack.c.b16 %v469, %v469
    %v539 = vpack.c.b16 %v470, %v470
    %v540 = vpack.c.b16 %v471, %v471
    %vm607 = vcmask 850944
    %v609 = vsel %vm607, %v246, 0
    %vm611 = vcmask 1043456
    %v613 = vsel %vm611, %v538, 0
    %v616 = vsel %vm611, %v539, 0
    %v619 = vsel %vm611, %v540, 0
    %621 = vmatprep.subr.bf16.mxu0 %v494
    %622 = vmatpush1.bf16.msra.mxu0 %v493
    %623 = vmatprep.subr.bf16.mxu0 %v491
    %624 = vmatpush1.bf16.msra.mxu0 %v490
    %625 = vmatprep.subr.bf16.mxu0 %v488
    %626 = vmatpush1.bf16.msra.mxu0 %v487
    %627 = vmatprep.subr.bf16.mxu0 %v485
    %628 = vmatpush1.bf16.msra.mxu0 %v484
    %629 = vmatprep.subr.bf16.mxu0 %v482
    %630 = vmatpush1.bf16.msra.mxu0 %v481
    %631 = vmatprep.subr.bf16.mxu0 %v479
    %632 = vmatpush1.bf16.msra.mxu0 %v478
    %633 = vmatprep.subr.bf16.mxu0 %v476
    %634 = vmatpush1.bf16.msra.mxu0 %v475
    %635 = vmatprep.subr.bf16.mxu0 %v473
    %636 = vmatpush1.bf16.msra.mxu0 %v472
    %637 = vmatprep.subr.bf16.mxu0 %v518
    %638 = vmatpush2.bf16.msra.mxu0 %v517
    %639 = vmatprep.subr.bf16.mxu0 %v515
    %640 = vmatpush2.bf16.msra.mxu0 %v514
    %641 = vmatprep.subr.bf16.mxu0 %v512
    %642 = vmatpush2.bf16.msra.mxu0 %v511
    %643 = vmatprep.subr.bf16.mxu0 %v509
    %644 = vmatpush2.bf16.msra.mxu0 %v508
    %645 = vmatprep.subr.bf16.mxu0 %v506
    %646 = vmatpush2.bf16.msra.mxu0 %v505
    %647 = vmatprep.subr.bf16.mxu0 %v503
    %648 = vmatpush2.bf16.msra.mxu0 %v502
    %649 = vmatprep.subr.bf16.mxu0 %v500
    %650 = vmatpush2.bf16.msra.mxu0 %v499
    %651 = vmatprep.subr.bf16.mxu0 %v497
    %652 = vmatpush2.bf16.msra.mxu0 %v496
    %653 = vmatprep.mubr.bf16.mxu0 %v245
    %654 = vmatmul.mubr.bf16.gmra.mxu0 %v244
    %v655 = vpop.f32.mrf.mxu0
    %v656 = vadd.f32 0.0, %v655
    %v657 = vpop.f32.mrf.mxu0
    %v658 = vadd.f32 0.0, %v657
    %v659 = vpop.f32.mrf.mxu0
    %v660 = vpop.f32.mrf.mxu0
    %661 = vdwg.mxu0
    %662 = vmatprep.subr.bf16.mxu0 0
    %663 = vmatpush1.bf16.msra.mxu0 0
    %664 = vmatprep.subr.bf16.mxu0 %v616
    %665 = vmatpush1.bf16.msra.mxu0 %v613
    %666 = vmatprep.subr.bf16.mxu0 %v536
    %667 = vmatpush1.bf16.msra.mxu0 %v535
    %668 = vmatprep.subr.bf16.mxu0 %v533
    %669 = vmatpush1.bf16.msra.mxu0 %v532
    %670 = vmatprep.subr.bf16.mxu0 %v530
    %671 = vmatpush1.bf16.msra.mxu0 %v529
    %672 = vmatprep.subr.bf16.mxu0 %v527
    %673 = vmatpush1.bf16.msra.mxu0 %v526
    %674 = vmatprep.subr.bf16.mxu0 %v524
    %675 = vmatpush1.bf16.msra.mxu0 %v523
    %676 = vmatprep.subr.bf16.mxu0 %v521
    %677 = vmatpush1.bf16.msra.mxu0 %v520
    %678 = vmatprep.subr.bf16.mxu0 0
    %679 = vmatpush2.bf16.msra.mxu0 0
    %680 = vmatprep.subr.bf16.mxu0 0
    %681 = vmatpush2.bf16.msra.mxu0 0
    %682 = vmatprep.subr.bf16.mxu0 0
    %683 = vmatpush2.bf16.msra.mxu0 0
    %684 = vmatprep.subr.bf16.mxu0 0
    %685 = vmatpush2.bf16.msra.mxu0 0
    %686 = vmatprep.subr.bf16.mxu0 0
    %687 = vmatpush2.bf16.msra.mxu0 0
    %688 = vmatprep.subr.bf16.mxu0 0
    %689 = vmatpush2.bf16.msra.mxu0 0
    %690 = vmatprep.subr.bf16.mxu0 0
    %691 = vmatpush2.bf16.msra.mxu0 0
    %692 = vmatprep.subr.bf16.mxu0 0
    %693 = vmatpush2.bf16.msra.mxu0 0
    %694 = vmatprep.mubr.bf16.mxu0 0
    %695 = vmatmul.mubr.bf16.gmra.mxu0 %v609
    %v696 = vpop.f32.mrf.mxu0
    %v697 = vadd.f32 %v656, %v696
    %v698 = vpop.f32.mrf.mxu0
    %v699 = vadd.f32 %v658, %v698
    %v700 = vpop.f32.mrf.mxu0
    %v701 = vpop.f32.mrf.mxu0
    %702 = vdwg.mxu0
    %703 = vmatprep.subr.bf16.mxu0 0
    %704 = vmatpush1.bf16.msra.mxu0 %v495
    %705 = vmatprep.subr.bf16.mxu0 0
    %706 = vmatpush1.bf16.msra.mxu0 %v492
    %707 = vmatprep.subr.bf16.mxu0 0
    %708 = vmatpush1.bf16.msra.mxu0 %v489
    %709 = vmatprep.subr.bf16.mxu0 0
    %710 = vmatpush1.bf16.msra.mxu0 %v486
    %711 = vmatprep.subr.bf16.mxu0 0
    %712 = vmatpush1.bf16.msra.mxu0 %v483
    %713 = vmatprep.subr.bf16.mxu0 0
    %714 = vmatpush1.bf16.msra.mxu0 %v480
    %715 = vmatprep.subr.bf16.mxu0 0
    %716 = vmatpush1.bf16.msra.mxu0 %v477
    %717 = vmatprep.subr.bf16.mxu0 0
    %718 = vmatpush1.bf16.msra.mxu0 %v474
    %719 = vmatprep.subr.bf16.mxu0 0
    %720 = vmatpush2.bf16.msra.mxu0 %v519
    %721 = vmatprep.subr.bf16.mxu0 0
    %722 = vmatpush2.bf16.msra.mxu0 %v516
    %723 = vmatprep.subr.bf16.mxu0 0
    %724 = vmatpush2.bf16.msra.mxu0 %v513
    %725 = vmatprep.subr.bf16.mxu0 0
    %726 = vmatpush2.bf16.msra.mxu0 %v510
    %727 = vmatprep.subr.bf16.mxu0 0
    %728 = vmatpush2.bf16.msra.mxu0 %v507
    %729 = vmatprep.subr.bf16.mxu0 0
    %730 = vmatpush2.bf16.msra.mxu0 %v504
    %731 = vmatprep.subr.bf16.mxu0 0
    %732 = vmatpush2.bf16.msra.mxu0 %v501
    %733 = vmatprep.subr.bf16.mxu0 0
    %734 = vmatpush2.bf16.msra.mxu0 %v498
    %735 = vmatprep.mubr.bf16.mxu0 %v245
    %736 = vmatmul.mubr.bf16.gmra.mxu0 %v244
    %v737 = vpop.f32.mrf.mxu0
    %v738 = vadd.f32 0.0, %v737
    %v739 = vpop.f32.mrf.mxu0
    %v740 = vpop.f32.mrf.mxu0
    %v741 = vpop.f32.mrf.mxu0
    %742 = vdwg.mxu0
    %743 = vmatprep.subr.bf16.mxu0 0
    %744 = vmatpush1.bf16.msra.mxu0 0
    %745 = vmatprep.subr.bf16.mxu0 0
    %746 = vmatpush1.bf16.msra.mxu0 %v619
    %747 = vmatprep.subr.bf16.mxu0 0
    %748 = vmatpush1.bf16.msra.mxu0 %v537
    %749 = vmatprep.subr.bf16.mxu0 0
    %750 = vmatpush1.bf16.msra.mxu0 %v534
    %751 = vmatprep.subr.bf16.mxu0 0
    %752 = vmatpush1.bf16.msra.mxu0 %v531
    %753 = vmatprep.subr.bf16.mxu0 0
    %754 = vmatpush1.bf16.msra.mxu0 %v528
    %755 = vmatprep.subr.bf16.mxu0 0
    %756 = vmatpush1.bf16.msra.mxu0 %v525
    %757 = vmatprep.subr.bf16.mxu0 0
    %758 = vmatpush1.bf16.msra.mxu0 %v522
    %759 = vmatprep.subr.bf16.mxu0 0
    %760 = vmatpush2.bf16.msra.mxu0 0
    %761 = vmatprep.subr.bf16.mxu0 0
    %762 = vmatpush2.bf16.msra.mxu0 0
    %763 = vmatprep.subr.bf16.mxu0 0
    %764 = vmatpush2.bf16.msra.mxu0 0
    %765 = vmatprep.subr.bf16.mxu0 0
    %766 = vmatpush2.bf16.msra.mxu0 0
    %767 = vmatprep.subr.bf16.mxu0 0
    %768 = vmatpush2.bf16.msra.mxu0 0
    %769 = vmatprep.subr.bf16.mxu0 0
    %770 = vmatpush2.bf16.msra.mxu0 0
    %771 = vmatprep.subr.bf16.mxu0 0
    %772 = vmatpush2.bf16.msra.mxu0 0
    %773 = vmatprep.subr.bf16.mxu0 0
    %774 = vmatpush2.bf16.msra.mxu0 0
    %775 = vmatprep.mubr.bf16.mxu0 0
    %776 = vmatmul.mubr.bf16.gmra.mxu0 %v609
    %v777 = vpop.f32.mrf.mxu0
    %v778 = vadd.f32 %v738, %v777
    %v779 = vpop.f32.mrf.mxu0
    %v780 = vpop.f32.mrf.mxu0
    %v781 = vpop.f32.mrf.mxu0
    %782 = vdwg.mxu0
    %v783 = vld [vmem:[#allocation2 + $0x2] sm:$0xff]
    %v785 = vcombine.high %v783, %v783
    %v787 = vunpack.c.l.s4 1983009808
    %v788 = vunpack.c.0.s8 %v787
    %v789 = vlaneseq
    %v790 = vshrl.u32 %v789, 7
    %v791 = vsub.s32 %v788, %v790
    %v792 = vrot.slane %v783, %v791
    %v794 = vunpack.c.l.s4 1983009808
    %v795 = vunpack.c.0.s8 %v794
    %v796 = vlaneseq
    %v797 = vshrl.u32 %v796, 7
    %v798 = vsub.s32 %v795, %v797
    %v799 = vrot.slane %v785, %v798
    %v800 = vcombine.high %v792, %v792
    %v801 = vcombine.high %v799, %v799
    %v806 = vpack.c.bf16 %v792, %v792
    %v807 = vpack.c.bf16 %v800, %v800
    %v808 = vpack.c.bf16 %v799, %v799
    %v809 = vpack.c.bf16 %v801, %v801
    %814 = vrot.lane.b32.xlu0 %v806, 76
    %v815 = vpop.permute.xlu0 %814
    %816 = vrot.lane.b32.xlu0 %v807, 76
    %v817 = vpop.permute.xlu0 %816
    %818 = vrot.lane.b32.xlu0 %v808, 76
    %v819 = vpop.permute.xlu0 %818
    %820 = vrot.lane.b32.xlu0 %v809, 76
    %v821 = vpop.permute.xlu0 %820
    %vm822 = vcmask 621568
    %v823 = vsel %vm822, %v815, %v817
    %v824 = vsel %vm822, %v817, %v819
    %v825 = vsel %vm822, %v819, %v821
    %v829 = vsel %vm607, %v825, 0
    %831 = vmatprep.subr.bf16.mxu0 %v494
    %832 = vmatpush1.bf16.msra.mxu0 %v493
    %833 = vmatprep.subr.bf16.mxu0 %v491
    %834 = vmatpush1.bf16.msra.mxu0 %v490
    %835 = vmatprep.subr.bf16.mxu0 %v488
    %836 = vmatpush1.bf16.msra.mxu0 %v487
    %837 = vmatprep.subr.bf16.mxu0 %v485
    %838 = vmatpush1.bf16.msra.mxu0 %v484
    %839 = vmatprep.subr.bf16.mxu0 %v482
    %840 = vmatpush1.bf16.msra.mxu0 %v481
    %841 = vmatprep.subr.bf16.mxu0 %v479
    %842 = vmatpush1.bf16.msra.mxu0 %v478
    %843 = vmatprep.subr.bf16.mxu0 %v476
    %844 = vmatpush1.bf16.msra.mxu0 %v475
    %845 = vmatprep.subr.bf16.mxu0 %v473
    %846 = vmatpush1.bf16.msra.mxu0 %v472
    %847 = vmatprep.subr.bf16.mxu0 %v518
    %848 = vmatpush2.bf16.msra.mxu0 %v517
    %849 = vmatprep.subr.bf16.mxu0 %v515
    %850 = vmatpush2.bf16.msra.mxu0 %v514
    %851 = vmatprep.subr.bf16.mxu0 %v512
    %852 = vmatpush2.bf16.msra.mxu0 %v511
    %853 = vmatprep.subr.bf16.mxu0 %v509
    %854 = vmatpush2.bf16.msra.mxu0 %v508
    %855 = vmatprep.subr.bf16.mxu0 %v506
    %856 = vmatpush2.bf16.msra.mxu0 %v505
    %857 = vmatprep.subr.bf16.mxu0 %v503
    %858 = vmatpush2.bf16.msra.mxu0 %v502
    %859 = vmatprep.subr.bf16.mxu0 %v500
    %860 = vmatpush2.bf16.msra.mxu0 %v499
    %861 = vmatprep.subr.bf16.mxu0 %v497
    %862 = vmatpush2.bf16.msra.mxu0 %v496
    %863 = vmatprep.mubr.bf16.mxu0 %v824
    %864 = vmatmul.mubr.bf16.gmra.mxu0 %v823
    %v865 = vpop.f32.mrf.mxu0
    %v866 = vadd.f32 0.0, %v865
    %v867 = vpop.f32.mrf.mxu0
    %v868 = vadd.f32 0.0, %v867
    %v869 = vpop.f32.mrf.mxu0
    %v870 = vpop.f32.mrf.mxu0
    %871 = vdwg.mxu0
    %872 = vmatprep.subr.bf16.mxu0 0
    %873 = vmatpush1.bf16.msra.mxu0 0
    %874 = vmatprep.subr.bf16.mxu0 %v616
    %875 = vmatpush1.bf16.msra.mxu0 %v613
    %876 = vmatprep.subr.bf16.mxu0 %v536
    %877 = vmatpush1.bf16.msra.mxu0 %v535
    %878 = vmatprep.subr.bf16.mxu0 %v533
    %879 = vmatpush1.bf16.msra.mxu0 %v532
    %880 = vmatprep.subr.bf16.mxu0 %v530
    %881 = vmatpush1.bf16.msra.mxu0 %v529
    %882 = vmatprep.subr.bf16.mxu0 %v527
    %883 = vmatpush1.bf16.msra.mxu0 %v526
    %884 = vmatprep.subr.bf16.mxu0 %v524
    %885 = vmatpush1.bf16.msra.mxu0 %v523
    %886 = vmatprep.subr.bf16.mxu0 %v521
    %887 = vmatpush1.bf16.msra.mxu0 %v520
    %888 = vmatprep.subr.bf16.mxu0 0
    %889 = vmatpush2.bf16.msra.mxu0 0
    %890 = vmatprep.subr.bf16.mxu0 0
    %891 = vmatpush2.bf16.msra.mxu0 0
    %892 = vmatprep.subr.bf16.mxu0 0
    %893 = vmatpush2.bf16.msra.mxu0 0
    %894 = vmatprep.subr.bf16.mxu0 0
    %895 = vmatpush2.bf16.msra.mxu0 0
    %896 = vmatprep.subr.bf16.mxu0 0
    %897 = vmatpush2.bf16.msra.mxu0 0
    %898 = vmatprep.subr.bf16.mxu0 0
    %899 = vmatpush2.bf16.msra.mxu0 0
    %900 = vmatprep.subr.bf16.mxu0 0
    %901 = vmatpush2.bf16.msra.mxu0 0
    %902 = vmatprep.subr.bf16.mxu0 0
    %903 = vmatpush2.bf16.msra.mxu0 0
    %904 = vmatprep.mubr.bf16.mxu0 0
    %905 = vmatmul.mubr.bf16.gmra.mxu0 %v829
    %v906 = vpop.f32.mrf.mxu0
    %v907 = vadd.f32 %v866, %v906
    %v908 = vpop.f32.mrf.mxu0
    %v909 = vadd.f32 %v868, %v908
    %v910 = vpop.f32.mrf.mxu0
    %v911 = vpop.f32.mrf.mxu0
    %912 = vdwg.mxu0
    %913 = vmatprep.subr.bf16.mxu0 0
    %914 = vmatpush1.bf16.msra.mxu0 %v495
    %915 = vmatprep.subr.bf16.mxu0 0
    %916 = vmatpush1.bf16.msra.mxu0 %v492
    %917 = vmatprep.subr.bf16.mxu0 0
    %918 = vmatpush1.bf16.msra.mxu0 %v489
    %919 = vmatprep.subr.bf16.mxu0 0
    %920 = vmatpush1.bf16.msra.mxu0 %v486
    %921 = vmatprep.subr.bf16.mxu0 0
    %922 = vmatpush1.bf16.msra.mxu0 %v483
    %923 = vmatprep.subr.bf16.mxu0 0
    %924 = vmatpush1.bf16.msra.mxu0 %v480
    %925 = vmatprep.subr.bf16.mxu0 0
    %926 = vmatpush1.bf16.msra.mxu0 %v477
    %927 = vmatprep.subr.bf16.mxu0 0
    %928 = vmatpush1.bf16.msra.mxu0 %v474
    %929 = vmatprep.subr.bf16.mxu0 0
    %930 = vmatpush2.bf16.msra.mxu0 %v519
    %931 = vmatprep.subr.bf16.mxu0 0
    %932 = vmatpush2.bf16.msra.mxu0 %v516
    %933 = vmatprep.subr.bf16.mxu0 0
    %934 = vmatpush2.bf16.msra.mxu0 %v513
    %935 = vmatprep.subr.bf16.mxu0 0
    %936 = vmatpush2.bf16.msra.mxu0 %v510
    %937 = vmatprep.subr.bf16.mxu0 0
    %938 = vmatpush2.bf16.msra.mxu0 %v507
    %939 = vmatprep.subr.bf16.mxu0 0
    %940 = vmatpush2.bf16.msra.mxu0 %v504
    %941 = vmatprep.subr.bf16.mxu0 0
    %942 = vmatpush2.bf16.msra.mxu0 %v501
    %943 = vmatprep.subr.bf16.mxu0 0
    %944 = vmatpush2.bf16.msra.mxu0 %v498
    %945 = vmatprep.mubr.bf16.mxu0 %v824
    %946 = vmatmul.mubr.bf16.gmra.mxu0 %v823
    %v947 = vpop.f32.mrf.mxu0
    %v948 = vadd.f32 0.0, %v947
    %v949 = vpop.f32.mrf.mxu0
    %v950 = vpop.f32.mrf.mxu0
    %v951 = vpop.f32.mrf.mxu0
    %952 = vdwg.mxu0
    %953 = vmatprep.subr.bf16.mxu0 0
    %954 = vmatpush1.bf16.msra.mxu0 0
    %955 = vmatprep.subr.bf16.mxu0 0
    %956 = vmatpush1.bf16.msra.mxu0 %v619
    %957 = vmatprep.subr.bf16.mxu0 0
    %958 = vmatpush1.bf16.msra.mxu0 %v537
    %959 = vmatprep.subr.bf16.mxu0 0
    %960 = vmatpush1.bf16.msra.mxu0 %v534
    %961 = vmatprep.subr.bf16.mxu0 0
    %962 = vmatpush1.bf16.msra.mxu0 %v531
    %963 = vmatprep.subr.bf16.mxu0 0
    %964 = vmatpush1.bf16.msra.mxu0 %v528
    %965 = vmatprep.subr.bf16.mxu0 0
    %966 = vmatpush1.bf16.msra.mxu0 %v525
    %967 = vmatprep.subr.bf16.mxu0 0
    %968 = vmatpush1.bf16.msra.mxu0 %v522
    %969 = vmatprep.subr.bf16.mxu0 0
    %970 = vmatpush2.bf16.msra.mxu0 0
    %971 = vmatprep.subr.bf16.mxu0 0
    %972 = vmatpush2.bf16.msra.mxu0 0
    %973 = vmatprep.subr.bf16.mxu0 0
    %974 = vmatpush2.bf16.msra.mxu0 0
    %975 = vmatprep.subr.bf16.mxu0 0
    %976 = vmatpush2.bf16.msra.mxu0 0
    %977 = vmatprep.subr.bf16.mxu0 0
    %978 = vmatpush2.bf16.msra.mxu0 0
    %979 = vmatprep.subr.bf16.mxu0 0
    %980 = vmatpush2.bf16.msra.mxu0 0
    %981 = vmatprep.subr.bf16.mxu0 0
    %982 = vmatpush2.bf16.msra.mxu0 0
    %983 = vmatprep.subr.bf16.mxu0 0
    %984 = vmatpush2.bf16.msra.mxu0 0
    %985 = vmatprep.mubr.bf16.mxu0 0
    %986 = vmatmul.mubr.bf16.gmra.mxu0 %v829
    %v987 = vpop.f32.mrf.mxu0
    %v988 = vadd.f32 %v948, %v987
    %v989 = vpop.f32.mrf.mxu0
    %v990 = vpop.f32.mrf.mxu0
    %v991 = vpop.f32.mrf.mxu0
    %992 = vdwg.mxu0
    %v993 = vld [vmem:[#allocation2 + $0x4] sm:$0xff]
    %v995 = vcombine.high %v993, %v993
    %v997 = vunpack.c.l.s4 1983009808
    %v998 = vunpack.c.0.s8 %v997
    %v999 = vlaneseq
    %v1000 = vshrl.u32 %v999, 7
    %v1001 = vsub.s32 %v998, %v1000
    %v1002 = vrot.slane %v993, %v1001
    %v1004 = vunpack.c.l.s4 1983009808
    %v1005 = vunpack.c.0.s8 %v1004
    %v1006 = vlaneseq
    %v1007 = vshrl.u32 %v1006, 7
    %v1008 = vsub.s32 %v1005, %v1007
    %v1009 = vrot.slane %v995, %v1008
    %v1010 = vcombine.high %v1002, %v1002
    %v1011 = vcombine.high %v1009, %v1009
    %v1016 = vpack.c.bf16 %v1002, %v1002
    %v1017 = vpack.c.bf16 %v1010, %v1010
    %v1018 = vpack.c.bf16 %v1009, %v1009
    %v1019 = vpack.c.bf16 %v1011, %v1011
    %1024 = vrot.lane.b32.xlu0 %v1016, 24
    %v1025 = vpop.permute.xlu0 %1024
    %1026 = vrot.lane.b32.xlu0 %v1017, 24
    %v1027 = vpop.permute.xlu0 %1026
    %1028 = vrot.lane.b32.xlu0 %v1018, 24
    %v1029 = vpop.permute.xlu0 %1028
    %1030 = vrot.lane.b32.xlu0 %v1019, 24
    %v1031 = vpop.permute.xlu0 %1030
    %vm1032 = vcmask 195584
    %v1033 = vsel %vm1032, %v1025, %v1027
    %v1034 = vsel %vm1032, %v1027, %v1029
    %v1035 = vsel %vm1032, %v1029, %v1031
    %v1039 = vsel %vm607, %v1035, 0
    %1041 = vmatprep.subr.bf16.mxu0 %v494
    %1042 = vmatpush1.bf16.msra.mxu0 %v493
    %1043 = vmatprep.subr.bf16.mxu0 %v491
    %1044 = vmatpush1.bf16.msra.mxu0 %v490
    %1045 = vmatprep.subr.bf16.mxu0 %v488
    %1046 = vmatpush1.bf16.msra.mxu0 %v487
    %1047 = vmatprep.subr.bf16.mxu0 %v485
    %1048 = vmatpush1.bf16.msra.mxu0 %v484
    %1049 = vmatprep.subr.bf16.mxu0 %v482
    %1050 = vmatpush1.bf16.msra.mxu0 %v481
    %1051 = vmatprep.subr.bf16.mxu0 %v479
    %1052 = vmatpush1.bf16.msra.mxu0 %v478
    %1053 = vmatprep.subr.bf16.mxu0 %v476
    %1054 = vmatpush1.bf16.msra.mxu0 %v475
    %1055 = vmatprep.subr.bf16.mxu0 %v473
    %1056 = vmatpush1.bf16.msra.mxu0 %v472
    %1057 = vmatprep.subr.bf16.mxu0 %v518
    %1058 = vmatpush2.bf16.msra.mxu0 %v517
    %1059 = vmatprep.subr.bf16.mxu0 %v515
    %1060 = vmatpush2.bf16.msra.mxu0 %v514
    %1061 = vmatprep.subr.bf16.mxu0 %v512
    %1062 = vmatpush2.bf16.msra.mxu0 %v511
    %1063 = vmatprep.subr.bf16.mxu0 %v509
    %1064 = vmatpush2.bf16.msra.mxu0 %v508
    %1065 = vmatprep.subr.bf16.mxu0 %v506
    %1066 = vmatpush2.bf16.msra.mxu0 %v505
    %1067 = vmatprep.subr.bf16.mxu0 %v503
    %1068 = vmatpush2.bf16.msra.mxu0 %v502
    %1069 = vmatprep.subr.bf16.mxu0 %v500
    %1070 = vmatpush2.bf16.msra.mxu0 %v499
    %1071 = vmatprep.subr.bf16.mxu0 %v497
    %1072 = vmatpush2.bf16.msra.mxu0 %v496
    %1073 = vmatprep.mubr.bf16.mxu0 %v1034
    %1074 = vmatmul.mubr.bf16.gmra.mxu0 %v1033
    %v1075 = vpop.f32.mrf.mxu0
    %v1076 = vadd.f32 0.0, %v1075
    %v1077 = vpop.f32.mrf.mxu0
    %v1078 = vadd.f32 0.0, %v1077
    %v1079 = vpop.f32.mrf.mxu0
    %v1080 = vpop.f32.mrf.mxu0
    %1081 = vdwg.mxu0
    %1082 = vmatprep.subr.bf16.mxu0 0
    %1083 = vmatpush1.bf16.msra.mxu0 0
    %1084 = vmatprep.subr.bf16.mxu0 %v616
    %1085 = vmatpush1.bf16.msra.mxu0 %v613
    %1086 = vmatprep.subr.bf16.mxu0 %v536
    %1087 = vmatpush1.bf16.msra.mxu0 %v535
    %1088 = vmatprep.subr.bf16.mxu0 %v533
    %1089 = vmatpush1.bf16.msra.mxu0 %v532
    %1090 = vmatprep.subr.bf16.mxu0 %v530
    %1091 = vmatpush1.bf16.msra.mxu0 %v529
    %1092 = vmatprep.subr.bf16.mxu0 %v527
    %1093 = vmatpush1.bf16.msra.mxu0 %v526
    %1094 = vmatprep.subr.bf16.mxu0 %v524
    %1095 = vmatpush1.bf16.msra.mxu0 %v523
    %1096 = vmatprep.subr.bf16.mxu0 %v521
    %1097 = vmatpush1.bf16.msra.mxu0 %v520
    %1098 = vmatprep.subr.bf16.mxu0 0
    %1099 = vmatpush2.bf16.msra.mxu0 0
    %1100 = vmatprep.subr.bf16.mxu0 0
    %1101 = vmatpush2.bf16.msra.mxu0 0
    %1102 = vmatprep.subr.bf16.mxu0 0
    %1103 = vmatpush2.bf16.msra.mxu0 0
    %1104 = vmatprep.subr.bf16.mxu0 0
    %1105 = vmatpush2.bf16.msra.mxu0 0
    %1106 = vmatprep.subr.bf16.mxu0 0
    %1107 = vmatpush2.bf16.msra.mxu0 0
    %1108 = vmatprep.subr.bf16.mxu0 0
    %1109 = vmatpush2.bf16.msra.mxu0 0
    %1110 = vmatprep.subr.bf16.mxu0 0
    %1111 = vmatpush2.bf16.msra.mxu0 0
    %1112 = vmatprep.subr.bf16.mxu0 0
    %1113 = vmatpush2.bf16.msra.mxu0 0
    %1114 = vmatprep.mubr.bf16.mxu0 0
    %1115 = vmatmul.mubr.bf16.gmra.mxu0 %v1039
    %v1116 = vpop.f32.mrf.mxu0
    %v1117 = vadd.f32 %v1076, %v1116
    %v1118 = vpop.f32.mrf.mxu0
    %v1119 = vadd.f32 %v1078, %v1118
    %v1120 = vpop.f32.mrf.mxu0
    %v1121 = vpop.f32.mrf.mxu0
    %1122 = vdwg.mxu0
    %1123 = vmatprep.subr.bf16.mxu0 0
    %1124 = vmatpush1.bf16.msra.mxu0 %v495
    %1125 = vmatprep.subr.bf16.mxu0 0
    %1126 = vmatpush1.bf16.msra.mxu0 %v492
    %1127 = vmatprep.subr.bf16.mxu0 0
    %1128 = vmatpush1.bf16.msra.mxu0 %v489
    %1129 = vmatprep.subr.bf16.mxu0 0
    %1130 = vmatpush1.bf16.msra.mxu0 %v486
    %1131 = vmatprep.subr.bf16.mxu0 0
    %1132 = vmatpush1.bf16.msra.mxu0 %v483
    %1133 = vmatprep.subr.bf16.mxu0 0
    %1134 = vmatpush1.bf16.msra.mxu0 %v480
    %1135 = vmatprep.subr.bf16.mxu0 0
    %1136 = vmatpush1.bf16.msra.mxu0 %v477
    %1137 = vmatprep.subr.bf16.mxu0 0
    %1138 = vmatpush1.bf16.msra.mxu0 %v474
    %1139 = vmatprep.subr.bf16.mxu0 0
    %1140 = vmatpush2.bf16.msra.mxu0 %v519
    %1141 = vmatprep.subr.bf16.mxu0 0
    %1142 = vmatpush2.bf16.msra.mxu0 %v516
    %1143 = vmatprep.subr.bf16.mxu0 0
    %1144 = vmatpush2.bf16.msra.mxu0 %v513
    %1145 = vmatprep.subr.bf16.mxu0 0
    %1146 = vmatpush2.bf16.msra.mxu0 %v510
    %1147 = vmatprep.subr.bf16.mxu0 0
    %1148 = vmatpush2.bf16.msra.mxu0 %v507
    %1149 = vmatprep.subr.bf16.mxu0 0
    %1150 = vmatpush2.bf16.msra.mxu0 %v504
    %1151 = vmatprep.subr.bf16.mxu0 0
    %1152 = vmatpush2.bf16.msra.mxu0 %v501
    %1153 = vmatprep.subr.bf16.mxu0 0
    %1154 = vmatpush2.bf16.msra.mxu0 %v498
    %1155 = vmatprep.mubr.bf16.mxu0 %v1034
    %1156 = vmatmul.mubr.bf16.gmra.mxu0 %v1033
    %v1157 = vpop.f32.mrf.mxu0
    %v1158 = vadd.f32 0.0, %v1157
    %v1159 = vpop.f32.mrf.mxu0
    %v1160 = vpop.f32.mrf.mxu0
    %v1161 = vpop.f32.mrf.mxu0
    %1162 = vdwg.mxu0
    %1163 = vmatprep.subr.bf16.mxu0 0
    %1164 = vmatpush1.bf16.msra.mxu0 0
    %1165 = vmatprep.subr.bf16.mxu0 0
    %1166 = vmatpush1.bf16.msra.mxu0 %v619
    %1167 = vmatprep.subr.bf16.mxu0 0
    %1168 = vmatpush1.bf16.msra.mxu0 %v537
    %1169 = vmatprep.subr.bf16.mxu0 0
    %1170 = vmatpush1.bf16.msra.mxu0 %v534
    %1171 = vmatprep.subr.bf16.mxu0 0
    %1172 = vmatpush1.bf16.msra.mxu0 %v531
    %1173 = vmatprep.subr.bf16.mxu0 0
    %1174 = vmatpush1.bf16.msra.mxu0 %v528
    %1175 = vmatprep.subr.bf16.mxu0 0
    %1176 = vmatpush1.bf16.msra.mxu0 %v525
    %1177 = vmatprep.subr.bf16.mxu0 0
    %1178 = vmatpush1.bf16.msra.mxu0 %v522
    %1179 = vmatprep.subr.bf16.mxu0 0
    %1180 = vmatpush2.bf16.msra.mxu0 0
    %1181 = vmatprep.subr.bf16.mxu0 0
    %1182 = vmatpush2.bf16.msra.mxu0 0
    %1183 = vmatprep.subr.bf16.mxu0 0
    %1184 = vmatpush2.bf16.msra.mxu0 0
    %1185 = vmatprep.subr.bf16.mxu0 0
    %1186 = vmatpush2.bf16.msra.mxu0 0
    %1187 = vmatprep.subr.bf16.mxu0 0
    %1188 = vmatpush2.bf16.msra.mxu0 0
    %1189 = vmatprep.subr.bf16.mxu0 0
    %1190 = vmatpush2.bf16.msra.mxu0 0
    %1191 = vmatprep.subr.bf16.mxu0 0
    %1192 = vmatpush2.bf16.msra.mxu0 0
    %1193 = vmatprep.subr.bf16.mxu0 0
    %1194 = vmatpush2.bf16.msra.mxu0 0
    %1195 = vmatprep.mubr.bf16.mxu0 0
    %1196 = vmatmul.mubr.bf16.gmra.mxu0 %v1039
    %v1197 = vpop.f32.mrf.mxu0
    %v1198 = vadd.f32 %v1158, %v1197
    %v1199 = vpop.f32.mrf.mxu0
    %v1200 = vpop.f32.mrf.mxu0
    %v1201 = vpop.f32.mrf.mxu0
    %1202 = vdwg.mxu0
    %v1203 = vld [vmem:[#allocation2 + $0x8] sm:$0xff]
    %v1205 = vcombine.high %v1203, %v1203
    %v1207 = vunpack.c.l.s4 1983009808
    %v1208 = vunpack.c.0.s8 %v1207
    %v1209 = vlaneseq
    %v1210 = vshrl.u32 %v1209, 7
    %v1211 = vsub.s32 %v1208, %v1210
    %v1212 = vrot.slane %v1203, %v1211
    %v1214 = vunpack.c.l.s4 1983009808
    %v1215 = vunpack.c.0.s8 %v1214
    %v1216 = vlaneseq
    %v1217 = vshrl.u32 %v1216, 7
    %v1218 = vsub.s32 %v1215, %v1217
    %v1219 = vrot.slane %v1205, %v1218
    %v1220 = vcombine.high %v1212, %v1212
    %v1221 = vcombine.high %v1219, %v1219
    %v1226 = vpack.c.bf16 %v1212, %v1212
    %v1227 = vpack.c.bf16 %v1220, %v1220
    %v1228 = vpack.c.bf16 %v1219, %v1219
    %v1229 = vpack.c.bf16 %v1221, %v1221
    %1234 = vrot.lane.b32.xlu0 %v1226, 100
    %v1235 = vpop.permute.xlu0 %1234
    %1236 = vrot.lane.b32.xlu0 %v1227, 100
    %v1237 = vpop.permute.xlu0 %1236
    %1238 = vrot.lane.b32.xlu0 %v1228, 100
    %v1239 = vpop.permute.xlu0 %1238
    %1240 = vrot.lane.b32.xlu0 %v1229, 100
    %v1241 = vpop.permute.xlu0 %1240
    %vm1242 = vcmask 818176
    %v1243 = vsel %vm1242, %v1235, %v1237
    %v1244 = vsel %vm1242, %v1237, %v1239
    %v1245 = vsel %vm1242, %v1239, %v1241
    %v1249 = vsel %vm607, %v1245, 0
    %1251 = vmatprep.subr.bf16.mxu0 %v494
    %1252 = vmatpush1.bf16.msra.mxu0 %v493
    %1253 = vmatprep.subr.bf16.mxu0 %v491
    %1254 = vmatpush1.bf16.msra.mxu0 %v490
    %1255 = vmatprep.subr.bf16.mxu0 %v488
    %1256 = vmatpush1.bf16.msra.mxu0 %v487
    %1257 = vmatprep.subr.bf16.mxu0 %v485
    %1258 = vmatpush1.bf16.msra.mxu0 %v484
    %1259 = vmatprep.subr.bf16.mxu0 %v482
    %1260 = vmatpush1.bf16.msra.mxu0 %v481
    %1261 = vmatprep.subr.bf16.mxu0 %v479
    %1262 = vmatpush1.bf16.msra.mxu0 %v478
    %1263 = vmatprep.subr.bf16.mxu0 %v476
    %1264 = vmatpush1.bf16.msra.mxu0 %v475
    %1265 = vmatprep.subr.bf16.mxu0 %v473
    %1266 = vmatpush1.bf16.msra.mxu0 %v472
    %1267 = vmatprep.subr.bf16.mxu0 %v518
    %1268 = vmatpush2.bf16.msra.mxu0 %v517
    %1269 = vmatprep.subr.bf16.mxu0 %v515
    %1270 = vmatpush2.bf16.msra.mxu0 %v514
    %1271 = vmatprep.subr.bf16.mxu0 %v512
    %1272 = vmatpush2.bf16.msra.mxu0 %v511
    %1273 = vmatprep.subr.bf16.mxu0 %v509
    %1274 = vmatpush2.bf16.msra.mxu0 %v508
    %1275 = vmatprep.subr.bf16.mxu0 %v506
    %1276 = vmatpush2.bf16.msra.mxu0 %v505
    %1277 = vmatprep.subr.bf16.mxu0 %v503
    %1278 = vmatpush2.bf16.msra.mxu0 %v502
    %1279 = vmatprep.subr.bf16.mxu0 %v500
    %1280 = vmatpush2.bf16.msra.mxu0 %v499
    %1281 = vmatprep.subr.bf16.mxu0 %v497
    %1282 = vmatpush2.bf16.msra.mxu0 %v496
    %1283 = vmatprep.mubr.bf16.mxu0 %v1244
    %1284 = vmatmul.mubr.bf16.gmra.mxu0 %v1243
    %v1285 = vpop.f32.mrf.mxu0
    %v1286 = vadd.f32 0.0, %v1285
    %v1287 = vpop.f32.mrf.mxu0
    %v1288 = vadd.f32 0.0, %v1287
    %v1289 = vpop.f32.mrf.mxu0
    %v1290 = vpop.f32.mrf.mxu0
    %1291 = vdwg.mxu0
    %1292 = vmatprep.subr.bf16.mxu0 0
    %1293 = vmatpush1.bf16.msra.mxu0 0
    %1294 = vmatprep.subr.bf16.mxu0 %v616
    %1295 = vmatpush1.bf16.msra.mxu0 %v613
    %1296 = vmatprep.subr.bf16.mxu0 %v536
    %1297 = vmatpush1.bf16.msra.mxu0 %v535
    %1298 = vmatprep.subr.bf16.mxu0 %v533
    %1299 = vmatpush1.bf16.msra.mxu0 %v532
    %1300 = vmatprep.subr.bf16.mxu0 %v530
    %1301 = vmatpush1.bf16.msra.mxu0 %v529
    %1302 = vmatprep.subr.bf16.mxu0 %v527
    %1303 = vmatpush1.bf16.msra.mxu0 %v526
    %1304 = vmatprep.subr.bf16.mxu0 %v524
    %1305 = vmatpush1.bf16.msra.mxu0 %v523
    %1306 = vmatprep.subr.bf16.mxu0 %v521
    %1307 = vmatpush1.bf16.msra.mxu0 %v520
    %1308 = vmatprep.subr.bf16.mxu0 0
    %1309 = vmatpush2.bf16.msra.mxu0 0
    %1310 = vmatprep.subr.bf16.mxu0 0
    %1311 = vmatpush2.bf16.msra.mxu0 0
    %1312 = vmatprep.subr.bf16.mxu0 0
    %1313 = vmatpush2.bf16.msra.mxu0 0
    %1314 = vmatprep.subr.bf16.mxu0 0
    %1315 = vmatpush2.bf16.msra.mxu0 0
    %1316 = vmatprep.subr.bf16.mxu0 0
    %1317 = vmatpush2.bf16.msra.mxu0 0
    %1318 = vmatprep.subr.bf16.mxu0 0
    %1319 = vmatpush2.bf16.msra.mxu0 0
    %1320 = vmatprep.subr.bf16.mxu0 0
    %1321 = vmatpush2.bf16.msra.mxu0 0
    %1322 = vmatprep.subr.bf16.mxu0 0
    %1323 = vmatpush2.bf16.msra.mxu0 0
    %1324 = vmatprep.mubr.bf16.mxu0 0
    %1325 = vmatmul.mubr.bf16.gmra.mxu0 %v1249
    %v1326 = vpop.f32.mrf.mxu0
    %v1327 = vadd.f32 %v1286, %v1326
    %v1328 = vpop.f32.mrf.mxu0
    %v1329 = vadd.f32 %v1288, %v1328
    %v1330 = vpop.f32.mrf.mxu0
    %v1331 = vpop.f32.mrf.mxu0
    %1332 = vdwg.mxu0
    %1333 = vmatprep.subr.bf16.mxu0 0
    %1334 = vmatpush1.bf16.msra.mxu0 %v495
    %1335 = vmatprep.subr.bf16.mxu0 0
    %1336 = vmatpush1.bf16.msra.mxu0 %v492
    %1337 = vmatprep.subr.bf16.mxu0 0
    %1338 = vmatpush1.bf16.msra.mxu0 %v489
    %1339 = vmatprep.subr.bf16.mxu0 0
    %1340 = vmatpush1.bf16.msra.mxu0 %v486
    %1341 = vmatprep.subr.bf16.mxu0 0
    %1342 = vmatpush1.bf16.msra.mxu0 %v483
    %1343 = vmatprep.subr.bf16.mxu0 0
    %1344 = vmatpush1.bf16.msra.mxu0 %v480
    %1345 = vmatprep.subr.bf16.mxu0 0
    %1346 = vmatpush1.bf16.msra.mxu0 %v477
    %1347 = vmatprep.subr.bf16.mxu0 0
    %1348 = vmatpush1.bf16.msra.mxu0 %v474
    %1349 = vmatprep.subr.bf16.mxu0 0
    %1350 = vmatpush2.bf16.msra.mxu0 %v519
    %1351 = vmatprep.subr.bf16.mxu0 0
    %1352 = vmatpush2.bf16.msra.mxu0 %v516
    %1353 = vmatprep.subr.bf16.mxu0 0
    %1354 = vmatpush2.bf16.msra.mxu0 %v513
    %1355 = vmatprep.subr.bf16.mxu0 0
    %1356 = vmatpush2.bf16.msra.mxu0 %v510
    %1357 = vmatprep.subr.bf16.mxu0 0
    %1358 = vmatpush2.bf16.msra.mxu0 %v507
    %1359 = vmatprep.subr.bf16.mxu0 0
    %1360 = vmatpush2.bf16.msra.mxu0 %v504
    %1361 = vmatprep.subr.bf16.mxu0 0
    %1362 = vmatpush2.bf16.msra.mxu0 %v501
    %1363 = vmatprep.subr.bf16.mxu0 0
    %1364 = vmatpush2.bf16.msra.mxu0 %v498
    %1365 = vmatprep.mubr.bf16.mxu0 %v1244
    %1366 = vmatmul.mubr.bf16.gmra.mxu0 %v1243
    %v1367 = vpop.f32.mrf.mxu0
    %v1368 = vadd.f32 0.0, %v1367
    %v1369 = vpop.f32.mrf.mxu0
    %v1370 = vpop.f32.mrf.mxu0
    %v1371 = vpop.f32.mrf.mxu0
    %1372 = vdwg.mxu0
    %1373 = vmatprep.subr.bf16.mxu0 0
    %1374 = vmatpush1.bf16.msra.mxu0 0
    %1375 = vmatprep.subr.bf16.mxu0 0
    %1376 = vmatpush1.bf16.msra.mxu0 %v619
    %1377 = vmatprep.subr.bf16.mxu0 0
    %1378 = vmatpush1.bf16.msra.mxu0 %v537
    %1379 = vmatprep.subr.bf16.mxu0 0
    %1380 = vmatpush1.bf16.msra.mxu0 %v534
    %1381 = vmatprep.subr.bf16.mxu0 0
    %1382 = vmatpush1.bf16.msra.mxu0 %v531
    %1383 = vmatprep.subr.bf16.mxu0 0
    %1384 = vmatpush1.bf16.msra.mxu0 %v528
    %1385 = vmatprep.subr.bf16.mxu0 0
    %1386 = vmatpush1.bf16.msra.mxu0 %v525
    %1387 = vmatprep.subr.bf16.mxu0 0
    %1388 = vmatpush1.bf16.msra.mxu0 %v522
    %1389 = vmatprep.subr.bf16.mxu0 0
    %1390 = vmatpush2.bf16.msra.mxu0 0
    %1391 = vmatprep.subr.bf16.mxu0 0
    %1392 = vmatpush2.bf16.msra.mxu0 0
    %1393 = vmatprep.subr.bf16.mxu0 0
    %1394 = vmatpush2.bf16.msra.mxu0 0
    %1395 = vmatprep.subr.bf16.mxu0 0
    %1396 = vmatpush2.bf16.msra.mxu0 0
    %1397 = vmatprep.subr.bf16.mxu0 0
    %1398 = vmatpush2.bf16.msra.mxu0 0
    %1399 = vmatprep.subr.bf16.mxu0 0
    %1400 = vmatpush2.bf16.msra.mxu0 0
    %1401 = vmatprep.subr.bf16.mxu0 0
    %1402 = vmatpush2.bf16.msra.mxu0 0
    %1403 = vmatprep.subr.bf16.mxu0 0
    %1404 = vmatpush2.bf16.msra.mxu0 0
    %1405 = vmatprep.mubr.bf16.mxu0 0
    %1406 = vmatmul.mubr.bf16.gmra.mxu0 %v1249
    %v1407 = vpop.f32.mrf.mxu0
    %v1408 = vadd.f32 %v1368, %v1407
    %v1409 = vpop.f32.mrf.mxu0
    %v1410 = vpop.f32.mrf.mxu0
    %v1411 = vpop.f32.mrf.mxu0
    %1412 = vdwg.mxu0
    %v1413 = vld [vmem:[#allocation2 + $0xa] sm:$0xff]
    %v1415 = vcombine.high %v1413, %v1413
    %v1417 = vunpack.c.l.s4 1983009808
    %v1418 = vunpack.c.0.s8 %v1417
    %v1419 = vlaneseq
    %v1420 = vshrl.u32 %v1419, 7
    %v1421 = vsub.s32 %v1418, %v1420
    %v1422 = vrot.slane %v1413, %v1421
    %v1424 = vunpack.c.l.s4 1983009808
    %v1425 = vunpack.c.0.s8 %v1424
    %v1426 = vlaneseq
    %v1427 = vshrl.u32 %v1426, 7
    %v1428 = vsub.s32 %v1425, %v1427
    %v1429 = vrot.slane %v1415, %v1428
    %v1430 = vcombine.high %v1422, %v1422
    %v1431 = vcombine.high %v1429, %v1429
    %v1436 = vpack.c.bf16 %v1422, %v1422
    %v1437 = vpack.c.bf16 %v1430, %v1430
    %v1438 = vpack.c.bf16 %v1429, %v1429
    %v1439 = vpack.c.bf16 %v1431, %v1431
    %1444 = vrot.lane.b32.xlu0 %v1436, 48
    %v1445 = vpop.permute.xlu0 %1444
    %1446 = vrot.lane.b32.xlu0 %v1437, 48
    %v1447 = vpop.permute.xlu0 %1446
    %1448 = vrot.lane.b32.xlu0 %v1438, 48
    %v1449 = vpop.permute.xlu0 %1448
    %1450 = vrot.lane.b32.xlu0 %v1439, 48
    %v1451 = vpop.permute.xlu0 %1450
    %vm1452 = vcmask 392192
    %v1453 = vsel %vm1452, %v1445, %v1447
    %v1454 = vsel %vm1452, %v1447, %v1449
    %v1455 = vsel %vm1452, %v1449, %v1451
    %v1459 = vsel %vm607, %v1455, 0
    %1461 = vmatprep.subr.bf16.mxu0 %v494
    %1462 = vmatpush1.bf16.msra.mxu0 %v493
    %1463 = vmatprep.subr.bf16.mxu0 %v491
    %1464 = vmatpush1.bf16.msra.mxu0 %v490
    %1465 = vmatprep.subr.bf16.mxu0 %v488
    %1466 = vmatpush1.bf16.msra.mxu0 %v487
    %1467 = vmatprep.subr.bf16.mxu0 %v485
    %1468 = vmatpush1.bf16.msra.mxu0 %v484
    %1469 = vmatprep.subr.bf16.mxu0 %v482
    %1470 = vmatpush1.bf16.msra.mxu0 %v481
    %1471 = vmatprep.subr.bf16.mxu0 %v479
    %1472 = vmatpush1.bf16.msra.mxu0 %v478
    %1473 = vmatprep.subr.bf16.mxu0 %v476
    %1474 = vmatpush1.bf16.msra.mxu0 %v475
    %1475 = vmatprep.subr.bf16.mxu0 %v473
    %1476 = vmatpush1.bf16.msra.mxu0 %v472
    %1477 = vmatprep.subr.bf16.mxu0 %v518
    %1478 = vmatpush2.bf16.msra.mxu0 %v517
    %1479 = vmatprep.subr.bf16.mxu0 %v515
    %1480 = vmatpush2.bf16.msra.mxu0 %v514
    %1481 = vmatprep.subr.bf16.mxu0 %v512
    %1482 = vmatpush2.bf16.msra.mxu0 %v511
    %1483 = vmatprep.subr.bf16.mxu0 %v509
    %1484 = vmatpush2.bf16.msra.mxu0 %v508
    %1485 = vmatprep.subr.bf16.mxu0 %v506
    %1486 = vmatpush2.bf16.msra.mxu0 %v505
    %1487 = vmatprep.subr.bf16.mxu0 %v503
    %1488 = vmatpush2.bf16.msra.mxu0 %v502
    %1489 = vmatprep.subr.bf16.mxu0 %v500
    %1490 = vmatpush2.bf16.msra.mxu0 %v499
    %1491 = vmatprep.subr.bf16.mxu0 %v497
    %1492 = vmatpush2.bf16.msra.mxu0 %v496
    %1493 = vmatprep.mubr.bf16.mxu0 %v1454
    %1494 = vmatmul.mubr.bf16.gmra.mxu0 %v1453
    %v1495 = vpop.f32.mrf.mxu0
    %v1496 = vadd.f32 0.0, %v1495
    %v1497 = vpop.f32.mrf.mxu0
    %v1498 = vadd.f32 0.0, %v1497
    %v1499 = vpop.f32.mrf.mxu0
    %v1500 = vpop.f32.mrf.mxu0
    %1501 = vdwg.mxu0
    %1502 = vmatprep.subr.bf16.mxu0 0
    %1503 = vmatpush1.bf16.msra.mxu0 0
    %1504 = vmatprep.subr.bf16.mxu0 %v616
    %1505 = vmatpush1.bf16.msra.mxu0 %v613
    %1506 = vmatprep.subr.bf16.mxu0 %v536
    %1507 = vmatpush1.bf16.msra.mxu0 %v535
    %1508 = vmatprep.subr.bf16.mxu0 %v533
    %1509 = vmatpush1.bf16.msra.mxu0 %v532
    %1510 = vmatprep.subr.bf16.mxu0 %v530
    %1511 = vmatpush1.bf16.msra.mxu0 %v529
    %1512 = vmatprep.subr.bf16.mxu0 %v527
    %1513 = vmatpush1.bf16.msra.mxu0 %v526
    %1514 = vmatprep.subr.bf16.mxu0 %v524
    %1515 = vmatpush1.bf16.msra.mxu0 %v523
    %1516 = vmatprep.subr.bf16.mxu0 %v521
    %1517 = vmatpush1.bf16.msra.mxu0 %v520
    %1518 = vmatprep.subr.bf16.mxu0 0
    %1519 = vmatpush2.bf16.msra.mxu0 0
    %1520 = vmatprep.subr.bf16.mxu0 0
    %1521 = vmatpush2.bf16.msra.mxu0 0
    %1522 = vmatprep.subr.bf16.mxu0 0
    %1523 = vmatpush2.bf16.msra.mxu0 0
    %1524 = vmatprep.subr.bf16.mxu0 0
    %1525 = vmatpush2.bf16.msra.mxu0 0
    %1526 = vmatprep.subr.bf16.mxu0 0
    %1527 = vmatpush2.bf16.msra.mxu0 0
    %1528 = vmatprep.subr.bf16.mxu0 0
    %1529 = vmatpush2.bf16.msra.mxu0 0
    %1530 = vmatprep.subr.bf16.mxu0 0
    %1531 = vmatpush2.bf16.msra.mxu0 0
    %1532 = vmatprep.subr.bf16.mxu0 0
    %1533 = vmatpush2.bf16.msra.mxu0 0
    %1534 = vmatprep.mubr.bf16.mxu0 0
    %1535 = vmatmul.mubr.bf16.gmra.mxu0 %v1459
    %v1536 = vpop.f32.mrf.mxu0
    %v1537 = vadd.f32 %v1496, %v1536
    %v1538 = vpop.f32.mrf.mxu0
    %v1539 = vadd.f32 %v1498, %v1538
    %v1540 = vpop.f32.mrf.mxu0
    %v1541 = vpop.f32.mrf.mxu0
    %1542 = vdwg.mxu0
    %1543 = vmatprep.subr.bf16.mxu0 0
    %1544 = vmatpush1.bf16.msra.mxu0 %v495
    %1545 = vmatprep.subr.bf16.mxu0 0
    %1546 = vmatpush1.bf16.msra.mxu0 %v492
    %1547 = vmatprep.subr.bf16.mxu0 0
    %1548 = vmatpush1.bf16.msra.mxu0 %v489
    %1549 = vmatprep.subr.bf16.mxu0 0
    %1550 = vmatpush1.bf16.msra.mxu0 %v486
    %1551 = vmatprep.subr.bf16.mxu0 0
    %1552 = vmatpush1.bf16.msra.mxu0 %v483
    %1553 = vmatprep.subr.bf16.mxu0 0
    %1554 = vmatpush1.bf16.msra.mxu0 %v480
    %1555 = vmatprep.subr.bf16.mxu0 0
    %1556 = vmatpush1.bf16.msra.mxu0 %v477
    %1557 = vmatprep.subr.bf16.mxu0 0
    %1558 = vmatpush1.bf16.msra.mxu0 %v474
    %1559 = vmatprep.subr.bf16.mxu0 0
    %1560 = vmatpush2.bf16.msra.mxu0 %v519
    %1561 = vmatprep.subr.bf16.mxu0 0
    %1562 = vmatpush2.bf16.msra.mxu0 %v516
    %1563 = vmatprep.subr.bf16.mxu0 0
    %1564 = vmatpush2.bf16.msra.mxu0 %v513
    %1565 = vmatprep.subr.bf16.mxu0 0
    %1566 = vmatpush2.bf16.msra.mxu0 %v510
    %1567 = vmatprep.subr.bf16.mxu0 0
    %1568 = vmatpush2.bf16.msra.mxu0 %v507
    %1569 = vmatprep.subr.bf16.mxu0 0
    %1570 = vmatpush2.bf16.msra.mxu0 %v504
    %1571 = vmatprep.subr.bf16.mxu0 0
    %1572 = vmatpush2.bf16.msra.mxu0 %v501
    %1573 = vmatprep.subr.bf16.mxu0 0
    %1574 = vmatpush2.bf16.msra.mxu0 %v498
    %1575 = vmatprep.mubr.bf16.mxu0 %v1454
    %1576 = vmatmul.mubr.bf16.gmra.mxu0 %v1453
    %v1577 = vpop.f32.mrf.mxu0
    %v1578 = vadd.f32 0.0, %v1577
    %v1579 = vpop.f32.mrf.mxu0
    %v1580 = vpop.f32.mrf.mxu0
    %v1581 = vpop.f32.mrf.mxu0
    %1582 = vdwg.mxu0
    %1583 = vmatprep.subr.bf16.mxu0 0
    %1584 = vmatpush1.bf16.msra.mxu0 0
    %1585 = vmatprep.subr.bf16.mxu0 0
    %1586 = vmatpush1.bf16.msra.mxu0 %v619
    %1587 = vmatprep.subr.bf16.mxu0 0
    %1588 = vmatpush1.bf16.msra.mxu0 %v537
    %1589 = vmatprep.subr.bf16.mxu0 0
    %1590 = vmatpush1.bf16.msra.mxu0 %v534
    %1591 = vmatprep.subr.bf16.mxu0 0
    %1592 = vmatpush1.bf16.msra.mxu0 %v531
    %1593 = vmatprep.subr.bf16.mxu0 0
    %1594 = vmatpush1.bf16.msra.mxu0 %v528
    %1595 = vmatprep.subr.bf16.mxu0 0
    %1596 = vmatpush1.bf16.msra.mxu0 %v525
    %1597 = vmatprep.subr.bf16.mxu0 0
    %1598 = vmatpush1.bf16.msra.mxu0 %v522
    %1599 = vmatprep.subr.bf16.mxu0 0
    %1600 = vmatpush2.bf16.msra.mxu0 0
    %1601 = vmatprep.subr.bf16.mxu0 0
    %1602 = vmatpush2.bf16.msra.mxu0 0
    %1603 = vmatprep.subr.bf16.mxu0 0
    %1604 = vmatpush2.bf16.msra.mxu0 0
    %1605 = vmatprep.subr.bf16.mxu0 0
    %1606 = vmatpush2.bf16.msra.mxu0 0
    %1607 = vmatprep.subr.bf16.mxu0 0
    %1608 = vmatpush2.bf16.msra.mxu0 0
    %1609 = vmatprep.subr.bf16.mxu0 0
    %1610 = vmatpush2.bf16.msra.mxu0 0
    %1611 = vmatprep.subr.bf16.mxu0 0
    %1612 = vmatpush2.bf16.msra.mxu0 0
    %1613 = vmatprep.subr.bf16.mxu0 0
    %1614 = vmatpush2.bf16.msra.mxu0 0
    %1615 = vmatprep.mubr.bf16.mxu0 0
    %1616 = vmatmul.mubr.bf16.gmra.mxu0 %v1459
    %v1617 = vpop.f32.mrf.mxu0
    %v1618 = vadd.f32 %v1578, %v1617
    %v1619 = vpop.f32.mrf.mxu0
    %v1620 = vpop.f32.mrf.mxu0
    %v1621 = vpop.f32.mrf.mxu0
    %1622 = vdwg.mxu0
    %v1623 = vld [vmem:[#allocation2 + $0xe] sm:$0x3f]
    %v1625 = vcombine.high %v1623, %v1623
    %v1627 = vunpack.c.l.s4 1983009808
    %v1628 = vunpack.c.0.s8 %v1627
    %v1629 = vlaneseq
    %v1630 = vshrl.u32 %v1629, 7
    %v1631 = vsub.s32 %v1628, %v1630
    %v1632 = vrot.slane %v1623, %v1631
    %v1634 = vunpack.c.l.s4 1983009808
    %v1635 = vunpack.c.0.s8 %v1634
    %v1636 = vlaneseq
    %v1637 = vshrl.u32 %v1636, 7
    %v1638 = vsub.s32 %v1635, %v1637
    %v1639 = vrot.slane %v1625, %v1638
    %v1640 = vcombine.high %v1632, %v1632
    %v1644 = vpack.c.bf16 %v1632, %v1632
    %v1645 = vpack.c.bf16 %v1640, %v1640
    %v1646 = vpack.c.bf16 %v1639, %v1639
    %1650 = vrot.lane.b32.xlu0 %v1644, 124
    %v1651 = vpop.permute.xlu0 %1650
    %1652 = vrot.lane.b32.xlu0 %v1645, 124
    %v1653 = vpop.permute.xlu0 %1652
    %1654 = vrot.lane.b32.xlu0 %v1646, 124
    %v1655 = vpop.permute.xlu0 %1654
    %vm1656 = vcmask 1014784
    %v1657 = vsel %vm1656, %v1651, %v1653
    %v1658 = vsel %vm1656, %v1653, %v1655
    %v1662 = vsel %vm607, %v1655, 0
    %1664 = vmatprep.subr.bf16.mxu0 %v494
    %1665 = vmatpush1.bf16.msra.mxu0 %v493
    %1666 = vmatprep.subr.bf16.mxu0 %v491
    %1667 = vmatpush1.bf16.msra.mxu0 %v490
    %1668 = vmatprep.subr.bf16.mxu0 %v488
    %1669 = vmatpush1.bf16.msra.mxu0 %v487
    %1670 = vmatprep.subr.bf16.mxu0 %v485
    %1671 = vmatpush1.bf16.msra.mxu0 %v484
    %1672 = vmatprep.subr.bf16.mxu0 %v482
    %1673 = vmatpush1.bf16.msra.mxu0 %v481
    %1674 = vmatprep.subr.bf16.mxu0 %v479
    %1675 = vmatpush1.bf16.msra.mxu0 %v478
    %1676 = vmatprep.subr.bf16.mxu0 %v476
    %1677 = vmatpush1.bf16.msra.mxu0 %v475
    %1678 = vmatprep.subr.bf16.mxu0 %v473
    %1679 = vmatpush1.bf16.msra.mxu0 %v472
    %1680 = vmatprep.subr.bf16.mxu0 %v518
    %1681 = vmatpush2.bf16.msra.mxu0 %v517
    %1682 = vmatprep.subr.bf16.mxu0 %v515
    %1683 = vmatpush2.bf16.msra.mxu0 %v514
    %1684 = vmatprep.subr.bf16.mxu0 %v512
    %1685 = vmatpush2.bf16.msra.mxu0 %v511
    %1686 = vmatprep.subr.bf16.mxu0 %v509
    %1687 = vmatpush2.bf16.msra.mxu0 %v508
    %1688 = vmatprep.subr.bf16.mxu0 %v506
    %1689 = vmatpush2.bf16.msra.mxu0 %v505
    %1690 = vmatprep.subr.bf16.mxu0 %v503
    %1691 = vmatpush2.bf16.msra.mxu0 %v502
    %1692 = vmatprep.subr.bf16.mxu0 %v500
    %1693 = vmatpush2.bf16.msra.mxu0 %v499
    %1694 = vmatprep.subr.bf16.mxu0 %v497
    %1695 = vmatpush2.bf16.msra.mxu0 %v496
    %1696 = vmatprep.mubr.bf16.mxu0 %v1658
    %1697 = vmatmul.mubr.bf16.gmra.mxu0 %v1657
    %v1698 = vpop.f32.mrf.mxu0
    %v1699 = vadd.f32 0.0, %v1698
    %v1700 = vpop.f32.mrf.mxu0
    %v1701 = vadd.f32 0.0, %v1700
    %v1702 = vpop.f32.mrf.mxu0
    %v1703 = vpop.f32.mrf.mxu0
    %1704 = vdwg.mxu0
    %1705 = vmatprep.subr.bf16.mxu0 0
    %1706 = vmatpush1.bf16.msra.mxu0 0
    %1707 = vmatprep.subr.bf16.mxu0 %v616
    %1708 = vmatpush1.bf16.msra.mxu0 %v613
    %1709 = vmatprep.subr.bf16.mxu0 %v536
    %1710 = vmatpush1.bf16.msra.mxu0 %v535
    %1711 = vmatprep.subr.bf16.mxu0 %v533
    %1712 = vmatpush1.bf16.msra.mxu0 %v532
    %1713 = vmatprep.subr.bf16.mxu0 %v530
    %1714 = vmatpush1.bf16.msra.mxu0 %v529
    %1715 = vmatprep.subr.bf16.mxu0 %v527
    %1716 = vmatpush1.bf16.msra.mxu0 %v526
    %1717 = vmatprep.subr.bf16.mxu0 %v524
    %1718 = vmatpush1.bf16.msra.mxu0 %v523
    %1719 = vmatprep.subr.bf16.mxu0 %v521
    %1720 = vmatpush1.bf16.msra.mxu0 %v520
    %1721 = vmatprep.subr.bf16.mxu0 0
    %1722 = vmatpush2.bf16.msra.mxu0 0
    %1723 = vmatprep.subr.bf16.mxu0 0
    %1724 = vmatpush2.bf16.msra.mxu0 0
    %1725 = vmatprep.subr.bf16.mxu0 0
    %1726 = vmatpush2.bf16.msra.mxu0 0
    %1727 = vmatprep.subr.bf16.mxu0 0
    %1728 = vmatpush2.bf16.msra.mxu0 0
    %1729 = vmatprep.subr.bf16.mxu0 0
    %1730 = vmatpush2.bf16.msra.mxu0 0
    %1731 = vmatprep.subr.bf16.mxu0 0
    %1732 = vmatpush2.bf16.msra.mxu0 0
    %1733 = vmatprep.subr.bf16.mxu0 0
    %1734 = vmatpush2.bf16.msra.mxu0 0
    %1735 = vmatprep.subr.bf16.mxu0 0
    %1736 = vmatpush2.bf16.msra.mxu0 0
    %1737 = vmatprep.mubr.bf16.mxu0 0
    %1738 = vmatmul.mubr.bf16.gmra.mxu0 %v1662
    %v1739 = vpop.f32.mrf.mxu0
    %v1740 = vadd.f32 %v1699, %v1739
    %v1741 = vpop.f32.mrf.mxu0
    %v1742 = vadd.f32 %v1701, %v1741
    %v1743 = vpop.f32.mrf.mxu0
    %v1744 = vpop.f32.mrf.mxu0
    %1745 = vdwg.mxu0
    %1746 = vmatprep.subr.bf16.mxu0 0
    %1747 = vmatpush1.bf16.msra.mxu0 %v495
    %1748 = vmatprep.subr.bf16.mxu0 0
    %1749 = vmatpush1.bf16.msra.mxu0 %v492
    %1750 = vmatprep.subr.bf16.mxu0 0
    %1751 = vmatpush1.bf16.msra.mxu0 %v489
    %1752 = vmatprep.subr.bf16.mxu0 0
    %1753 = vmatpush1.bf16.msra.mxu0 %v486
    %1754 = vmatprep.subr.bf16.mxu0 0
    %1755 = vmatpush1.bf16.msra.mxu0 %v483
    %1756 = vmatprep.subr.bf16.mxu0 0
    %1757 = vmatpush1.bf16.msra.mxu0 %v480
    %1758 = vmatprep.subr.bf16.mxu0 0
    %1759 = vmatpush1.bf16.msra.mxu0 %v477
    %1760 = vmatprep.subr.bf16.mxu0 0
    %1761 = vmatpush1.bf16.msra.mxu0 %v474
    %1762 = vmatprep.subr.bf16.mxu0 0
    %1763 = vmatpush2.bf16.msra.mxu0 %v519
    %1764 = vmatprep.subr.bf16.mxu0 0
    %1765 = vmatpush2.bf16.msra.mxu0 %v516
    %1766 = vmatprep.subr.bf16.mxu0 0
    %1767 = vmatpush2.bf16.msra.mxu0 %v513
    %1768 = vmatprep.subr.bf16.mxu0 0
    %1769 = vmatpush2.bf16.msra.mxu0 %v510
    %1770 = vmatprep.subr.bf16.mxu0 0
    %1771 = vmatpush2.bf16.msra.mxu0 %v507
    %1772 = vmatprep.subr.bf16.mxu0 0
    %1773 = vmatpush2.bf16.msra.mxu0 %v504
    %1774 = vmatprep.subr.bf16.mxu0 0
    %1775 = vmatpush2.bf16.msra.mxu0 %v501
    %1776 = vmatprep.subr.bf16.mxu0 0
    %1777 = vmatpush2.bf16.msra.mxu0 %v498
    %1778 = vmatprep.mubr.bf16.mxu0 %v1658
    %1779 = vmatmul.mubr.bf16.gmra.mxu0 %v1657
    %v1780 = vpop.f32.mrf.mxu0
    %v1781 = vadd.f32 0.0, %v1780
    %v1782 = vpop.f32.mrf.mxu0
    %v1783 = vpop.f32.mrf.mxu0
    %v1784 = vpop.f32.mrf.mxu0
    %1785 = vdwg.mxu0
    %1786 = vmatprep.subr.bf16.mxu0 0
    %1787 = vmatpush1.bf16.msra.mxu0 0
    %1788 = vmatprep.subr.bf16.mxu0 0
    %1789 = vmatpush1.bf16.msra.mxu0 %v619
    %1790 = vmatprep.subr.bf16.mxu0 0
    %1791 = vmatpush1.bf16.msra.mxu0 %v537
    %1792 = vmatprep.subr.bf16.mxu0 0
    %1793 = vmatpush1.bf16.msra.mxu0 %v534
    %1794 = vmatprep.subr.bf16.mxu0 0
    %1795 = vmatpush1.bf16.msra.mxu0 %v531
    %1796 = vmatprep.subr.bf16.mxu0 0
    %1797 = vmatpush1.bf16.msra.mxu0 %v528
    %1798 = vmatprep.subr.bf16.mxu0 0
    %1799 = vmatpush1.bf16.msra.mxu0 %v525
    %1800 = vmatprep.subr.bf16.mxu0 0
    %1801 = vmatpush1.bf16.msra.mxu0 %v522
    %1802 = vmatprep.subr.bf16.mxu0 0
    %1803 = vmatpush2.bf16.msra.mxu0 0
    %1804 = vmatprep.subr.bf16.mxu0 0
    %1805 = vmatpush2.bf16.msra.mxu0 0
    %1806 = vmatprep.subr.bf16.mxu0 0
    %1807 = vmatpush2.bf16.msra.mxu0 0
    %1808 = vmatprep.subr.bf16.mxu0 0
    %1809 = vmatpush2.bf16.msra.mxu0 0
    %1810 = vmatprep.subr.bf16.mxu0 0
    %1811 = vmatpush2.bf16.msra.mxu0 0
    %1812 = vmatprep.subr.bf16.mxu0 0
    %1813 = vmatpush2.bf16.msra.mxu0 0
    %1814 = vmatprep.subr.bf16.mxu0 0
    %1815 = vmatpush2.bf16.msra.mxu0 0
    %1816 = vmatprep.subr.bf16.mxu0 0
    %1817 = vmatpush2.bf16.msra.mxu0 0
    %1818 = vmatprep.mubr.bf16.mxu0 0
    %1819 = vmatmul.mubr.bf16.gmra.mxu0 %v1662
    %v1820 = vpop.f32.mrf.mxu0
    %v1821 = vadd.f32 %v1781, %v1820
    %v1822 = vpop.f32.mrf.mxu0
    %v1823 = vpop.f32.mrf.mxu0
    %v1824 = vpop.f32.mrf.mxu0
    %1825 = vdwg.mxu0
    %1829 = vrot.lane.b32.xlu0 %v907, 64
    %v1830 = vpop.permute.xlu0 %1829
    %1831 = vrot.lane.b32.xlu0 %v909, 64
    %v1832 = vpop.permute.xlu0 %1831
    %1833 = vrot.lane.b32.xlu0 %v988, 64
    %v1834 = vpop.permute.xlu0 %1833
    %vm1835 = vcmask 523264
    %v1836 = vsel %vm1835, %v1830, %v1832
    %v1837 = vsel %vm1835, %v1832, %v1834
    %1844 = vrot.lane.b32.xlu0 %v1327, 64
    %v1845 = vpop.permute.xlu0 %1844
    %1846 = vrot.lane.b32.xlu0 %v1329, 64
    %v1847 = vpop.permute.xlu0 %1846
    %1848 = vrot.lane.b32.xlu0 %v1408, 64
    %v1849 = vpop.permute.xlu0 %1848
    %v1850 = vsel %vm1835, %v1845, %v1847
    %v1851 = vsel %vm1835, %v1847, %v1849
    %1858 = vrot.lane.b32.xlu0 %v1740, 64
    %v1859 = vpop.permute.xlu0 %1858
    %1860 = vrot.lane.b32.xlu0 %v1742, 64
    %v1861 = vpop.permute.xlu0 %1860
    %1862 = vrot.lane.b32.xlu0 %v1821, 64
    %v1863 = vpop.permute.xlu0 %1862
    %v1864 = vsel %vm1835, %v1859, %v1861
    %v1865 = vsel %vm1835, %v1861, %v1863
    %v1869 = vsel %vm1835, %v778, %v1830
    %v1870 = vsel %vm1835, %v1198, %v1845
    %v1871 = vsel %vm1835, %v1618, %v1859
    %v1872 = vld [vmem:[#allocation5] sm:$0xff]
    %v1873 = vld [vmem:[#allocation5 + $0x8] sm:$0xff]
    %v1876 = vlaneseq
    %v1877 = vshrl.u32 %v1876, 7
    %v1878 = vsub.s32 0, %v1877
    %v1879 = vrot.slane %v1872, %v1878
    %v1880 = vlaneseq
    %v1881 = vshrl.u32 %v1880, 7
    %v1882 = vsub.s32 1, %v1881
    %v1883 = vrot.slane %v1872, %v1882
    %v1884 = vlaneseq
    %v1885 = vshrl.u32 %v1884, 7
    %v1886 = vsub.s32 2, %v1885
    %v1887 = vrot.slane %v1872, %v1886
    %v1888 = vlaneseq
    %v1889 = vshrl.u32 %v1888, 7
    %v1890 = vsub.s32 3, %v1889
    %v1891 = vrot.slane %v1872, %v1890
    %v1892 = vlaneseq
    %v1893 = vshrl.u32 %v1892, 7
    %v1894 = vsub.s32 4, %v1893
    %v1895 = vrot.slane %v1872, %v1894
    %v1896 = vlaneseq
    %v1897 = vshrl.u32 %v1896, 7
    %v1898 = vsub.s32 5, %v1897
    %v1899 = vrot.slane %v1872, %v1898
    %v1900 = vlaneseq
    %v1901 = vshrl.u32 %v1900, 7
    %v1902 = vsub.s32 6, %v1901
    %v1903 = vrot.slane %v1872, %v1902
    %v1904 = vlaneseq
    %v1905 = vshrl.u32 %v1904, 7
    %v1906 = vsub.s32 7, %v1905
    %v1907 = vrot.slane %v1872, %v1906
    %v1908 = vlaneseq
    %v1909 = vshrl.u32 %v1908, 7
    %v1910 = vsub.s32 0, %v1909
    %v1911 = vrot.slane %v1873, %v1910
    %v1912 = vlaneseq
    %v1913 = vshrl.u32 %v1912, 7
    %v1914 = vsub.s32 1, %v1913
    %v1915 = vrot.slane %v1873, %v1914
    %v1916 = vlaneseq
    %v1917 = vshrl.u32 %v1916, 7
    %v1918 = vsub.s32 2, %v1917
    %v1919 = vrot.slane %v1873, %v1918
    %v1920 = vlaneseq
    %v1921 = vshrl.u32 %v1920, 7
    %v1922 = vsub.s32 3, %v1921
    %v1923 = vrot.slane %v1873, %v1922
    %v1924 = vlaneseq
    %v1925 = vshrl.u32 %v1924, 7
    %v1926 = vsub.s32 4, %v1925
    %v1927 = vrot.slane %v1873, %v1926
    %v1928 = vlaneseq
    %v1929 = vshrl.u32 %v1928, 7
    %v1930 = vsub.s32 5, %v1929
    %v1931 = vrot.slane %v1873, %v1930
    %v1932 = vlaneseq
    %v1933 = vshrl.u32 %v1932, 7
    %v1934 = vsub.s32 6, %v1933
    %v1935 = vrot.slane %v1873, %v1934
    %v1951 = vadd.f32 %v697, %v1879
    %v1952 = vadd.f32 %v699, %v1883
    %v1953 = vadd.f32 %v1869, %v1887
    %v1954 = vadd.f32 %v1836, %v1891
    %v1955 = vadd.f32 %v1837, %v1895
    %v1956 = vadd.f32 %v1117, %v1899
    %v1957 = vadd.f32 %v1119, %v1903
    %v1958 = vadd.f32 %v1870, %v1907
    %v1959 = vadd.f32 %v1850, %v1911
    %v1960 = vadd.f32 %v1851, %v1915
    %v1961 = vadd.f32 %v1537, %v1919
    %v1962 = vadd.f32 %v1539, %v1923
    %v1963 = vadd.f32 %v1871, %v1927
    %v1964 = vadd.f32 %v1864, %v1931
    %v1965 = vadd.f32 %v1865, %v1935
    %v1966 = vmax.f32 %v1951, 0.0
    %v1967 = vmax.f32 %v1952, 0.0
    %v1968 = vmax.f32 %v1953, 0.0
    %v1969 = vmax.f32 %v1954, 0.0
    %v1970 = vmax.f32 %v1955, 0.0
    %v1971 = vmax.f32 %v1956, 0.0
    %v1972 = vmax.f32 %v1957, 0.0
    %v1973 = vmax.f32 %v1958, 0.0
    %v1974 = vmax.f32 %v1959, 0.0
    %v1975 = vmax.f32 %v1960, 0.0
    %v1976 = vmax.f32 %v1961, 0.0
    %v1977 = vmax.f32 %v1962, 0.0
    %v1978 = vmax.f32 %v1963, 0.0
    %v1979 = vmax.f32 %v1964, 0.0
    %v1980 = vmax.f32 %v1965, 0.0
    %v1981 = vpack.c.bf16 %v1966, %v1966
    %v1982 = vpack.c.bf16 %v1967, %v1967
    %v1983 = vpack.c.bf16 %v1968, %v1968
    %v1984 = vpack.c.bf16 %v1969, %v1969
    %v1985 = vpack.c.bf16 %v1970, %v1970
    %v1986 = vpack.c.bf16 %v1971, %v1971
    %v1987 = vpack.c.bf16 %v1972, %v1972
    %v1988 = vpack.c.bf16 %v1973, %v1973
    %v1989 = vpack.c.bf16 %v1974, %v1974
    %v1990 = vpack.c.bf16 %v1975, %v1975
    %v1991 = vpack.c.bf16 %v1976, %v1976
    %v1992 = vpack.c.bf16 %v1977, %v1977
    %v1993 = vpack.c.bf16 %v1978, %v1978
    %v1994 = vpack.c.bf16 %v1979, %v1979
    %v1995 = vpack.c.bf16 %v1980, %v1980
    %v1996 = vld [vmem:[#allocation7] sm:$0xff]
    %v1997 = vld [vmem:[#allocation7 + $0x8] sm:$0xff]
    %v1998 = vld [vmem:[#allocation7 + $0x10] sm:$0xff]
    %v1999 = vld [vmem:[#allocation7 + $0x18] sm:$0xff]
    %v2000 = vld [vmem:[#allocation7 + $0x20] sm:$0xff]
    %v2001 = vld [vmem:[#allocation7 + $0x28] sm:$0xff]
    %v2002 = vld [vmem:[#allocation7 + $0x30] sm:$0xff]
    %v2003 = vld [vmem:[#allocation7 + $0x38] sm:$0xff]
    %v2004 = vld [vmem:[#allocation7 + $0x40] sm:$0xff]
    %v2005 = vld [vmem:[#allocation7 + $0x48] sm:$0xff]
    %v2006 = vld [vmem:[#allocation7 + $0x50] sm:$0xff]
    %v2007 = vld [vmem:[#allocation7 + $0x58] sm:$0xff]
    %v2008 = vld [vmem:[#allocation7 + $0x60] sm:$0xff]
    %v2009 = vld [vmem:[#allocation7 + $0x68] sm:$0xff]
    %v2010 = vld [vmem:[#allocation7 + $0x70] sm:$0xff]
    %v2011 = vld [vmem:[#allocation7 + $0x78] sm:$0xff]
    %v2012 = vld [vmem:[#allocation7 + $0x80] sm:$0xff]
    %v2013 = vld [vmem:[#allocation7 + $0x88] sm:$0xff]
    %v2014 = vld [vmem:[#allocation7 + $0x90] sm:$0xff]
    %v2015 = vld [vmem:[#allocation7 + $0x98] sm:$0xff]
    %v2016 = vld [vmem:[#allocation7 + $0xa0] sm:$0xff]
    %v2017 = vld [vmem:[#allocation7 + $0xa8] sm:$0xff]
    %v2018 = vld [vmem:[#allocation7 + $0xb0] sm:$0xff]
    %v2019 = vld [vmem:[#allocation7 + $0xb8] sm:$0xff]
    %v2020 = vld [vmem:[#allocation7 + $0xc0] sm:$0xff]
    %v2021 = vld [vmem:[#allocation7 + $0xc8] sm:$0xff]
    %v2022 = vld [vmem:[#allocation7 + $0xd0] sm:$0xff]
    %v2023 = vld [vmem:[#allocation7 + $0xd8] sm:$0xff]
    %v2024 = vld [vmem:[#allocation7 + $0xe0] sm:$0xff]
    %v2025 = vld [vmem:[#allocation7 + $0xe8] sm:$0xff]
    %v2026 = vld [vmem:[#allocation7 + $0xf0] sm:$0xff]
    %v2027 = vld [vmem:[#allocation7 + $0xf8] sm:$0xff]
    %v2028 = vld [vmem:[#allocation7 + $0x100] sm:$0xff]
    %v2029 = vld [vmem:[#allocation7 + $0x108] sm:$0xff]
    %v2030 = vld [vmem:[#allocation7 + $0x110] sm:$0xff]
    %v2031 = vld [vmem:[#allocation7 + $0x118] sm:$0xff]
    %v2032 = vld [vmem:[#allocation7 + $0x120] sm:$0xff]
    %v2033 = vld [vmem:[#allocation7 + $0x128] sm:$0xff]
    %v2034 = vld [vmem:[#allocation7 + $0x130] sm:$0xff]
    %v2035 = vld [vmem:[#allocation7 + $0x138] sm:$0xff]
    %v2036 = vld [vmem:[#allocation7 + $0x140] sm:$0xff]
    %v2037 = vld [vmem:[#allocation7 + $0x148] sm:$0xff]
    %v2038 = vld [vmem:[#allocation7 + $0x150] sm:$0xff]
    %v2039 = vld [vmem:[#allocation7 + $0x158] sm:$0xff]
    %v2040 = vld [vmem:[#allocation7 + $0x160] sm:$0xff]
    %v2041 = vld [vmem:[#allocation7 + $0x168] sm:$0xff]
    %v2042 = vld [vmem:[#allocation7 + $0x170] sm:$0xff]
    %v2043 = vld [vmem:[#allocation7 + $0x178] sm:$0xff]
    %v2044 = vld [vmem:[#allocation7 + $0x180] sm:$0xff]
    %v2045 = vld [vmem:[#allocation7 + $0x188] sm:$0xff]
    %v2046 = vld [vmem:[#allocation7 + $0x190] sm:$0xff]
    %v2047 = vld [vmem:[#allocation7 + $0x198] sm:$0xff]
    %v2048 = vld [vmem:[#allocation7 + $0x1a0] sm:$0xff]
    %v2049 = vld [vmem:[#allocation7 + $0x1a8] sm:$0xff]
    %v2050 = vld [vmem:[#allocation7 + $0x1b0] sm:$0xff]
    %v2051 = vld [vmem:[#allocation7 + $0x1b8] sm:$0xff]
    %v2052 = vld [vmem:[#allocation7 + $0x1c0] sm:$0xff]
    %v2053 = vld [vmem:[#allocation7 + $0x1c8] sm:$0xff]
    %v2054 = vld [vmem:[#allocation7 + $0x1d0] sm:$0xff]
    %v2055 = vld [vmem:[#allocation7 + $0x1d8] sm:$0xff]
    %v2056 = vld [vmem:[#allocation7 + $0x1e0] sm:$0xff]
    %v2057 = vld [vmem:[#allocation7 + $0x1e8] sm:$0xff]
    %v2058 = vld [vmem:[#allocation7 + $0x1f0] sm:$0xff]
    %v2059 = vld [vmem:[#allocation7 + $0x1f8] sm:$0xff]
    %v2060 = vld [vmem:[#allocation7 + $0x200] sm:$0xff]
    %v2061 = vld [vmem:[#allocation7 + $0x208] sm:$0xff]
    %v2062 = vld [vmem:[#allocation7 + $0x210] sm:$0xff]
    %v2063 = vld [vmem:[#allocation7 + $0x218] sm:$0xff]
    %v2064 = vld [vmem:[#allocation7 + $0x220] sm:$0xff]
    %v2065 = vld [vmem:[#allocation7 + $0x228] sm:$0xff]
    %v2066 = vld [vmem:[#allocation7 + $0x230] sm:$0xff]
    %v2067 = vld [vmem:[#allocation7 + $0x238] sm:$0xff]
    %v2068 = vld [vmem:[#allocation7 + $0x240] sm:$0xff]
    %v2069 = vld [vmem:[#allocation7 + $0x248] sm:$0xff]
    %v2070 = vld [vmem:[#allocation7 + $0x250] sm:$0xff]
    %v2071 = vld [vmem:[#allocation7 + $0x258] sm:$0xff]
    %v2072 = vld [vmem:[#allocation7 + $0x260] sm:$0xff]
    %v2073 = vld [vmem:[#allocation7 + $0x268] sm:$0xff]
    %v2074 = vld [vmem:[#allocation7 + $0x270] sm:$0xff]
    %v2075 = vld [vmem:[#allocation7 + $0x278] sm:$0xff]
    %v2076 = vld [vmem:[#allocation7 + $0x280] sm:$0xff]
    %v2077 = vld [vmem:[#allocation7 + $0x288] sm:$0xff]
    %v2078 = vld [vmem:[#allocation7 + $0x290] sm:$0xff]
    %v2079 = vld [vmem:[#allocation7 + $0x298] sm:$0xff]
    %v2080 = vld [vmem:[#allocation7 + $0x2a0] sm:$0xff]
    %v2081 = vld [vmem:[#allocation7 + $0x2a8] sm:$0xff]
    %v2082 = vld [vmem:[#allocation7 + $0x2b0] sm:$0xff]
    %v2083 = vld [vmem:[#allocation7 + $0x2b8] sm:$0xff]
    %v2084 = vld [vmem:[#allocation7 + $0x2c0] sm:$0xff]
    %v2085 = vld [vmem:[#allocation7 + $0x2c8] sm:$0xff]
    %v2086 = vld [vmem:[#allocation7 + $0x2d0] sm:$0xff]
    %v2087 = vld [vmem:[#allocation7 + $0x2d8] sm:$0xff]
    %v2088 = vld [vmem:[#allocation7 + $0x2e0] sm:$0xff]
    %v2089 = vld [vmem:[#allocation7 + $0x2e8] sm:$0xff]
    %v2090 = vld [vmem:[#allocation7 + $0x2f0] sm:$0xff]
    %v2091 = vld [vmem:[#allocation7 + $0x2f8] sm:$0xff]
    %v2092 = vld [vmem:[#allocation7 + $0x300] sm:$0xff]
    %v2093 = vld [vmem:[#allocation7 + $0x308] sm:$0xff]
    %v2094 = vld [vmem:[#allocation7 + $0x310] sm:$0xff]
    %v2095 = vld [vmem:[#allocation7 + $0x318] sm:$0xff]
    %v2096 = vld [vmem:[#allocation7 + $0x320] sm:$0xff]
    %v2097 = vld [vmem:[#allocation7 + $0x328] sm:$0xff]
    %v2098 = vld [vmem:[#allocation7 + $0x330] sm:$0xff]
    %v2099 = vld [vmem:[#allocation7 + $0x338] sm:$0xff]
    %v2100 = vld [vmem:[#allocation7 + $0x340] sm:$0xff]
    %v2101 = vld [vmem:[#allocation7 + $0x348] sm:$0xff]
    %v2102 = vld [vmem:[#allocation7 + $0x350] sm:$0xff]
    %v2103 = vld [vmem:[#allocation7 + $0x358] sm:$0xff]
    %v2104 = vld [vmem:[#allocation7 + $0x360] sm:$0xff]
    %v2105 = vld [vmem:[#allocation7 + $0x368] sm:$0xff]
    %v2106 = vld [vmem:[#allocation7 + $0x370] sm:$0xff]
    %v2107 = vld [vmem:[#allocation7 + $0x378] sm:$0xff]
    %v2108 = vld [vmem:[#allocation7 + $0x380] sm:$0xff]
    %v2109 = vld [vmem:[#allocation7 + $0x388] sm:$0xff]
    %v2110 = vld [vmem:[#allocation7 + $0x390] sm:$0xff]
    %v2111 = vld [vmem:[#allocation7 + $0x398] sm:$0xff]
    %v2112 = vld [vmem:[#allocation7 + $0x3a0] sm:$0xff]
    %v2113 = vld [vmem:[#allocation7 + $0x3a8] sm:$0xff]
    %v2114 = vld [vmem:[#allocation7 + $0x3b0] sm:$0xff]
    %v2115 = vld [vmem:[#allocation7 + $0x3b8] sm:$0xff]
    %v2116 = vld [vmem:[#allocation7 + $0x3c0] sm:$0xff]
    %v2117 = vld [vmem:[#allocation7 + $0x3c8] sm:$0xff]
    %v2118 = vld [vmem:[#allocation7 + $0x3d0] sm:$0xff]
    %v2119 = vld [vmem:[#allocation7 + $0x3d8] sm:$0xff]
    %v2120 = vld [vmem:[#allocation7 + $0x3e0] sm:$0xff]
    %v2121 = vld [vmem:[#allocation7 + $0x3e8] sm:$0xff]
    %v2122 = vld [vmem:[#allocation7 + $0x3f0] sm:$0xff]
    %v2123 = vld [vmem:[#allocation7 + $0x3f8] sm:$0xff]
    %v2124 = vld [vmem:[#allocation7 + $0x400] sm:$0xff]
    %v2125 = vld [vmem:[#allocation7 + $0x408] sm:$0xff]
    %v2126 = vld [vmem:[#allocation7 + $0x410] sm:$0xff]
    %v2127 = vld [vmem:[#allocation7 + $0x418] sm:$0xff]
    %v2128 = vld [vmem:[#allocation7 + $0x420] sm:$0xff]
    %v2129 = vld [vmem:[#allocation7 + $0x428] sm:$0xff]
    %v2130 = vld [vmem:[#allocation7 + $0x430] sm:$0xff]
    %v2131 = vld [vmem:[#allocation7 + $0x438] sm:$0xff]
    %v2132 = vld [vmem:[#allocation7 + $0x440] sm:$0xff]
    %v2133 = vld [vmem:[#allocation7 + $0x448] sm:$0xff]
    %v2134 = vld [vmem:[#allocation7 + $0x450] sm:$0xff]
    %v2135 = vld [vmem:[#allocation7 + $0x458] sm:$0xff]
    %v2136 = vld [vmem:[#allocation7 + $0x460] sm:$0xff]
    %v2137 = vld [vmem:[#allocation7 + $0x468] sm:$0xff]
    %v2138 = vld [vmem:[#allocation7 + $0x470] sm:$0xff]
    %v2139 = vld [vmem:[#allocation7 + $0x478] sm:$0xff]
    %v2140 = vld [vmem:[#allocation7 + $0x480] sm:$0xff]
    %v2141 = vld [vmem:[#allocation7 + $0x488] sm:$0xff]
    %v2142 = vld [vmem:[#allocation7 + $0x490] sm:$0xff]
    %v2143 = vld [vmem:[#allocation7 + $0x498] sm:$0xff]
    %v2144 = vld [vmem:[#allocation7 + $0x4a0] sm:$0xff]
    %v2145 = vld [vmem:[#allocation7 + $0x4a8] sm:$0xff]
    %v2146 = vld [vmem:[#allocation7 + $0x4b0] sm:$0xff]
    %v2147 = vld [vmem:[#allocation7 + $0x4b8] sm:$0xff]
    %v2148 = vld [vmem:[#allocation7 + $0x4c0] sm:$0xff]
    %v2149 = vld [vmem:[#allocation7 + $0x4c8] sm:$0xff]
    %v2150 = vld [vmem:[#allocation7 + $0x4d0] sm:$0xff]
    %v2151 = vld [vmem:[#allocation7 + $0x4d8] sm:$0xff]
    %v2152 = vld [vmem:[#allocation7 + $0x4e0] sm:$0xff]
    %v2153 = vld [vmem:[#allocation7 + $0x4e8] sm:$0xff]
    %v2154 = vld [vmem:[#allocation7 + $0x4f0] sm:$0xff]
    %v2155 = vld [vmem:[#allocation7 + $0x4f8] sm:$0xff]
    %v2156 = vld [vmem:[#allocation7 + $0x500] sm:$0xff]
    %v2157 = vld [vmem:[#allocation7 + $0x508] sm:$0xff]
    %v2158 = vld [vmem:[#allocation7 + $0x510] sm:$0xff]
    %v2159 = vld [vmem:[#allocation7 + $0x518] sm:$0xff]
    %v2160 = vld [vmem:[#allocation7 + $0x520] sm:$0xff]
    %v2161 = vld [vmem:[#allocation7 + $0x528] sm:$0xff]
    %v2162 = vld [vmem:[#allocation7 + $0x530] sm:$0xff]
    %v2163 = vld [vmem:[#allocation7 + $0x538] sm:$0xff]
    %v2164 = vld [vmem:[#allocation7 + $0x540] sm:$0xff]
    %v2165 = vld [vmem:[#allocation7 + $0x548] sm:$0xff]
    %v2166 = vld [vmem:[#allocation7 + $0x550] sm:$0xff]
    %v2167 = vld [vmem:[#allocation7 + $0x558] sm:$0xff]
    %v2168 = vld [vmem:[#allocation7 + $0x560] sm:$0xff]
    %v2169 = vld [vmem:[#allocation7 + $0x568] sm:$0xff]
    %v2170 = vld [vmem:[#allocation7 + $0x570] sm:$0xff]
    %v2171 = vld [vmem:[#allocation7 + $0x578] sm:$0xff]
    %v2172 = vld [vmem:[#allocation7 + $0x580] sm:$0xff]
    %v2173 = vld [vmem:[#allocation7 + $0x588] sm:$0xff]
    %v2174 = vld [vmem:[#allocation7 + $0x590] sm:$0xff]
    %v2175 = vld [vmem:[#allocation7 + $0x598] sm:$0xff]
    %v2176 = vld [vmem:[#allocation7 + $0x5a0] sm:$0xff]
    %v2177 = vld [vmem:[#allocation7 + $0x5a8] sm:$0xff]
    %v2178 = vld [vmem:[#allocation7 + $0x5b0] sm:$0xff]
    %v2179 = vld [vmem:[#allocation7 + $0x5b8] sm:$0xff]
    %v2180 = vld [vmem:[#allocation7 + $0x5c0] sm:$0xff]
    %v2181 = vld [vmem:[#allocation7 + $0x5c8] sm:$0xff]
    %v2182 = vld [vmem:[#allocation7 + $0x5d0] sm:$0xff]
    %v2183 = vld [vmem:[#allocation7 + $0x5d8] sm:$0xff]
    %v2184 = vld [vmem:[#allocation7 + $0x5e0] sm:$0xff]
    %v2185 = vld [vmem:[#allocation7 + $0x5e8] sm:$0xff]
    %v2186 = vld [vmem:[#allocation7 + $0x5f0] sm:$0xff]
    %v2187 = vld [vmem:[#allocation7 + $0x5f8] sm:$0xff]
    %v2188 = vld [vmem:[#allocation7 + $0x600] sm:$0xff]
    %v2189 = vld [vmem:[#allocation7 + $0x608] sm:$0xff]
    %v2190 = vld [vmem:[#allocation7 + $0x610] sm:$0xff]
    %v2191 = vld [vmem:[#allocation7 + $0x618] sm:$0xff]
    %v2192 = vld [vmem:[#allocation7 + $0x620] sm:$0xff]
    %v2193 = vld [vmem:[#allocation7 + $0x628] sm:$0xff]
    %v2194 = vld [vmem:[#allocation7 + $0x630] sm:$0xff]
    %v2195 = vld [vmem:[#allocation7 + $0x638] sm:$0xff]
    %v2196 = vld [vmem:[#allocation7 + $0x640] sm:$0xff]
    %v2197 = vld [vmem:[#allocation7 + $0x648] sm:$0xff]
    %v2198 = vld [vmem:[#allocation7 + $0x650] sm:$0xff]
    %v2199 = vld [vmem:[#allocation7 + $0x658] sm:$0xff]
    %v2200 = vld [vmem:[#allocation7 + $0x660] sm:$0xff]
    %v2201 = vld [vmem:[#allocation7 + $0x668] sm:$0xff]
    %v2202 = vld [vmem:[#allocation7 + $0x670] sm:$0xff]
    %v2203 = vld [vmem:[#allocation7 + $0x678] sm:$0xff]
    %v2204 = vld [vmem:[#allocation7 + $0x680] sm:$0xff]
    %v2205 = vld [vmem:[#allocation7 + $0x688] sm:$0xff]
    %v2206 = vld [vmem:[#allocation7 + $0x690] sm:$0xff]
    %v2207 = vld [vmem:[#allocation7 + $0x698] sm:$0xff]
    %v2208 = vld [vmem:[#allocation7 + $0x6a0] sm:$0xff]
    %v2209 = vld [vmem:[#allocation7 + $0x6a8] sm:$0xff]
    %v2210 = vld [vmem:[#allocation7 + $0x6b0] sm:$0xff]
    %v2211 = vld [vmem:[#allocation7 + $0x6b8] sm:$0xff]
    %v2212 = vld [vmem:[#allocation7 + $0x6c0] sm:$0xff]
    %v2213 = vld [vmem:[#allocation7 + $0x6c8] sm:$0xff]
    %v2214 = vld [vmem:[#allocation7 + $0x6d0] sm:$0xff]
    %v2215 = vld [vmem:[#allocation7 + $0x6d8] sm:$0xff]
    %v2216 = vld [vmem:[#allocation7 + $0x6e0] sm:$0xff]
    %v2217 = vld [vmem:[#allocation7 + $0x6e8] sm:$0xff]
    %v2218 = vld [vmem:[#allocation7 + $0x6f0] sm:$0xff]
    %v2219 = vld [vmem:[#allocation7 + $0x6f8] sm:$0xff]
    %v2220 = vld [vmem:[#allocation7 + $0x700] sm:$0xff]
    %v2221 = vld [vmem:[#allocation7 + $0x708] sm:$0xff]
    %v2222 = vld [vmem:[#allocation7 + $0x710] sm:$0xff]
    %v2223 = vld [vmem:[#allocation7 + $0x718] sm:$0xff]
    %v2224 = vld [vmem:[#allocation7 + $0x720] sm:$0xff]
    %v2225 = vld [vmem:[#allocation7 + $0x728] sm:$0xff]
    %v2226 = vld [vmem:[#allocation7 + $0x730] sm:$0xff]
    %v2227 = vld [vmem:[#allocation7 + $0x738] sm:$0xff]
    %v2228 = vld [vmem:[#allocation7 + $0x740] sm:$0xff]
    %v2229 = vld [vmem:[#allocation7 + $0x748] sm:$0xff]
    %v2230 = vld [vmem:[#allocation7 + $0x750] sm:$0xff]
    %v2231 = vld [vmem:[#allocation7 + $0x758] sm:$0xff]
    %v2232 = vld [vmem:[#allocation7 + $0x760] sm:$0xff]
    %v2233 = vld [vmem:[#allocation7 + $0x768] sm:$0xff]
    %v2234 = vld [vmem:[#allocation7 + $0x770] sm:$0xff]
    %v2235 = vld [vmem:[#allocation7 + $0x778] sm:$0xff]
    %v2236 = vld [vmem:[#allocation7 + $0x780] sm:$0xff]
    %v2237 = vld [vmem:[#allocation7 + $0x788] sm:$0xff]
    %v2238 = vld [vmem:[#allocation7 + $0x790] sm:$0xff]
    %v2239 = vld [vmem:[#allocation7 + $0x798] sm:$0xff]
    %v2240 = vld [vmem:[#allocation7 + $0x7a0] sm:$0xff]
    %v2241 = vld [vmem:[#allocation7 + $0x7a8] sm:$0xff]
    %v2242 = vld [vmem:[#allocation7 + $0x7b0] sm:$0xff]
    %v2243 = vld [vmem:[#allocation7 + $0x7b8] sm:$0xff]
    %v2244 = vld [vmem:[#allocation7 + $0x7c0] sm:$0xff]
    %v2245 = vld [vmem:[#allocation7 + $0x7c8] sm:$0xff]
    %v2246 = vld [vmem:[#allocation7 + $0x7d0] sm:$0xff]
    %v2247 = vld [vmem:[#allocation7 + $0x7d8] sm:$0xff]
    %v2248 = vld [vmem:[#allocation7 + $0x7e0] sm:$0xff]
    %v2249 = vld [vmem:[#allocation7 + $0x7e8] sm:$0xff]
    %v2250 = vld [vmem:[#allocation7 + $0x7f0] sm:$0xff]
    %v2251 = vld [vmem:[#allocation7 + $0x7f8] sm:$0xff]
    %v2252 = vld [vmem:[#allocation7 + $0x800] sm:$0xff]
    %v2253 = vld [vmem:[#allocation7 + $0x808] sm:$0xff]
    %v2254 = vld [vmem:[#allocation7 + $0x810] sm:$0xff]
    %v2255 = vld [vmem:[#allocation7 + $0x818] sm:$0xff]
    %v2256 = vld [vmem:[#allocation7 + $0x820] sm:$0xff]
    %v2257 = vld [vmem:[#allocation7 + $0x828] sm:$0xff]
    %v2258 = vld [vmem:[#allocation7 + $0x830] sm:$0xff]
    %v2259 = vld [vmem:[#allocation7 + $0x838] sm:$0xff]
    %v2260 = vld [vmem:[#allocation7 + $0x840] sm:$0xff]
    %v2261 = vld [vmem:[#allocation7 + $0x848] sm:$0xff]
    %v2262 = vld [vmem:[#allocation7 + $0x850] sm:$0xff]
    %v2263 = vld [vmem:[#allocation7 + $0x858] sm:$0xff]
    %v2264 = vld [vmem:[#allocation7 + $0x860] sm:$0xff]
    %v2265 = vld [vmem:[#allocation7 + $0x868] sm:$0xff]
    %v2266 = vld [vmem:[#allocation7 + $0x870] sm:$0xff]
    %v2267 = vld [vmem:[#allocation7 + $0x878] sm:$0xff]
    %v2268 = vld [vmem:[#allocation7 + $0x880] sm:$0xff]
    %v2269 = vld [vmem:[#allocation7 + $0x888] sm:$0xff]
    %v2270 = vld [vmem:[#allocation7 + $0x890] sm:$0xff]
    %v2271 = vld [vmem:[#allocation7 + $0x898] sm:$0xff]
    %v2272 = vld [vmem:[#allocation7 + $0x8a0] sm:$0xff]
    %v2273 = vld [vmem:[#allocation7 + $0x8a8] sm:$0xff]
    %v2274 = vld [vmem:[#allocation7 + $0x8b0] sm:$0xff]
    %v2275 = vld [vmem:[#allocation7 + $0x8b8] sm:$0xff]
    %v2276 = vld [vmem:[#allocation7 + $0x8c0] sm:$0xff]
    %v2277 = vld [vmem:[#allocation7 + $0x8c8] sm:$0xff]
    %v2278 = vld [vmem:[#allocation7 + $0x8d0] sm:$0xff]
    %v2279 = vld [vmem:[#allocation7 + $0x8d8] sm:$0xff]
    %v2280 = vld [vmem:[#allocation7 + $0x8e0] sm:$0xff]
    %v2281 = vld [vmem:[#allocation7 + $0x8e8] sm:$0xff]
    %v2282 = vld [vmem:[#allocation7 + $0x8f0] sm:$0xff]
    %v2283 = vld [vmem:[#allocation7 + $0x8f8] sm:$0xff]
    %v2284 = vld [vmem:[#allocation7 + $0x900] sm:$0xff]
    %v2285 = vld [vmem:[#allocation7 + $0x908] sm:$0xff]
    %v2286 = vld [vmem:[#allocation7 + $0x910] sm:$0xff]
    %v2287 = vld [vmem:[#allocation7 + $0x918] sm:$0xff]
    %v2288 = vld [vmem:[#allocation7 + $0x920] sm:$0xff]
    %v2289 = vld [vmem:[#allocation7 + $0x928] sm:$0xff]
    %v2290 = vld [vmem:[#allocation7 + $0x930] sm:$0xff]
    %v2291 = vld [vmem:[#allocation7 + $0x938] sm:$0xff]
    %v2292 = vld [vmem:[#allocation7 + $0x940] sm:$0xff]
    %v2293 = vld [vmem:[#allocation7 + $0x948] sm:$0xff]
    %v2294 = vld [vmem:[#allocation7 + $0x950] sm:$0xff]
    %v2295 = vld [vmem:[#allocation7 + $0x958] sm:$0xff]
    %v2296 = vld [vmem:[#allocation7 + $0x960] sm:$0xff]
    %v2297 = vld [vmem:[#allocation7 + $0x968] sm:$0xff]
    %v2298 = vld [vmem:[#allocation7 + $0x970] sm:$0xff]
    %v2299 = vld [vmem:[#allocation7 + $0x978] sm:$0xff]
    %v2300 = vld [vmem:[#allocation7 + $0x980] sm:$0xff]
    %v2301 = vld [vmem:[#allocation7 + $0x988] sm:$0xff]
    %v2302 = vld [vmem:[#allocation7 + $0x990] sm:$0xff]
    %v2303 = vld [vmem:[#allocation7 + $0x998] sm:$0xff]
    %v2304 = vld [vmem:[#allocation7 + $0x9a0] sm:$0xff]
    %v2305 = vld [vmem:[#allocation7 + $0x9a8] sm:$0xff]
    %v2306 = vld [vmem:[#allocation7 + $0x9b0] sm:$0xff]
    %v2307 = vld [vmem:[#allocation7 + $0x9b8] sm:$0xff]
    %v2308 = vld [vmem:[#allocation7 + $0x9c0] sm:$0xff]
    %v2309 = vld [vmem:[#allocation7 + $0x9c8] sm:$0xff]
    %v2310 = vld [vmem:[#allocation7 + $0x9d0] sm:$0xff]
    %v2311 = vld [vmem:[#allocation7 + $0x9d8] sm:$0xff]
    %v2312 = vld [vmem:[#allocation7 + $0x9e0] sm:$0xff]
    %v2313 = vld [vmem:[#allocation7 + $0x9e8] sm:$0xff]
    %v2314 = vld [vmem:[#allocation7 + $0x9f0] sm:$0xff]
    %v2315 = vld [vmem:[#allocation7 + $0x9f8] sm:$0xff]
    %v2316 = vld [vmem:[#allocation7 + $0xa00] sm:$0xff]
    %v2317 = vld [vmem:[#allocation7 + $0xa08] sm:$0xff]
    %v2318 = vld [vmem:[#allocation7 + $0xa10] sm:$0xff]
    %v2319 = vld [vmem:[#allocation7 + $0xa18] sm:$0xff]
    %v2320 = vld [vmem:[#allocation7 + $0xa20] sm:$0xff]
    %v2321 = vld [vmem:[#allocation7 + $0xa28] sm:$0xff]
    %v2322 = vld [vmem:[#allocation7 + $0xa30] sm:$0xff]
    %v2323 = vld [vmem:[#allocation7 + $0xa38] sm:$0xff]
    %v2324 = vld [vmem:[#allocation7 + $0xa40] sm:$0xff]
    %v2325 = vld [vmem:[#allocation7 + $0xa48] sm:$0xff]
    %v2326 = vld [vmem:[#allocation7 + $0xa50] sm:$0xff]
    %v2327 = vld [vmem:[#allocation7 + $0xa58] sm:$0xff]
    %v2328 = vld [vmem:[#allocation7 + $0xa60] sm:$0xff]
    %v2329 = vld [vmem:[#allocation7 + $0xa68] sm:$0xff]
    %v2330 = vld [vmem:[#allocation7 + $0xa70] sm:$0xff]
    %v2331 = vld [vmem:[#allocation7 + $0xa78] sm:$0xff]
    %v2332 = vld [vmem:[#allocation7 + $0xa80] sm:$0xff]
    %v2333 = vld [vmem:[#allocation7 + $0xa88] sm:$0xff]
    %v2334 = vld [vmem:[#allocation7 + $0xa90] sm:$0xff]
    %v2335 = vld [vmem:[#allocation7 + $0xa98] sm:$0xff]
    %v2336 = vld [vmem:[#allocation7 + $0xaa0] sm:$0xff]
    %v2337 = vld [vmem:[#allocation7 + $0xaa8] sm:$0xff]
    %v2338 = vld [vmem:[#allocation7 + $0xab0] sm:$0xff]
    %v2339 = vld [vmem:[#allocation7 + $0xab8] sm:$0xff]
    %v2340 = vld [vmem:[#allocation7 + $0xac0] sm:$0xff]
    %v2341 = vld [vmem:[#allocation7 + $0xac8] sm:$0xff]
    %v2342 = vld [vmem:[#allocation7 + $0xad0] sm:$0xff]
    %v2343 = vld [vmem:[#allocation7 + $0xad8] sm:$0xff]
    %v2344 = vld [vmem:[#allocation7 + $0xae0] sm:$0xff]
    %v2345 = vld [vmem:[#allocation7 + $0xae8] sm:$0xff]
    %v2346 = vld [vmem:[#allocation7 + $0xaf0] sm:$0xff]
    %v2347 = vld [vmem:[#allocation7 + $0xaf8] sm:$0xff]
    %v2348 = vld [vmem:[#allocation7 + $0xb00] sm:$0xff]
    %v2349 = vld [vmem:[#allocation7 + $0xb08] sm:$0xff]
    %v2350 = vld [vmem:[#allocation7 + $0xb10] sm:$0xff]
    %v2351 = vld [vmem:[#allocation7 + $0xb18] sm:$0xff]
    %v2352 = vld [vmem:[#allocation7 + $0xb20] sm:$0xff]
    %v2353 = vld [vmem:[#allocation7 + $0xb28] sm:$0xff]
    %v2354 = vld [vmem:[#allocation7 + $0xb30] sm:$0xff]
    %v2355 = vld [vmem:[#allocation7 + $0xb38] sm:$0xff]
    %v2356 = vld [vmem:[#allocation7 + $0xb40] sm:$0xff]
    %v2357 = vld [vmem:[#allocation7 + $0xb48] sm:$0xff]
    %v2358 = vld [vmem:[#allocation7 + $0xb50] sm:$0xff]
    %v2359 = vld [vmem:[#allocation7 + $0xb58] sm:$0xff]
    %v2360 = vld [vmem:[#allocation7 + $0xb60] sm:$0xff]
    %v2361 = vld [vmem:[#allocation7 + $0xb68] sm:$0xff]
    %v2362 = vld [vmem:[#allocation7 + $0xb70] sm:$0xff]
    %v2363 = vld [vmem:[#allocation7 + $0xb78] sm:$0xff]
    %v2364 = vld [vmem:[#allocation7 + $0xb80] sm:$0xff]
    %v2365 = vld [vmem:[#allocation7 + $0xb88] sm:$0xff]
    %v2366 = vld [vmem:[#allocation7 + $0xb90] sm:$0xff]
    %v2367 = vld [vmem:[#allocation7 + $0xb98] sm:$0xff]
    %v2368 = vld [vmem:[#allocation7 + $0xba0] sm:$0xff]
    %v2369 = vld [vmem:[#allocation7 + $0xba8] sm:$0xff]
    %v2370 = vld [vmem:[#allocation7 + $0xbb0] sm:$0xff]
    %v2371 = vld [vmem:[#allocation7 + $0xbb8] sm:$0xff]
    %v2372 = vld [vmem:[#allocation7 + $0xbc0] sm:$0xff]
    %v2373 = vld [vmem:[#allocation7 + $0xbc8] sm:$0xff]
    %v2374 = vld [vmem:[#allocation7 + $0xbd0] sm:$0xff]
    %v2375 = vld [vmem:[#allocation7 + $0xbd8] sm:$0xff]
    %v2376 = vld [vmem:[#allocation7 + $0xbe0] sm:$0xff]
    %v2377 = vld [vmem:[#allocation7 + $0xbe8] sm:$0xff]
    %v2378 = vld [vmem:[#allocation7 + $0xbf0] sm:$0xff]
    %v2379 = vld [vmem:[#allocation7 + $0xbf8] sm:$0xff]
    %v2380 = vld [vmem:[#allocation7 + $0xc00] sm:$0xff]
    %v2381 = vld [vmem:[#allocation7 + $0xc08] sm:$0xff]
    %v2382 = vld [vmem:[#allocation7 + $0xc10] sm:$0xff]
    %v2383 = vld [vmem:[#allocation7 + $0xc18] sm:$0xff]
    %v2384 = vld [vmem:[#allocation7 + $0xc20] sm:$0xff]
    %v2385 = vld [vmem:[#allocation7 + $0xc28] sm:$0xff]
    %v2386 = vld [vmem:[#allocation7 + $0xc30] sm:$0xff]
    %v2387 = vld [vmem:[#allocation7 + $0xc38] sm:$0xff]
    %v2388 = vld [vmem:[#allocation7 + $0xc40] sm:$0xff]
    %v2389 = vld [vmem:[#allocation7 + $0xc48] sm:$0xff]
    %v2390 = vld [vmem:[#allocation7 + $0xc50] sm:$0xff]
    %v2391 = vld [vmem:[#allocation7 + $0xc58] sm:$0xff]
    %v2392 = vld [vmem:[#allocation7 + $0xc60] sm:$0xff]
    %v2393 = vld [vmem:[#allocation7 + $0xc68] sm:$0xff]
    %v2394 = vld [vmem:[#allocation7 + $0xc70] sm:$0xff]
    %v2395 = vld [vmem:[#allocation7 + $0xc78] sm:$0xff]
    %v2396 = vld [vmem:[#allocation7 + $0xc80] sm:$0xff]
    %v2397 = vld [vmem:[#allocation7 + $0xc88] sm:$0xff]
    %v2398 = vld [vmem:[#allocation7 + $0xc90] sm:$0xff]
    %v2399 = vld [vmem:[#allocation7 + $0xc98] sm:$0xff]
    %v2400 = vld [vmem:[#allocation7 + $0xca0] sm:$0xff]
    %v2401 = vld [vmem:[#allocation7 + $0xca8] sm:$0xff]
    %v2402 = vld [vmem:[#allocation7 + $0xcb0] sm:$0xff]
    %v2403 = vld [vmem:[#allocation7 + $0xcb8] sm:$0xff]
    %v2404 = vld [vmem:[#allocation7 + $0xcc0] sm:$0xff]
    %v2405 = vld [vmem:[#allocation7 + $0xcc8] sm:$0xff]
    %v2406 = vld [vmem:[#allocation7 + $0xcd0] sm:$0xff]
    %v2407 = vld [vmem:[#allocation7 + $0xcd8] sm:$0xff]
    %v2408 = vld [vmem:[#allocation7 + $0xce0] sm:$0xff]
    %v2409 = vld [vmem:[#allocation7 + $0xce8] sm:$0xff]
    %v2410 = vld [vmem:[#allocation7 + $0xcf0] sm:$0xff]
    %v2411 = vld [vmem:[#allocation7 + $0xcf8] sm:$0xff]
    %v2412 = vld [vmem:[#allocation7 + $0xd00] sm:$0xff]
    %v2413 = vld [vmem:[#allocation7 + $0xd08] sm:$0xff]
    %v2414 = vld [vmem:[#allocation7 + $0xd10] sm:$0xff]
    %v2415 = vld [vmem:[#allocation7 + $0xd18] sm:$0xff]
    %v2416 = vld [vmem:[#allocation7 + $0xd20] sm:$0xff]
    %v2417 = vld [vmem:[#allocation7 + $0xd28] sm:$0xff]
    %v2418 = vld [vmem:[#allocation7 + $0xd30] sm:$0xff]
    %v2419 = vld [vmem:[#allocation7 + $0xd38] sm:$0xff]
    %v2420 = vld [vmem:[#allocation7 + $0xd40] sm:$0xff]
    %v2421 = vld [vmem:[#allocation7 + $0xd48] sm:$0xff]
    %v2422 = vld [vmem:[#allocation7 + $0xd50] sm:$0xff]
    %v2423 = vld [vmem:[#allocation7 + $0xd58] sm:$0xff]
    %v2424 = vld [vmem:[#allocation7 + $0xd60] sm:$0xff]
    %v2425 = vld [vmem:[#allocation7 + $0xd68] sm:$0xff]
    %v2426 = vld [vmem:[#allocation7 + $0xd70] sm:$0xff]
    %v2427 = vld [vmem:[#allocation7 + $0xd78] sm:$0xff]
    %v2428 = vld [vmem:[#allocation7 + $0xd80] sm:$0xff]
    %v2429 = vld [vmem:[#allocation7 + $0xd88] sm:$0xff]
    %v2430 = vld [vmem:[#allocation7 + $0xd90] sm:$0xff]
    %v2431 = vld [vmem:[#allocation7 + $0xd98] sm:$0xff]
    %v2432 = vld [vmem:[#allocation7 + $0xda0] sm:$0xff]
    %v2433 = vld [vmem:[#allocation7 + $0xda8] sm:$0xff]
    %v2434 = vld [vmem:[#allocation7 + $0xdb0] sm:$0xff]
    %v2435 = vld [vmem:[#allocation7 + $0xdb8] sm:$0xff]
    %v2436 = vld [vmem:[#allocation7 + $0xdc0] sm:$0xff]
    %v2437 = vld [vmem:[#allocation7 + $0xdc8] sm:$0xff]
    %v2438 = vld [vmem:[#allocation7 + $0xdd0] sm:$0xff]
    %v2439 = vld [vmem:[#allocation7 + $0xdd8] sm:$0xff]
    %v2440 = vld [vmem:[#allocation7 + $0xde0] sm:$0xff]
    %v2441 = vld [vmem:[#allocation7 + $0xde8] sm:$0xff]
    %v2442 = vld [vmem:[#allocation7 + $0xdf0] sm:$0xff]
    %v2443 = vld [vmem:[#allocation7 + $0xdf8] sm:$0xff]
    %v2444 = vld [vmem:[#allocation7 + $0xe00] sm:$0xff]
    %v2445 = vld [vmem:[#allocation7 + $0xe08] sm:$0xff]
    %v2446 = vld [vmem:[#allocation7 + $0xe10] sm:$0xff]
    %v2447 = vld [vmem:[#allocation7 + $0xe18] sm:$0xff]
    %v2448 = vld [vmem:[#allocation7 + $0xe20] sm:$0xff]
    %v2449 = vld [vmem:[#allocation7 + $0xe28] sm:$0xff]
    %v2450 = vld [vmem:[#allocation7 + $0xe30] sm:$0xff]
    %v2451 = vld [vmem:[#allocation7 + $0xe38] sm:$0xff]
    %v2452 = vld [vmem:[#allocation7 + $0xe40] sm:$0xff]
    %v2453 = vld [vmem:[#allocation7 + $0xe48] sm:$0xff]
    %v2454 = vld [vmem:[#allocation7 + $0xe50] sm:$0xff]
    %v2455 = vld [vmem:[#allocation7 + $0xe58] sm:$0xff]
    %v2456 = vld [vmem:[#allocation7 + $0xe60] sm:$0xff]
    %v2457 = vld [vmem:[#allocation7 + $0xe68] sm:$0xff]
    %v2458 = vld [vmem:[#allocation7 + $0xe70] sm:$0xff]
    %v2459 = vld [vmem:[#allocation7 + $0xe78] sm:$0xff]
    %v2460 = vld [vmem:[#allocation7 + $0xe80] sm:$0xff]
    %v2461 = vld [vmem:[#allocation7 + $0xe88] sm:$0xff]
    %v2462 = vld [vmem:[#allocation7 + $0xe90] sm:$0xff]
    %v2463 = vld [vmem:[#allocation7 + $0xe98] sm:$0xff]
    %v2464 = vld [vmem:[#allocation7 + $0xea0] sm:$0xff]
    %v2465 = vld [vmem:[#allocation7 + $0xea8] sm:$0xff]
    %v2466 = vld [vmem:[#allocation7 + $0xeb0] sm:$0xff]
    %v2467 = vld [vmem:[#allocation7 + $0xeb8] sm:$0xff]
    %v2468 = vld [vmem:[#allocation7 + $0xec0] sm:$0xff]
    %v2469 = vld [vmem:[#allocation7 + $0xec8] sm:$0xff]
    %v2470 = vld [vmem:[#allocation7 + $0xed0] sm:$0xff]
    %v2471 = vld [vmem:[#allocation7 + $0xed8] sm:$0xff]
    %v2472 = vld [vmem:[#allocation7 + $0xee0] sm:$0xff]
    %v2473 = vld [vmem:[#allocation7 + $0xee8] sm:$0xff]
    %v2474 = vld [vmem:[#allocation7 + $0xef0] sm:$0xff]
    %v2475 = vld [vmem:[#allocation7 + $0xef8] sm:$0xff]
    %v2476 = vld [vmem:[#allocation8] sm:$0xf]
    %v2478 = vlaneseq
    %v2479 = vshrl.u32 %v2478, 7
    %v2480 = vsub.s32 0, %v2479
    %v2481 = vrot.slane %v2476, %v2480
    %v2482 = vlaneseq
    %v2483 = vshrl.u32 %v2482, 7
    %v2484 = vsub.s32 1, %v2483
    %v2485 = vrot.slane %v2476, %v2484
    %v2486 = vlaneseq
    %v2487 = vshrl.u32 %v2486, 7
    %v2488 = vsub.s32 2, %v2487
    %v2489 = vrot.slane %v2476, %v2488
    %v2490 = vlaneseq
    %v2491 = vshrl.u32 %v2490, 7
    %v2492 = vsub.s32 3, %v2491
    %v2493 = vrot.slane %v2476, %v2492
    %v2978 = vunpack.c.l.b16 %v1996
    %v2979 = vunpack.c.h.b16 %v1996
    %v2980 = vunpack.c.l.b16 %v1997
    %v2981 = vunpack.c.h.b16 %v1997
    %v2982 = vunpack.c.l.b16 %v1998
    %v2983 = vunpack.c.h.b16 %v1998
    %v2984 = vunpack.c.l.b16 %v1999
    %v2985 = vunpack.c.h.b16 %v1999
    %v2986 = vunpack.c.l.b16 %v2000
    %v2987 = vunpack.c.h.b16 %v2000
    %v2988 = vunpack.c.l.b16 %v2001
    %v2989 = vunpack.c.h.b16 %v2001
    %v2990 = vunpack.c.l.b16 %v2002
    %v2991 = vunpack.c.h.b16 %v2002
    %v2992 = vunpack.c.l.b16 %v2003
    %v2993 = vunpack.c.h.b16 %v2003
    %v2994 = vunpack.c.l.b16 %v2004
    %v2995 = vunpack.c.h.b16 %v2004
    %v2996 = vunpack.c.l.b16 %v2005
    %v2997 = vunpack.c.h.b16 %v2005
    %v2998 = vunpack.c.l.b16 %v2006
    %v2999 = vunpack.c.h.b16 %v2006
    %v3000 = vunpack.c.l.b16 %v2007
    %v3001 = vunpack.c.h.b16 %v2007
    %v3002 = vunpack.c.l.b16 %v2008
    %v3003 = vunpack.c.h.b16 %v2008
    %v3004 = vunpack.c.l.b16 %v2009
    %v3005 = vunpack.c.h.b16 %v2009
    %v3006 = vunpack.c.l.b16 %v2010
    %v3007 = vunpack.c.h.b16 %v2010
    %v3008 = vunpack.c.l.b16 %v2011
    %v3009 = vunpack.c.h.b16 %v2011
    %v3010 = vunpack.c.l.b16 %v2012
    %v3011 = vunpack.c.h.b16 %v2012
    %v3012 = vunpack.c.l.b16 %v2013
    %v3013 = vunpack.c.h.b16 %v2013
    %v3014 = vunpack.c.l.b16 %v2014
    %v3015 = vunpack.c.h.b16 %v2014
    %v3016 = vunpack.c.l.b16 %v2015
    %v3017 = vunpack.c.h.b16 %v2015
    %v3018 = vunpack.c.l.b16 %v2016
    %v3019 = vunpack.c.h.b16 %v2016
    %v3020 = vunpack.c.l.b16 %v2017
    %v3021 = vunpack.c.h.b16 %v2017
    %v3022 = vunpack.c.l.b16 %v2018
    %v3023 = vunpack.c.h.b16 %v2018
    %v3024 = vunpack.c.l.b16 %v2019
    %v3025 = vunpack.c.h.b16 %v2019
    %v3026 = vunpack.c.l.b16 %v2020
    %v3027 = vunpack.c.h.b16 %v2020
    %v3028 = vunpack.c.l.b16 %v2021
    %v3029 = vunpack.c.h.b16 %v2021
    %v3030 = vunpack.c.l.b16 %v2022
    %v3031 = vunpack.c.h.b16 %v2022
    %v3032 = vunpack.c.l.b16 %v2023
    %v3033 = vunpack.c.h.b16 %v2023
    %v3034 = vunpack.c.l.b16 %v2024
    %v3035 = vunpack.c.h.b16 %v2024
    %v3036 = vunpack.c.l.b16 %v2025
    %v3037 = vunpack.c.h.b16 %v2025
    %v3038 = vunpack.c.l.b16 %v2026
    %v3039 = vunpack.c.h.b16 %v2026
    %v3040 = vunpack.c.l.b16 %v2027
    %v3041 = vunpack.c.h.b16 %v2027
    %v3042 = vunpack.c.l.b16 %v2028
    %v3043 = vunpack.c.h.b16 %v2028
    %v3044 = vunpack.c.l.b16 %v2029
    %v3045 = vunpack.c.h.b16 %v2029
    %v3046 = vunpack.c.l.b16 %v2030
    %v3047 = vunpack.c.h.b16 %v2030
    %v3048 = vunpack.c.l.b16 %v2031
    %v3049 = vunpack.c.h.b16 %v2031
    %v3050 = vunpack.c.l.b16 %v2032
    %v3051 = vunpack.c.h.b16 %v2032
    %v3052 = vunpack.c.l.b16 %v2033
    %v3053 = vunpack.c.h.b16 %v2033
    %v3054 = vunpack.c.l.b16 %v2034
    %v3055 = vunpack.c.h.b16 %v2034
    %v3056 = vunpack.c.l.b16 %v2035
    %v3057 = vunpack.c.h.b16 %v2035
    %v3058 = vunpack.c.l.b16 %v2036
    %v3059 = vunpack.c.h.b16 %v2036
    %v3060 = vunpack.c.l.b16 %v2037
    %v3061 = vunpack.c.h.b16 %v2037
    %v3062 = vunpack.c.l.b16 %v2038
    %v3063 = vunpack.c.h.b16 %v2038
    %v3064 = vunpack.c.l.b16 %v2039
    %v3065 = vunpack.c.h.b16 %v2039
    %v3066 = vunpack.c.l.b16 %v2040
    %v3067 = vunpack.c.h.b16 %v2040
    %v3068 = vunpack.c.l.b16 %v2041
    %v3069 = vunpack.c.h.b16 %v2041
    %v3070 = vunpack.c.l.b16 %v2042
    %v3071 = vunpack.c.h.b16 %v2042
    %v3072 = vunpack.c.l.b16 %v2043
    %v3073 = vunpack.c.h.b16 %v2043
    %v3074 = vunpack.c.l.b16 %v2044
    %v3075 = vunpack.c.h.b16 %v2044
    %v3076 = vunpack.c.l.b16 %v2045
    %v3077 = vunpack.c.h.b16 %v2045
    %v3078 = vunpack.c.l.b16 %v2046
    %v3079 = vunpack.c.h.b16 %v2046
    %v3080 = vunpack.c.l.b16 %v2047
    %v3081 = vunpack.c.h.b16 %v2047
    %v3082 = vunpack.c.l.b16 %v2048
    %v3083 = vunpack.c.h.b16 %v2048
    %v3084 = vunpack.c.l.b16 %v2049
    %v3085 = vunpack.c.h.b16 %v2049
    %v3086 = vunpack.c.l.b16 %v2050
    %v3087 = vunpack.c.h.b16 %v2050
    %v3088 = vunpack.c.l.b16 %v2051
    %v3089 = vunpack.c.h.b16 %v2051
    %v3090 = vunpack.c.l.b16 %v2052
    %v3091 = vunpack.c.h.b16 %v2052
    %v3092 = vunpack.c.l.b16 %v2053
    %v3093 = vunpack.c.h.b16 %v2053
    %v3094 = vunpack.c.l.b16 %v2054
    %v3095 = vunpack.c.h.b16 %v2054
    %v3096 = vunpack.c.l.b16 %v2055
    %v3097 = vunpack.c.h.b16 %v2055
    %v3098 = vunpack.c.l.b16 %v2056
    %v3099 = vunpack.c.h.b16 %v2056
    %v3100 = vunpack.c.l.b16 %v2057
    %v3101 = vunpack.c.h.b16 %v2057
    %v3102 = vunpack.c.l.b16 %v2058
    %v3103 = vunpack.c.h.b16 %v2058
    %v3104 = vunpack.c.l.b16 %v2059
    %v3105 = vunpack.c.h.b16 %v2059
    %v3106 = vunpack.c.l.b16 %v2060
    %v3107 = vunpack.c.h.b16 %v2060
    %v3108 = vunpack.c.l.b16 %v2061
    %v3109 = vunpack.c.h.b16 %v2061
    %v3110 = vunpack.c.l.b16 %v2062
    %v3111 = vunpack.c.h.b16 %v2062
    %v3112 = vunpack.c.l.b16 %v2063
    %v3113 = vunpack.c.h.b16 %v2063
    %v3114 = vunpack.c.l.b16 %v2064
    %v3115 = vunpack.c.h.b16 %v2064
    %v3116 = vunpack.c.l.b16 %v2065
    %v3117 = vunpack.c.h.b16 %v2065
    %v3118 = vunpack.c.l.b16 %v2066
    %v3119 = vunpack.c.h.b16 %v2066
    %v3120 = vunpack.c.l.b16 %v2067
    %v3121 = vunpack.c.h.b16 %v2067
    %v3122 = vunpack.c.l.b16 %v2068
    %v3123 = vunpack.c.h.b16 %v2068
    %v3124 = vunpack.c.l.b16 %v2069
    %v3125 = vunpack.c.h.b16 %v2069
    %v3126 = vunpack.c.l.b16 %v2070
    %v3127 = vunpack.c.h.b16 %v2070
    %v3128 = vunpack.c.l.b16 %v2071
    %v3129 = vunpack.c.h.b16 %v2071
    %v3130 = vunpack.c.l.b16 %v2072
    %v3131 = vunpack.c.h.b16 %v2072
    %v3132 = vunpack.c.l.b16 %v2073
    %v3133 = vunpack.c.h.b16 %v2073
    %v3134 = vunpack.c.l.b16 %v2074
    %v3135 = vunpack.c.h.b16 %v2074
    %v3136 = vunpack.c.l.b16 %v2075
    %v3137 = vunpack.c.h.b16 %v2075
    %v3138 = vunpack.c.l.b16 %v2076
    %v3139 = vunpack.c.h.b16 %v2076
    %v3140 = vunpack.c.l.b16 %v2077
    %v3141 = vunpack.c.h.b16 %v2077
    %v3142 = vunpack.c.l.b16 %v2078
    %v3143 = vunpack.c.h.b16 %v2078
    %v3144 = vunpack.c.l.b16 %v2079
    %v3145 = vunpack.c.h.b16 %v2079
    %v3146 = vunpack.c.l.b16 %v2080
    %v3147 = vunpack.c.h.b16 %v2080
    %v3148 = vunpack.c.l.b16 %v2081
    %v3149 = vunpack.c.h.b16 %v2081
    %v3150 = vunpack.c.l.b16 %v2082
    %v3151 = vunpack.c.h.b16 %v2082
    %v3152 = vunpack.c.l.b16 %v2083
    %v3153 = vunpack.c.h.b16 %v2083
    %v3154 = vunpack.c.l.b16 %v2084
    %v3155 = vunpack.c.h.b16 %v2084
    %v3156 = vunpack.c.l.b16 %v2085
    %v3157 = vunpack.c.h.b16 %v2085
    %v3158 = vunpack.c.l.b16 %v2086
    %v3159 = vunpack.c.h.b16 %v2086
    %v3160 = vunpack.c.l.b16 %v2087
    %v3161 = vunpack.c.h.b16 %v2087
    %v3162 = vunpack.c.l.b16 %v2088
    %v3163 = vunpack.c.h.b16 %v2088
    %v3164 = vunpack.c.l.b16 %v2089
    %v3165 = vunpack.c.h.b16 %v2089
    %v3166 = vunpack.c.l.b16 %v2090
    %v3167 = vunpack.c.h.b16 %v2090
    %v3168 = vunpack.c.l.b16 %v2091
    %v3169 = vunpack.c.h.b16 %v2091
    %v3170 = vunpack.c.l.b16 %v2092
    %v3171 = vunpack.c.h.b16 %v2092
    %v3172 = vunpack.c.l.b16 %v2093
    %v3173 = vunpack.c.h.b16 %v2093
    %v3174 = vunpack.c.l.b16 %v2094
    %v3175 = vunpack.c.h.b16 %v2094
    %v3176 = vunpack.c.l.b16 %v2095
    %v3177 = vunpack.c.h.b16 %v2095
    %v3178 = vunpack.c.l.b16 %v2096
    %v3179 = vunpack.c.h.b16 %v2096
    %v3180 = vunpack.c.l.b16 %v2097
    %v3181 = vunpack.c.h.b16 %v2097
    %v3182 = vunpack.c.l.b16 %v2098
    %v3183 = vunpack.c.h.b16 %v2098
    %v3184 = vunpack.c.l.b16 %v2099
    %v3185 = vunpack.c.h.b16 %v2099
    %v3186 = vunpack.c.l.b16 %v2100
    %v3187 = vunpack.c.h.b16 %v2100
    %v3188 = vunpack.c.l.b16 %v2101
    %v3189 = vunpack.c.h.b16 %v2101
    %v3190 = vunpack.c.l.b16 %v2102
    %v3191 = vunpack.c.h.b16 %v2102
    %v3192 = vunpack.c.l.b16 %v2103
    %v3193 = vunpack.c.h.b16 %v2103
    %v3194 = vunpack.c.l.b16 %v2104
    %v3195 = vunpack.c.h.b16 %v2104
    %v3196 = vunpack.c.l.b16 %v2105
    %v3197 = vunpack.c.h.b16 %v2105
    %v3198 = vunpack.c.l.b16 %v2106
    %v3199 = vunpack.c.h.b16 %v2106
    %v3200 = vunpack.c.l.b16 %v2107
    %v3201 = vunpack.c.h.b16 %v2107
    %v3202 = vunpack.c.l.b16 %v2108
    %v3203 = vunpack.c.h.b16 %v2108
    %v3204 = vunpack.c.l.b16 %v2109
    %v3205 = vunpack.c.h.b16 %v2109
    %v3206 = vunpack.c.l.b16 %v2110
    %v3207 = vunpack.c.h.b16 %v2110
    %v3208 = vunpack.c.l.b16 %v2111
    %v3209 = vunpack.c.h.b16 %v2111
    %v3210 = vunpack.c.l.b16 %v2112
    %v3211 = vunpack.c.h.b16 %v2112
    %v3212 = vunpack.c.l.b16 %v2113
    %v3213 = vunpack.c.h.b16 %v2113
    %v3214 = vunpack.c.l.b16 %v2114
    %v3215 = vunpack.c.h.b16 %v2114
    %v3216 = vunpack.c.l.b16 %v2115
    %v3217 = vunpack.c.h.b16 %v2115
    %v3218 = vunpack.c.l.b16 %v2116
    %v3219 = vunpack.c.h.b16 %v2116
    %v3220 = vunpack.c.l.b16 %v2117
    %v3221 = vunpack.c.h.b16 %v2117
    %v3222 = vunpack.c.l.b16 %v2118
    %v3223 = vunpack.c.h.b16 %v2118
    %v3224 = vunpack.c.l.b16 %v2119
    %v3225 = vunpack.c.h.b16 %v2119
    %v3226 = vunpack.c.l.b16 %v2120
    %v3227 = vunpack.c.h.b16 %v2120
    %v3228 = vunpack.c.l.b16 %v2121
    %v3229 = vunpack.c.h.b16 %v2121
    %v3230 = vunpack.c.l.b16 %v2122
    %v3231 = vunpack.c.h.b16 %v2122
    %v3232 = vunpack.c.l.b16 %v2123
    %v3233 = vunpack.c.h.b16 %v2123
    %v3234 = vunpack.c.l.b16 %v2124
    %v3235 = vunpack.c.h.b16 %v2124
    %v3236 = vunpack.c.l.b16 %v2125
    %v3237 = vunpack.c.h.b16 %v2125
    %v3238 = vunpack.c.l.b16 %v2126
    %v3239 = vunpack.c.h.b16 %v2126
    %v3240 = vunpack.c.l.b16 %v2127
    %v3241 = vunpack.c.h.b16 %v2127
    %v3242 = vunpack.c.l.b16 %v2128
    %v3243 = vunpack.c.h.b16 %v2128
    %v3244 = vunpack.c.l.b16 %v2129
    %v3245 = vunpack.c.h.b16 %v2129
    %v3246 = vunpack.c.l.b16 %v2130
    %v3247 = vunpack.c.h.b16 %v2130
    %v3248 = vunpack.c.l.b16 %v2131
    %v3249 = vunpack.c.h.b16 %v2131
    %v3250 = vunpack.c.l.b16 %v2132
    %v3251 = vunpack.c.h.b16 %v2132
    %v3252 = vunpack.c.l.b16 %v2133
    %v3253 = vunpack.c.h.b16 %v2133
    %v3254 = vunpack.c.l.b16 %v2134
    %v3255 = vunpack.c.h.b16 %v2134
    %v3256 = vunpack.c.l.b16 %v2135
    %v3257 = vunpack.c.h.b16 %v2135
    %v3258 = vunpack.c.l.b16 %v2136
    %v3259 = vunpack.c.h.b16 %v2136
    %v3260 = vunpack.c.l.b16 %v2137
    %v3261 = vunpack.c.h.b16 %v2137
    %v3262 = vunpack.c.l.b16 %v2138
    %v3263 = vunpack.c.h.b16 %v2138
    %v3264 = vunpack.c.l.b16 %v2139
    %v3265 = vunpack.c.h.b16 %v2139
    %v3266 = vunpack.c.l.b16 %v2140
    %v3267 = vunpack.c.h.b16 %v2140
    %v3268 = vunpack.c.l.b16 %v2141
    %v3269 = vunpack.c.h.b16 %v2141
    %v3270 = vunpack.c.l.b16 %v2142
    %v3271 = vunpack.c.h.b16 %v2142
    %v3272 = vunpack.c.l.b16 %v2143
    %v3273 = vunpack.c.h.b16 %v2143
    %v3274 = vunpack.c.l.b16 %v2144
    %v3275 = vunpack.c.h.b16 %v2144
    %v3276 = vunpack.c.l.b16 %v2145
    %v3277 = vunpack.c.h.b16 %v2145
    %v3278 = vunpack.c.l.b16 %v2146
    %v3279 = vunpack.c.h.b16 %v2146
    %v3280 = vunpack.c.l.b16 %v2147
    %v3281 = vunpack.c.h.b16 %v2147
    %v3282 = vunpack.c.l.b16 %v2148
    %v3283 = vunpack.c.h.b16 %v2148
    %v3284 = vunpack.c.l.b16 %v2149
    %v3285 = vunpack.c.h.b16 %v2149
    %v3286 = vunpack.c.l.b16 %v2150
    %v3287 = vunpack.c.h.b16 %v2150
    %v3288 = vunpack.c.l.b16 %v2151
    %v3289 = vunpack.c.h.b16 %v2151
    %v3290 = vunpack.c.l.b16 %v2152
    %v3291 = vunpack.c.h.b16 %v2152
    %v3292 = vunpack.c.l.b16 %v2153
    %v3293 = vunpack.c.h.b16 %v2153
    %v3294 = vunpack.c.l.b16 %v2154
    %v3295 = vunpack.c.h.b16 %v2154
    %v3296 = vunpack.c.l.b16 %v2155
    %v3297 = vunpack.c.h.b16 %v2155
    %v3298 = vunpack.c.l.b16 %v2156
    %v3299 = vunpack.c.h.b16 %v2156
    %v3300 = vunpack.c.l.b16 %v2157
    %v3301 = vunpack.c.h.b16 %v2157
    %v3302 = vunpack.c.l.b16 %v2158
    %v3303 = vunpack.c.h.b16 %v2158
    %v3304 = vunpack.c.l.b16 %v2159
    %v3305 = vunpack.c.h.b16 %v2159
    %v3306 = vunpack.c.l.b16 %v2160
    %v3307 = vunpack.c.h.b16 %v2160
    %v3308 = vunpack.c.l.b16 %v2161
    %v3309 = vunpack.c.h.b16 %v2161
    %v3310 = vunpack.c.l.b16 %v2162
    %v3311 = vunpack.c.h.b16 %v2162
    %v3312 = vunpack.c.l.b16 %v2163
    %v3313 = vunpack.c.h.b16 %v2163
    %v3314 = vunpack.c.l.b16 %v2164
    %v3315 = vunpack.c.h.b16 %v2164
    %v3316 = vunpack.c.l.b16 %v2165
    %v3317 = vunpack.c.h.b16 %v2165
    %v3318 = vunpack.c.l.b16 %v2166
    %v3319 = vunpack.c.h.b16 %v2166
    %v3320 = vunpack.c.l.b16 %v2167
    %v3321 = vunpack.c.h.b16 %v2167
    %v3322 = vunpack.c.l.b16 %v2168
    %v3323 = vunpack.c.h.b16 %v2168
    %v3324 = vunpack.c.l.b16 %v2169
    %v3325 = vunpack.c.h.b16 %v2169
    %v3326 = vunpack.c.l.b16 %v2170
    %v3327 = vunpack.c.h.b16 %v2170
    %v3328 = vunpack.c.l.b16 %v2171
    %v3329 = vunpack.c.h.b16 %v2171
    %v3330 = vunpack.c.l.b16 %v2172
    %v3331 = vunpack.c.h.b16 %v2172
    %v3332 = vunpack.c.l.b16 %v2173
    %v3333 = vunpack.c.h.b16 %v2173
    %v3334 = vunpack.c.l.b16 %v2174
    %v3335 = vunpack.c.h.b16 %v2174
    %v3336 = vunpack.c.l.b16 %v2175
    %v3337 = vunpack.c.h.b16 %v2175
    %v3338 = vunpack.c.l.b16 %v2176
    %v3339 = vunpack.c.h.b16 %v2176
    %v3340 = vunpack.c.l.b16 %v2177
    %v3341 = vunpack.c.h.b16 %v2177
    %v3342 = vunpack.c.l.b16 %v2178
    %v3343 = vunpack.c.h.b16 %v2178
    %v3344 = vunpack.c.l.b16 %v2179
    %v3345 = vunpack.c.h.b16 %v2179
    %v3346 = vunpack.c.l.b16 %v2180
    %v3347 = vunpack.c.h.b16 %v2180
    %v3348 = vunpack.c.l.b16 %v2181
    %v3349 = vunpack.c.h.b16 %v2181
    %v3350 = vunpack.c.l.b16 %v2182
    %v3351 = vunpack.c.h.b16 %v2182
    %v3352 = vunpack.c.l.b16 %v2183
    %v3353 = vunpack.c.h.b16 %v2183
    %v3354 = vunpack.c.l.b16 %v2184
    %v3355 = vunpack.c.h.b16 %v2184
    %v3356 = vunpack.c.l.b16 %v2185
    %v3357 = vunpack.c.h.b16 %v2185
    %v3358 = vunpack.c.l.b16 %v2186
    %v3359 = vunpack.c.h.b16 %v2186
    %v3360 = vunpack.c.l.b16 %v2187
    %v3361 = vunpack.c.h.b16 %v2187
    %v3362 = vunpack.c.l.b16 %v2188
    %v3363 = vunpack.c.h.b16 %v2188
    %v3364 = vunpack.c.l.b16 %v2189
    %v3365 = vunpack.c.h.b16 %v2189
    %v3366 = vunpack.c.l.b16 %v2190
    %v3367 = vunpack.c.h.b16 %v2190
    %v3368 = vunpack.c.l.b16 %v2191
    %v3369 = vunpack.c.h.b16 %v2191
    %v3370 = vunpack.c.l.b16 %v2192
    %v3371 = vunpack.c.h.b16 %v2192
    %v3372 = vunpack.c.l.b16 %v2193
    %v3373 = vunpack.c.h.b16 %v2193
    %v3374 = vunpack.c.l.b16 %v2194
    %v3375 = vunpack.c.h.b16 %v2194
    %v3376 = vunpack.c.l.b16 %v2195
    %v3377 = vunpack.c.h.b16 %v2195
    %v3378 = vunpack.c.l.b16 %v2196
    %v3379 = vunpack.c.h.b16 %v2196
    %v3380 = vunpack.c.l.b16 %v2197
    %v3381 = vunpack.c.h.b16 %v2197
    %v3382 = vunpack.c.l.b16 %v2198
    %v3383 = vunpack.c.h.b16 %v2198
    %v3384 = vunpack.c.l.b16 %v2199
    %v3385 = vunpack.c.h.b16 %v2199
    %v3386 = vunpack.c.l.b16 %v2200
    %v3387 = vunpack.c.h.b16 %v2200
    %v3388 = vunpack.c.l.b16 %v2201
    %v3389 = vunpack.c.h.b16 %v2201
    %v3390 = vunpack.c.l.b16 %v2202
    %v3391 = vunpack.c.h.b16 %v2202
    %v3392 = vunpack.c.l.b16 %v2203
    %v3393 = vunpack.c.h.b16 %v2203
    %v3394 = vunpack.c.l.b16 %v2204
    %v3395 = vunpack.c.h.b16 %v2204
    %v3396 = vunpack.c.l.b16 %v2205
    %v3397 = vunpack.c.h.b16 %v2205
    %v3398 = vunpack.c.l.b16 %v2206
    %v3399 = vunpack.c.h.b16 %v2206
    %v3400 = vunpack.c.l.b16 %v2207
    %v3401 = vunpack.c.h.b16 %v2207
    %v3402 = vunpack.c.l.b16 %v2208
    %v3403 = vunpack.c.h.b16 %v2208
    %v3404 = vunpack.c.l.b16 %v2209
    %v3405 = vunpack.c.h.b16 %v2209
    %v3406 = vunpack.c.l.b16 %v2210
    %v3407 = vunpack.c.h.b16 %v2210
    %v3408 = vunpack.c.l.b16 %v2211
    %v3409 = vunpack.c.h.b16 %v2211
    %v3410 = vunpack.c.l.b16 %v2212
    %v3411 = vunpack.c.h.b16 %v2212
    %v3412 = vunpack.c.l.b16 %v2213
    %v3413 = vunpack.c.h.b16 %v2213
    %v3414 = vunpack.c.l.b16 %v2214
    %v3415 = vunpack.c.h.b16 %v2214
    %v3416 = vunpack.c.l.b16 %v2215
    %v3417 = vunpack.c.h.b16 %v2215
    %v3418 = vunpack.c.l.b16 %v2216
    %v3419 = vunpack.c.h.b16 %v2216
    %v3420 = vunpack.c.l.b16 %v2217
    %v3421 = vunpack.c.h.b16 %v2217
    %v3422 = vunpack.c.l.b16 %v2218
    %v3423 = vunpack.c.h.b16 %v2218
    %v3424 = vunpack.c.l.b16 %v2219
    %v3425 = vunpack.c.h.b16 %v2219
    %v3426 = vunpack.c.l.b16 %v2220
    %v3427 = vunpack.c.h.b16 %v2220
    %v3428 = vunpack.c.l.b16 %v2221
    %v3429 = vunpack.c.h.b16 %v2221
    %v3430 = vunpack.c.l.b16 %v2222
    %v3431 = vunpack.c.h.b16 %v2222
    %v3432 = vunpack.c.l.b16 %v2223
    %v3433 = vunpack.c.h.b16 %v2223
    %v3434 = vunpack.c.l.b16 %v2224
    %v3435 = vunpack.c.h.b16 %v2224
    %v3436 = vunpack.c.l.b16 %v2225
    %v3437 = vunpack.c.h.b16 %v2225
    %v3438 = vunpack.c.l.b16 %v2226
    %v3439 = vunpack.c.h.b16 %v2226
    %v3440 = vunpack.c.l.b16 %v2227
    %v3441 = vunpack.c.h.b16 %v2227
    %v3442 = vunpack.c.l.b16 %v2228
    %v3443 = vunpack.c.h.b16 %v2228
    %v3444 = vunpack.c.l.b16 %v2229
    %v3445 = vunpack.c.h.b16 %v2229
    %v3446 = vunpack.c.l.b16 %v2230
    %v3447 = vunpack.c.h.b16 %v2230
    %v3448 = vunpack.c.l.b16 %v2231
    %v3449 = vunpack.c.h.b16 %v2231
    %v3450 = vunpack.c.l.b16 %v2232
    %v3451 = vunpack.c.h.b16 %v2232
    %v3452 = vunpack.c.l.b16 %v2233
    %v3453 = vunpack.c.h.b16 %v2233
    %v3454 = vunpack.c.l.b16 %v2234
    %v3455 = vunpack.c.h.b16 %v2234
    %v3456 = vunpack.c.l.b16 %v2235
    %v3457 = vunpack.c.h.b16 %v2235
    %v3458 = vunpack.c.l.b16 %v2236
    %v3459 = vunpack.c.h.b16 %v2236
    %v3460 = vunpack.c.l.b16 %v2237
    %v3461 = vunpack.c.h.b16 %v2237
    %v3462 = vunpack.c.l.b16 %v2238
    %v3463 = vunpack.c.h.b16 %v2238
    %v3464 = vunpack.c.l.b16 %v2239
    %v3465 = vunpack.c.h.b16 %v2239
    %v3466 = vunpack.c.l.b16 %v2240
    %v3467 = vunpack.c.h.b16 %v2240
    %v3468 = vunpack.c.l.b16 %v2241
    %v3469 = vunpack.c.h.b16 %v2241
    %v3470 = vunpack.c.l.b16 %v2242
    %v3471 = vunpack.c.h.b16 %v2242
    %v3472 = vunpack.c.l.b16 %v2243
    %v3473 = vunpack.c.h.b16 %v2243
    %v3474 = vunpack.c.l.b16 %v2244
    %v3475 = vunpack.c.h.b16 %v2244
    %v3476 = vunpack.c.l.b16 %v2245
    %v3477 = vunpack.c.h.b16 %v2245
    %v3478 = vunpack.c.l.b16 %v2246
    %v3479 = vunpack.c.h.b16 %v2246
    %v3480 = vunpack.c.l.b16 %v2247
    %v3481 = vunpack.c.h.b16 %v2247
    %v3482 = vunpack.c.l.b16 %v2248
    %v3483 = vunpack.c.h.b16 %v2248
    %v3484 = vunpack.c.l.b16 %v2249
    %v3485 = vunpack.c.h.b16 %v2249
    %v3486 = vunpack.c.l.b16 %v2250
    %v3487 = vunpack.c.h.b16 %v2250
    %v3488 = vunpack.c.l.b16 %v2251
    %v3489 = vunpack.c.h.b16 %v2251
    %v3490 = vunpack.c.l.b16 %v2252
    %v3491 = vunpack.c.h.b16 %v2252
    %v3492 = vunpack.c.l.b16 %v2253
    %v3493 = vunpack.c.h.b16 %v2253
    %v3494 = vunpack.c.l.b16 %v2254
    %v3495 = vunpack.c.h.b16 %v2254
    %v3496 = vunpack.c.l.b16 %v2255
    %v3497 = vunpack.c.h.b16 %v2255
    %v3498 = vunpack.c.l.b16 %v2256
    %v3499 = vunpack.c.h.b16 %v2256
    %v3500 = vunpack.c.l.b16 %v2257
    %v3501 = vunpack.c.h.b16 %v2257
    %v3502 = vunpack.c.l.b16 %v2258
    %v3503 = vunpack.c.h.b16 %v2258
    %v3504 = vunpack.c.l.b16 %v2259
    %v3505 = vunpack.c.h.b16 %v2259
    %v3506 = vunpack.c.l.b16 %v2260
    %v3507 = vunpack.c.h.b16 %v2260
    %v3508 = vunpack.c.l.b16 %v2261
    %v3509 = vunpack.c.h.b16 %v2261
    %v3510 = vunpack.c.l.b16 %v2262
    %v3511 = vunpack.c.h.b16 %v2262
    %v3512 = vunpack.c.l.b16 %v2263
    %v3513 = vunpack.c.h.b16 %v2263
    %v3514 = vunpack.c.l.b16 %v2264
    %v3515 = vunpack.c.h.b16 %v2264
    %v3516 = vunpack.c.l.b16 %v2265
    %v3517 = vunpack.c.h.b16 %v2265
    %v3518 = vunpack.c.l.b16 %v2266
    %v3519 = vunpack.c.h.b16 %v2266
    %v3520 = vunpack.c.l.b16 %v2267
    %v3521 = vunpack.c.h.b16 %v2267
    %v3522 = vunpack.c.l.b16 %v2268
    %v3523 = vunpack.c.h.b16 %v2268
    %v3524 = vunpack.c.l.b16 %v2269
    %v3525 = vunpack.c.h.b16 %v2269
    %v3526 = vunpack.c.l.b16 %v2270
    %v3527 = vunpack.c.h.b16 %v2270
    %v3528 = vunpack.c.l.b16 %v2271
    %v3529 = vunpack.c.h.b16 %v2271
    %v3530 = vunpack.c.l.b16 %v2272
    %v3531 = vunpack.c.h.b16 %v2272
    %v3532 = vunpack.c.l.b16 %v2273
    %v3533 = vunpack.c.h.b16 %v2273
    %v3534 = vunpack.c.l.b16 %v2274
    %v3535 = vunpack.c.h.b16 %v2274
    %v3536 = vunpack.c.l.b16 %v2275
    %v3537 = vunpack.c.h.b16 %v2275
    %v3538 = vunpack.c.l.b16 %v2276
    %v3539 = vunpack.c.h.b16 %v2276
    %v3540 = vunpack.c.l.b16 %v2277
    %v3541 = vunpack.c.h.b16 %v2277
    %v3542 = vunpack.c.l.b16 %v2278
    %v3543 = vunpack.c.h.b16 %v2278
    %v3544 = vunpack.c.l.b16 %v2279
    %v3545 = vunpack.c.h.b16 %v2279
    %v3546 = vunpack.c.l.b16 %v2280
    %v3547 = vunpack.c.h.b16 %v2280
    %v3548 = vunpack.c.l.b16 %v2281
    %v3549 = vunpack.c.h.b16 %v2281
    %v3550 = vunpack.c.l.b16 %v2282
    %v3551 = vunpack.c.h.b16 %v2282
    %v3552 = vunpack.c.l.b16 %v2283
    %v3553 = vunpack.c.h.b16 %v2283
    %v3554 = vunpack.c.l.b16 %v2284
    %v3555 = vunpack.c.h.b16 %v2284
    %v3556 = vunpack.c.l.b16 %v2285
    %v3557 = vunpack.c.h.b16 %v2285
    %v3558 = vunpack.c.l.b16 %v2286
    %v3559 = vunpack.c.h.b16 %v2286
    %v3560 = vunpack.c.l.b16 %v2287
    %v3561 = vunpack.c.h.b16 %v2287
    %v3562 = vunpack.c.l.b16 %v2288
    %v3563 = vunpack.c.h.b16 %v2288
    %v3564 = vunpack.c.l.b16 %v2289
    %v3565 = vunpack.c.h.b16 %v2289
    %v3566 = vunpack.c.l.b16 %v2290
    %v3567 = vunpack.c.h.b16 %v2290
    %v3568 = vunpack.c.l.b16 %v2291
    %v3569 = vunpack.c.h.b16 %v2291
    %v3570 = vunpack.c.l.b16 %v2292
    %v3571 = vunpack.c.h.b16 %v2292
    %v3572 = vunpack.c.l.b16 %v2293
    %v3573 = vunpack.c.h.b16 %v2293
    %v3574 = vunpack.c.l.b16 %v2294
    %v3575 = vunpack.c.h.b16 %v2294
    %v3576 = vunpack.c.l.b16 %v2295
    %v3577 = vunpack.c.h.b16 %v2295
    %v3578 = vunpack.c.l.b16 %v2296
    %v3579 = vunpack.c.h.b16 %v2296
    %v3580 = vunpack.c.l.b16 %v2297
    %v3581 = vunpack.c.h.b16 %v2297
    %v3582 = vunpack.c.l.b16 %v2298
    %v3583 = vunpack.c.h.b16 %v2298
    %v3584 = vunpack.c.l.b16 %v2299
    %v3585 = vunpack.c.h.b16 %v2299
    %v3586 = vunpack.c.l.b16 %v2300
    %v3587 = vunpack.c.h.b16 %v2300
    %v3588 = vunpack.c.l.b16 %v2301
    %v3589 = vunpack.c.h.b16 %v2301
    %v3590 = vunpack.c.l.b16 %v2302
    %v3591 = vunpack.c.h.b16 %v2302
    %v3592 = vunpack.c.l.b16 %v2303
    %v3593 = vunpack.c.h.b16 %v2303
    %v3594 = vunpack.c.l.b16 %v2304
    %v3595 = vunpack.c.h.b16 %v2304
    %v3596 = vunpack.c.l.b16 %v2305
    %v3597 = vunpack.c.h.b16 %v2305
    %v3598 = vunpack.c.l.b16 %v2306
    %v3599 = vunpack.c.h.b16 %v2306
    %v3600 = vunpack.c.l.b16 %v2307
    %v3601 = vunpack.c.h.b16 %v2307
    %v3602 = vunpack.c.l.b16 %v2308
    %v3603 = vunpack.c.h.b16 %v2308
    %v3604 = vunpack.c.l.b16 %v2309
    %v3605 = vunpack.c.h.b16 %v2309
    %v3606 = vunpack.c.l.b16 %v2310
    %v3607 = vunpack.c.h.b16 %v2310
    %v3608 = vunpack.c.l.b16 %v2311
    %v3609 = vunpack.c.h.b16 %v2311
    %v3610 = vunpack.c.l.b16 %v2312
    %v3611 = vunpack.c.h.b16 %v2312
    %v3612 = vunpack.c.l.b16 %v2313
    %v3613 = vunpack.c.h.b16 %v2313
    %v3614 = vunpack.c.l.b16 %v2314
    %v3615 = vunpack.c.h.b16 %v2314
    %v3616 = vunpack.c.l.b16 %v2315
    %v3617 = vunpack.c.h.b16 %v2315
    %v3618 = vunpack.c.l.b16 %v2316
    %v3619 = vunpack.c.h.b16 %v2316
    %v3620 = vunpack.c.l.b16 %v2317
    %v3621 = vunpack.c.h.b16 %v2317
    %v3622 = vunpack.c.l.b16 %v2318
    %v3623 = vunpack.c.h.b16 %v2318
    %v3624 = vunpack.c.l.b16 %v2319
    %v3625 = vunpack.c.h.b16 %v2319
    %v3626 = vunpack.c.l.b16 %v2320
    %v3627 = vunpack.c.h.b16 %v2320
    %v3628 = vunpack.c.l.b16 %v2321
    %v3629 = vunpack.c.h.b16 %v2321
    %v3630 = vunpack.c.l.b16 %v2322
    %v3631 = vunpack.c.h.b16 %v2322
    %v3632 = vunpack.c.l.b16 %v2323
    %v3633 = vunpack.c.h.b16 %v2323
    %v3634 = vunpack.c.l.b16 %v2324
    %v3635 = vunpack.c.h.b16 %v2324
    %v3636 = vunpack.c.l.b16 %v2325
    %v3637 = vunpack.c.h.b16 %v2325
    %v3638 = vunpack.c.l.b16 %v2326
    %v3639 = vunpack.c.h.b16 %v2326
    %v3640 = vunpack.c.l.b16 %v2327
    %v3641 = vunpack.c.h.b16 %v2327
    %v3642 = vunpack.c.l.b16 %v2328
    %v3643 = vunpack.c.h.b16 %v2328
    %v3644 = vunpack.c.l.b16 %v2329
    %v3645 = vunpack.c.h.b16 %v2329
    %v3646 = vunpack.c.l.b16 %v2330
    %v3647 = vunpack.c.h.b16 %v2330
    %v3648 = vunpack.c.l.b16 %v2331
    %v3649 = vunpack.c.h.b16 %v2331
    %v3650 = vunpack.c.l.b16 %v2332
    %v3651 = vunpack.c.h.b16 %v2332
    %v3652 = vunpack.c.l.b16 %v2333
    %v3653 = vunpack.c.h.b16 %v2333
    %v3654 = vunpack.c.l.b16 %v2334
    %v3655 = vunpack.c.h.b16 %v2334
    %v3656 = vunpack.c.l.b16 %v2335
    %v3657 = vunpack.c.h.b16 %v2335
    %v3658 = vunpack.c.l.b16 %v2336
    %v3659 = vunpack.c.h.b16 %v2336
    %v3660 = vunpack.c.l.b16 %v2337
    %v3661 = vunpack.c.h.b16 %v2337
    %v3662 = vunpack.c.l.b16 %v2338
    %v3663 = vunpack.c.h.b16 %v2338
    %v3664 = vunpack.c.l.b16 %v2339
    %v3665 = vunpack.c.h.b16 %v2339
    %v3666 = vunpack.c.l.b16 %v2340
    %v3667 = vunpack.c.h.b16 %v2340
    %v3668 = vunpack.c.l.b16 %v2341
    %v3669 = vunpack.c.h.b16 %v2341
    %v3670 = vunpack.c.l.b16 %v2342
    %v3671 = vunpack.c.h.b16 %v2342
    %v3672 = vunpack.c.l.b16 %v2343
    %v3673 = vunpack.c.h.b16 %v2343
    %v3674 = vunpack.c.l.b16 %v2344
    %v3675 = vunpack.c.h.b16 %v2344
    %v3676 = vunpack.c.l.b16 %v2345
    %v3677 = vunpack.c.h.b16 %v2345
    %v3678 = vunpack.c.l.b16 %v2346
    %v3679 = vunpack.c.h.b16 %v2346
    %v3680 = vunpack.c.l.b16 %v2347
    %v3681 = vunpack.c.h.b16 %v2347
    %v3682 = vunpack.c.l.b16 %v2348
    %v3683 = vunpack.c.h.b16 %v2348
    %v3684 = vunpack.c.l.b16 %v2349
    %v3685 = vunpack.c.h.b16 %v2349
    %v3686 = vunpack.c.l.b16 %v2350
    %v3687 = vunpack.c.h.b16 %v2350
    %v3688 = vunpack.c.l.b16 %v2351
    %v3689 = vunpack.c.h.b16 %v2351
    %v3690 = vunpack.c.l.b16 %v2352
    %v3691 = vunpack.c.h.b16 %v2352
    %v3692 = vunpack.c.l.b16 %v2353
    %v3693 = vunpack.c.h.b16 %v2353
    %v3694 = vunpack.c.l.b16 %v2354
    %v3695 = vunpack.c.h.b16 %v2354
    %v3696 = vunpack.c.l.b16 %v2355
    %v3697 = vunpack.c.h.b16 %v2355
    %v3698 = vunpack.c.l.b16 %v2356
    %v3699 = vunpack.c.h.b16 %v2356
    %v3700 = vunpack.c.l.b16 %v2357
    %v3701 = vunpack.c.h.b16 %v2357
    %v3702 = vunpack.c.l.b16 %v2358
    %v3703 = vunpack.c.h.b16 %v2358
    %v3704 = vunpack.c.l.b16 %v2359
    %v3705 = vunpack.c.h.b16 %v2359
    %v3706 = vunpack.c.l.b16 %v2360
    %v3707 = vunpack.c.h.b16 %v2360
    %v3708 = vunpack.c.l.b16 %v2361
    %v3709 = vunpack.c.h.b16 %v2361
    %v3710 = vunpack.c.l.b16 %v2362
    %v3711 = vunpack.c.h.b16 %v2362
    %v3712 = vunpack.c.l.b16 %v2363
    %v3713 = vunpack.c.h.b16 %v2363
    %v3714 = vunpack.c.l.b16 %v2364
    %v3715 = vunpack.c.h.b16 %v2364
    %v3716 = vunpack.c.l.b16 %v2365
    %v3717 = vunpack.c.h.b16 %v2365
    %v3718 = vunpack.c.l.b16 %v2366
    %v3719 = vunpack.c.h.b16 %v2366
    %v3720 = vunpack.c.l.b16 %v2367
    %v3721 = vunpack.c.h.b16 %v2367
    %v3722 = vunpack.c.l.b16 %v2368
    %v3723 = vunpack.c.h.b16 %v2368
    %v3724 = vunpack.c.l.b16 %v2369
    %v3725 = vunpack.c.h.b16 %v2369
    %v3726 = vunpack.c.l.b16 %v2370
    %v3727 = vunpack.c.h.b16 %v2370
    %v3728 = vunpack.c.l.b16 %v2371
    %v3729 = vunpack.c.h.b16 %v2371
    %v3730 = vunpack.c.l.b16 %v2372
    %v3731 = vunpack.c.h.b16 %v2372
    %v3732 = vunpack.c.l.b16 %v2373
    %v3733 = vunpack.c.h.b16 %v2373
    %v3734 = vunpack.c.l.b16 %v2374
    %v3735 = vunpack.c.h.b16 %v2374
    %v3736 = vunpack.c.l.b16 %v2375
    %v3737 = vunpack.c.h.b16 %v2375
    %v3738 = vunpack.c.l.b16 %v2376
    %v3739 = vunpack.c.h.b16 %v2376
    %v3740 = vunpack.c.l.b16 %v2377
    %v3741 = vunpack.c.h.b16 %v2377
    %v3742 = vunpack.c.l.b16 %v2378
    %v3743 = vunpack.c.h.b16 %v2378
    %v3744 = vunpack.c.l.b16 %v2379
    %v3745 = vunpack.c.h.b16 %v2379
    %v3746 = vunpack.c.l.b16 %v2380
    %v3747 = vunpack.c.h.b16 %v2380
    %v3748 = vunpack.c.l.b16 %v2381
    %v3749 = vunpack.c.h.b16 %v2381
    %v3750 = vunpack.c.l.b16 %v2382
    %v3751 = vunpack.c.h.b16 %v2382
    %v3752 = vunpack.c.l.b16 %v2383
    %v3753 = vunpack.c.h.b16 %v2383
    %v3754 = vunpack.c.l.b16 %v2384
    %v3755 = vunpack.c.h.b16 %v2384
    %v3756 = vunpack.c.l.b16 %v2385
    %v3757 = vunpack.c.h.b16 %v2385
    %v3758 = vunpack.c.l.b16 %v2386
    %v3759 = vunpack.c.h.b16 %v2386
    %v3760 = vunpack.c.l.b16 %v2387
    %v3761 = vunpack.c.h.b16 %v2387
    %v3762 = vunpack.c.l.b16 %v2388
    %v3763 = vunpack.c.h.b16 %v2388
    %v3764 = vunpack.c.l.b16 %v2389
    %v3765 = vunpack.c.h.b16 %v2389
    %v3766 = vunpack.c.l.b16 %v2390
    %v3767 = vunpack.c.h.b16 %v2390
    %v3768 = vunpack.c.l.b16 %v2391
    %v3769 = vunpack.c.h.b16 %v2391
    %v3770 = vunpack.c.l.b16 %v2392
    %v3771 = vunpack.c.h.b16 %v2392
    %v3772 = vunpack.c.l.b16 %v2393
    %v3773 = vunpack.c.h.b16 %v2393
    %v3774 = vunpack.c.l.b16 %v2394
    %v3775 = vunpack.c.h.b16 %v2394
    %v3776 = vunpack.c.l.b16 %v2395
    %v3777 = vunpack.c.h.b16 %v2395
    %v3778 = vunpack.c.l.b16 %v2396
    %v3779 = vunpack.c.h.b16 %v2396
    %v3780 = vunpack.c.l.b16 %v2397
    %v3781 = vunpack.c.h.b16 %v2397
    %v3782 = vunpack.c.l.b16 %v2398
    %v3783 = vunpack.c.h.b16 %v2398
    %v3784 = vunpack.c.l.b16 %v2399
    %v3785 = vunpack.c.h.b16 %v2399
    %v3786 = vunpack.c.l.b16 %v2400
    %v3787 = vunpack.c.h.b16 %v2400
    %v3788 = vunpack.c.l.b16 %v2401
    %v3789 = vunpack.c.h.b16 %v2401
    %v3790 = vunpack.c.l.b16 %v2402
    %v3791 = vunpack.c.h.b16 %v2402
    %v3792 = vunpack.c.l.b16 %v2403
    %v3793 = vunpack.c.h.b16 %v2403
    %v3794 = vunpack.c.l.b16 %v2404
    %v3795 = vunpack.c.h.b16 %v2404
    %v3796 = vunpack.c.l.b16 %v2405
    %v3797 = vunpack.c.h.b16 %v2405
    %v3798 = vunpack.c.l.b16 %v2406
    %v3799 = vunpack.c.h.b16 %v2406
    %v3800 = vunpack.c.l.b16 %v2407
    %v3801 = vunpack.c.h.b16 %v2407
    %v3802 = vunpack.c.l.b16 %v2408
    %v3803 = vunpack.c.h.b16 %v2408
    %v3804 = vunpack.c.l.b16 %v2409
    %v3805 = vunpack.c.h.b16 %v2409
    %v3806 = vunpack.c.l.b16 %v2410
    %v3807 = vunpack.c.h.b16 %v2410
    %v3808 = vunpack.c.l.b16 %v2411
    %v3809 = vunpack.c.h.b16 %v2411
    %v3810 = vunpack.c.l.b16 %v2412
    %v3811 = vunpack.c.h.b16 %v2412
    %v3812 = vunpack.c.l.b16 %v2413
    %v3813 = vunpack.c.h.b16 %v2413
    %v3814 = vunpack.c.l.b16 %v2414
    %v3815 = vunpack.c.h.b16 %v2414
    %v3816 = vunpack.c.l.b16 %v2415
    %v3817 = vunpack.c.h.b16 %v2415
    %v3818 = vunpack.c.l.b16 %v2416
    %v3819 = vunpack.c.h.b16 %v2416
    %v3820 = vunpack.c.l.b16 %v2417
    %v3821 = vunpack.c.h.b16 %v2417
    %v3822 = vunpack.c.l.b16 %v2418
    %v3823 = vunpack.c.h.b16 %v2418
    %v3824 = vunpack.c.l.b16 %v2419
    %v3825 = vunpack.c.h.b16 %v2419
    %v3826 = vunpack.c.l.b16 %v2420
    %v3827 = vunpack.c.h.b16 %v2420
    %v3828 = vunpack.c.l.b16 %v2421
    %v3829 = vunpack.c.h.b16 %v2421
    %v3830 = vunpack.c.l.b16 %v2422
    %v3831 = vunpack.c.h.b16 %v2422
    %v3832 = vunpack.c.l.b16 %v2423
    %v3833 = vunpack.c.h.b16 %v2423
    %v3834 = vunpack.c.l.b16 %v2424
    %v3835 = vunpack.c.h.b16 %v2424
    %v3836 = vunpack.c.l.b16 %v2425
    %v3837 = vunpack.c.h.b16 %v2425
    %v3838 = vunpack.c.l.b16 %v2426
    %v3839 = vunpack.c.h.b16 %v2426
    %v3840 = vunpack.c.l.b16 %v2427
    %v3841 = vunpack.c.h.b16 %v2427
    %v3842 = vunpack.c.l.b16 %v2428
    %v3843 = vunpack.c.h.b16 %v2428
    %v3844 = vunpack.c.l.b16 %v2429
    %v3845 = vunpack.c.h.b16 %v2429
    %v3846 = vunpack.c.l.b16 %v2430
    %v3847 = vunpack.c.h.b16 %v2430
    %v3848 = vunpack.c.l.b16 %v2431
    %v3849 = vunpack.c.h.b16 %v2431
    %v3850 = vunpack.c.l.b16 %v2432
    %v3851 = vunpack.c.h.b16 %v2432
    %v3852 = vunpack.c.l.b16 %v2433
    %v3853 = vunpack.c.h.b16 %v2433
    %v3854 = vunpack.c.l.b16 %v2434
    %v3855 = vunpack.c.h.b16 %v2434
    %v3856 = vunpack.c.l.b16 %v2435
    %v3857 = vunpack.c.h.b16 %v2435
    %v3858 = vunpack.c.l.b16 %v2436
    %v3859 = vunpack.c.h.b16 %v2436
    %v3860 = vunpack.c.l.b16 %v2437
    %v3861 = vunpack.c.h.b16 %v2437
    %v3862 = vunpack.c.l.b16 %v2438
    %v3863 = vunpack.c.h.b16 %v2438
    %v3864 = vunpack.c.l.b16 %v2439
    %v3865 = vunpack.c.h.b16 %v2439
    %v3866 = vunpack.c.l.b16 %v2440
    %v3867 = vunpack.c.h.b16 %v2440
    %v3868 = vunpack.c.l.b16 %v2441
    %v3869 = vunpack.c.h.b16 %v2441
    %v3870 = vunpack.c.l.b16 %v2442
    %v3871 = vunpack.c.h.b16 %v2442
    %v3872 = vunpack.c.l.b16 %v2443
    %v3873 = vunpack.c.h.b16 %v2443
    %v3874 = vunpack.c.l.b16 %v2444
    %v3875 = vunpack.c.h.b16 %v2444
    %v3876 = vunpack.c.l.b16 %v2445
    %v3877 = vunpack.c.h.b16 %v2445
    %v3878 = vunpack.c.l.b16 %v2446
    %v3879 = vunpack.c.h.b16 %v2446
    %v3880 = vunpack.c.l.b16 %v2447
    %v3881 = vunpack.c.h.b16 %v2447
    %v3882 = vunpack.c.l.b16 %v2448
    %v3883 = vunpack.c.h.b16 %v2448
    %v3884 = vunpack.c.l.b16 %v2449
    %v3885 = vunpack.c.h.b16 %v2449
    %v3886 = vunpack.c.l.b16 %v2450
    %v3887 = vunpack.c.h.b16 %v2450
    %v3888 = vunpack.c.l.b16 %v2451
    %v3889 = vunpack.c.h.b16 %v2451
    %v3890 = vunpack.c.l.b16 %v2452
    %v3891 = vunpack.c.h.b16 %v2452
    %v3892 = vunpack.c.l.b16 %v2453
    %v3893 = vunpack.c.h.b16 %v2453
    %v3894 = vunpack.c.l.b16 %v2454
    %v3895 = vunpack.c.h.b16 %v2454
    %v3896 = vunpack.c.l.b16 %v2455
    %v3897 = vunpack.c.h.b16 %v2455
    %v3898 = vunpack.c.l.b16 %v2456
    %v3899 = vunpack.c.h.b16 %v2456
    %v3900 = vunpack.c.l.b16 %v2457
    %v3901 = vunpack.c.h.b16 %v2457
    %v3902 = vunpack.c.l.b16 %v2458
    %v3903 = vunpack.c.h.b16 %v2458
    %v3904 = vunpack.c.l.b16 %v2459
    %v3905 = vunpack.c.h.b16 %v2459
    %v3906 = vunpack.c.l.b16 %v2460
    %v3907 = vunpack.c.h.b16 %v2460
    %v3908 = vunpack.c.l.b16 %v2461
    %v3909 = vunpack.c.h.b16 %v2461
    %v3910 = vunpack.c.l.b16 %v2462
    %v3911 = vunpack.c.h.b16 %v2462
    %v3912 = vunpack.c.l.b16 %v2463
    %v3913 = vunpack.c.h.b16 %v2463
    %v3914 = vunpack.c.l.b16 %v2464
    %v3915 = vunpack.c.h.b16 %v2464
    %v3916 = vunpack.c.l.b16 %v2465
    %v3917 = vunpack.c.h.b16 %v2465
    %v3918 = vunpack.c.l.b16 %v2466
    %v3919 = vunpack.c.h.b16 %v2466
    %v3920 = vunpack.c.l.b16 %v2467
    %v3921 = vunpack.c.h.b16 %v2467
    %v3922 = vunpack.c.l.b16 %v2468
    %v3923 = vunpack.c.h.b16 %v2468
    %v3924 = vunpack.c.l.b16 %v2469
    %v3925 = vunpack.c.h.b16 %v2469
    %v3926 = vunpack.c.l.b16 %v2470
    %v3927 = vunpack.c.h.b16 %v2470
    %v3928 = vunpack.c.l.b16 %v2471
    %v3929 = vunpack.c.h.b16 %v2471
    %v3930 = vunpack.c.l.b16 %v2472
    %v3931 = vunpack.c.h.b16 %v2472
    %v3932 = vunpack.c.l.b16 %v2473
    %v3933 = vunpack.c.h.b16 %v2473
    %v3934 = vunpack.c.l.b16 %v2474
    %v3935 = vunpack.c.h.b16 %v2474
    %v3936 = vunpack.c.l.b16 %v2475
    %v3937 = vunpack.c.h.b16 %v2475
    %v3938 = vpack.c.b16 %v2982, %v2978
    %v3939 = vpack.c.b16 %v2983, %v2979
    %v3940 = vpack.c.b16 %v2984, %v2980
    %v3941 = vpack.c.b16 %v2985, %v2981
    %v3942 = vpack.c.b16 %v2990, %v2986
    %v3943 = vpack.c.b16 %v2991, %v2987
    %v3944 = vpack.c.b16 %v2992, %v2988
    %v3945 = vpack.c.b16 %v2993, %v2989
    %v3946 = vpack.c.b16 %v2998, %v2994
    %v3947 = vpack.c.b16 %v2999, %v2995
    %v3948 = vpack.c.b16 %v3000, %v2996
    %v3949 = vpack.c.b16 %v3001, %v2997
    %v3950 = vpack.c.b16 %v3006, %v3002
    %v3951 = vpack.c.b16 %v3007, %v3003
    %v3952 = vpack.c.b16 %v3008, %v3004
    %v3953 = vpack.c.b16 %v3009, %v3005
    %v3954 = vpack.c.b16 %v3014, %v3010
    %v3955 = vpack.c.b16 %v3015, %v3011
    %v3956 = vpack.c.b16 %v3016, %v3012
    %v3957 = vpack.c.b16 %v3017, %v3013
    %v3958 = vpack.c.b16 %v3022, %v3018
    %v3959 = vpack.c.b16 %v3023, %v3019
    %v3960 = vpack.c.b16 %v3024, %v3020
    %v3961 = vpack.c.b16 %v3025, %v3021
    %v3962 = vpack.c.b16 %v3030, %v3026
    %v3963 = vpack.c.b16 %v3031, %v3027
    %v3964 = vpack.c.b16 %v3032, %v3028
    %v3965 = vpack.c.b16 %v3033, %v3029
    %v3966 = vpack.c.b16 %v3038, %v3034
    %v3967 = vpack.c.b16 %v3039, %v3035
    %v3968 = vpack.c.b16 %v3040, %v3036
    %v3969 = vpack.c.b16 %v3041, %v3037
    %v3970 = vpack.c.b16 %v3046, %v3042
    %v3971 = vpack.c.b16 %v3047, %v3043
    %v3972 = vpack.c.b16 %v3048, %v3044
    %v3973 = vpack.c.b16 %v3049, %v3045
    %v3974 = vpack.c.b16 %v3054, %v3050
    %v3975 = vpack.c.b16 %v3055, %v3051
    %v3976 = vpack.c.b16 %v3056, %v3052
    %v3977 = vpack.c.b16 %v3057, %v3053
    %v3978 = vpack.c.b16 %v3062, %v3058
    %v3979 = vpack.c.b16 %v3063, %v3059
    %v3980 = vpack.c.b16 %v3064, %v3060
    %v3981 = vpack.c.b16 %v3065, %v3061
    %v3982 = vpack.c.b16 %v3070, %v3066
    %v3983 = vpack.c.b16 %v3071, %v3067
    %v3984 = vpack.c.b16 %v3072, %v3068
    %v3985 = vpack.c.b16 %v3073, %v3069
    %v3986 = vpack.c.b16 %v3078, %v3074
    %v3987 = vpack.c.b16 %v3079, %v3075
    %v3988 = vpack.c.b16 %v3080, %v3076
    %v3989 = vpack.c.b16 %v3081, %v3077
    %v3990 = vpack.c.b16 %v3086, %v3082
    %v3991 = vpack.c.b16 %v3087, %v3083
    %v3992 = vpack.c.b16 %v3088, %v3084
    %v3993 = vpack.c.b16 %v3089, %v3085
    %v3994 = vpack.c.b16 %v3094, %v3090
    %v3995 = vpack.c.b16 %v3095, %v3091
    %v3996 = vpack.c.b16 %v3096, %v3092
    %v3997 = vpack.c.b16 %v3097, %v3093
    %v3998 = vpack.c.b16 %v3102, %v3098
    %v3999 = vpack.c.b16 %v3103, %v3099
    %v4000 = vpack.c.b16 %v3104, %v3100
    %v4001 = vpack.c.b16 %v3105, %v3101
    %v4002 = vpack.c.b16 %v3110, %v3106
    %v4003 = vpack.c.b16 %v3111, %v3107
    %v4004 = vpack.c.b16 %v3112, %v3108
    %v4005 = vpack.c.b16 %v3113, %v3109
    %v4006 = vpack.c.b16 %v3118, %v3114
    %v4007 = vpack.c.b16 %v3119, %v3115
    %v4008 = vpack.c.b16 %v3120, %v3116
    %v4009 = vpack.c.b16 %v3121, %v3117
    %v4010 = vpack.c.b16 %v3126, %v3122
    %v4011 = vpack.c.b16 %v3127, %v3123
    %v4012 = vpack.c.b16 %v3128, %v3124
    %v4013 = vpack.c.b16 %v3129, %v3125
    %v4014 = vpack.c.b16 %v3134, %v3130
    %v4015 = vpack.c.b16 %v3135, %v3131
    %v4016 = vpack.c.b16 %v3136, %v3132
    %v4017 = vpack.c.b16 %v3137, %v3133
    %v4018 = vpack.c.b16 %v3142, %v3138
    %v4019 = vpack.c.b16 %v3143, %v3139
    %v4020 = vpack.c.b16 %v3144, %v3140
    %v4021 = vpack.c.b16 %v3145, %v3141
    %v4022 = vpack.c.b16 %v3150, %v3146
    %v4023 = vpack.c.b16 %v3151, %v3147
    %v4024 = vpack.c.b16 %v3152, %v3148
    %v4025 = vpack.c.b16 %v3153, %v3149
    %v4026 = vpack.c.b16 %v3158, %v3154
    %v4027 = vpack.c.b16 %v3159, %v3155
    %v4028 = vpack.c.b16 %v3160, %v3156
    %v4029 = vpack.c.b16 %v3161, %v3157
    %v4030 = vpack.c.b16 %v3166, %v3162
    %v4031 = vpack.c.b16 %v3167, %v3163
    %v4032 = vpack.c.b16 %v3168, %v3164
    %v4033 = vpack.c.b16 %v3169, %v3165
    %v4034 = vpack.c.b16 %v3174, %v3170
    %v4035 = vpack.c.b16 %v3175, %v3171
    %v4036 = vpack.c.b16 %v3176, %v3172
    %v4037 = vpack.c.b16 %v3177, %v3173
    %v4038 = vpack.c.b16 %v3182, %v3178
    %v4039 = vpack.c.b16 %v3183, %v3179
    %v4040 = vpack.c.b16 %v3184, %v3180
    %v4041 = vpack.c.b16 %v3185, %v3181
    %v4042 = vpack.c.b16 %v3190, %v3186
    %v4043 = vpack.c.b16 %v3191, %v3187
    %v4044 = vpack.c.b16 %v3192, %v3188
    %v4045 = vpack.c.b16 %v3193, %v3189
    %v4046 = vpack.c.b16 %v3198, %v3194
    %v4047 = vpack.c.b16 %v3199, %v3195
    %v4048 = vpack.c.b16 %v3200, %v3196
    %v4049 = vpack.c.b16 %v3201, %v3197
    %v4050 = vpack.c.b16 %v3206, %v3202
    %v4051 = vpack.c.b16 %v3207, %v3203
    %v4052 = vpack.c.b16 %v3208, %v3204
    %v4053 = vpack.c.b16 %v3209, %v3205
    %v4054 = vpack.c.b16 %v3214, %v3210
    %v4055 = vpack.c.b16 %v3215, %v3211
    %v4056 = vpack.c.b16 %v3216, %v3212
    %v4057 = vpack.c.b16 %v3217, %v3213
    %v4058 = vpack.c.b16 %v3222, %v3218
    %v4059 = vpack.c.b16 %v3223, %v3219
    %v4060 = vpack.c.b16 %v3224, %v3220
    %v4061 = vpack.c.b16 %v3225, %v3221
    %v4062 = vpack.c.b16 %v3230, %v3226
    %v4063 = vpack.c.b16 %v3231, %v3227
    %v4064 = vpack.c.b16 %v3232, %v3228
    %v4065 = vpack.c.b16 %v3233, %v3229
    %v4066 = vpack.c.b16 %v3238, %v3234
    %v4067 = vpack.c.b16 %v3239, %v3235
    %v4068 = vpack.c.b16 %v3240, %v3236
    %v4069 = vpack.c.b16 %v3241, %v3237
    %v4070 = vpack.c.b16 %v3246, %v3242
    %v4071 = vpack.c.b16 %v3247, %v3243
    %v4072 = vpack.c.b16 %v3248, %v3244
    %v4073 = vpack.c.b16 %v3249, %v3245
    %v4074 = vpack.c.b16 %v3254, %v3250
    %v4075 = vpack.c.b16 %v3255, %v3251
    %v4076 = vpack.c.b16 %v3256, %v3252
    %v4077 = vpack.c.b16 %v3257, %v3253
    %v4078 = vpack.c.b16 %v3262, %v3258
    %v4079 = vpack.c.b16 %v3263, %v3259
    %v4080 = vpack.c.b16 %v3264, %v3260
    %v4081 = vpack.c.b16 %v3265, %v3261
    %v4082 = vpack.c.b16 %v3270, %v3266
    %v4083 = vpack.c.b16 %v3271, %v3267
    %v4084 = vpack.c.b16 %v3272, %v3268
    %v4085 = vpack.c.b16 %v3273, %v3269
    %v4086 = vpack.c.b16 %v3278, %v3274
    %v4087 = vpack.c.b16 %v3279, %v3275
    %v4088 = vpack.c.b16 %v3280, %v3276
    %v4089 = vpack.c.b16 %v3281, %v3277
    %v4090 = vpack.c.b16 %v3286, %v3282
    %v4091 = vpack.c.b16 %v3287, %v3283
    %v4092 = vpack.c.b16 %v3288, %v3284
    %v4093 = vpack.c.b16 %v3289, %v3285
    %v4094 = vpack.c.b16 %v3294, %v3290
    %v4095 = vpack.c.b16 %v3295, %v3291
    %v4096 = vpack.c.b16 %v3296, %v3292
    %v4097 = vpack.c.b16 %v3297, %v3293
    %v4098 = vpack.c.b16 %v3302, %v3298
    %v4099 = vpack.c.b16 %v3303, %v3299
    %v4100 = vpack.c.b16 %v3304, %v3300
    %v4101 = vpack.c.b16 %v3305, %v3301
    %v4102 = vpack.c.b16 %v3310, %v3306
    %v4103 = vpack.c.b16 %v3311, %v3307
    %v4104 = vpack.c.b16 %v3312, %v3308
    %v4105 = vpack.c.b16 %v3313, %v3309
    %v4106 = vpack.c.b16 %v3318, %v3314
    %v4107 = vpack.c.b16 %v3319, %v3315
    %v4108 = vpack.c.b16 %v3320, %v3316
    %v4109 = vpack.c.b16 %v3321, %v3317
    %v4110 = vpack.c.b16 %v3326, %v3322
    %v4111 = vpack.c.b16 %v3327, %v3323
    %v4112 = vpack.c.b16 %v3328, %v3324
    %v4113 = vpack.c.b16 %v3329, %v3325
    %v4114 = vpack.c.b16 %v3334, %v3330
    %v4115 = vpack.c.b16 %v3335, %v3331
    %v4116 = vpack.c.b16 %v3336, %v3332
    %v4117 = vpack.c.b16 %v3337, %v3333
    %v4118 = vpack.c.b16 %v3342, %v3338
    %v4119 = vpack.c.b16 %v3343, %v3339
    %v4120 = vpack.c.b16 %v3344, %v3340
    %v4121 = vpack.c.b16 %v3345, %v3341
    %v4122 = vpack.c.b16 %v3350, %v3346
    %v4123 = vpack.c.b16 %v3351, %v3347
    %v4124 = vpack.c.b16 %v3352, %v3348
    %v4125 = vpack.c.b16 %v3353, %v3349
    %v4126 = vpack.c.b16 %v3358, %v3354
    %v4127 = vpack.c.b16 %v3359, %v3355
    %v4128 = vpack.c.b16 %v3360, %v3356
    %v4129 = vpack.c.b16 %v3361, %v3357
    %v4130 = vpack.c.b16 %v3366, %v3362
    %v4131 = vpack.c.b16 %v3367, %v3363
    %v4132 = vpack.c.b16 %v3368, %v3364
    %v4133 = vpack.c.b16 %v3369, %v3365
    %v4134 = vpack.c.b16 %v3374, %v3370
    %v4135 = vpack.c.b16 %v3375, %v3371
    %v4136 = vpack.c.b16 %v3376, %v3372
    %v4137 = vpack.c.b16 %v3377, %v3373
    %v4138 = vpack.c.b16 %v3382, %v3378
    %v4139 = vpack.c.b16 %v3383, %v3379
    %v4140 = vpack.c.b16 %v3384, %v3380
    %v4141 = vpack.c.b16 %v3385, %v3381
    %v4142 = vpack.c.b16 %v3390, %v3386
    %v4143 = vpack.c.b16 %v3391, %v3387
    %v4144 = vpack.c.b16 %v3392, %v3388
    %v4145 = vpack.c.b16 %v3393, %v3389
    %v4146 = vpack.c.b16 %v3398, %v3394
    %v4147 = vpack.c.b16 %v3399, %v3395
    %v4148 = vpack.c.b16 %v3400, %v3396
    %v4149 = vpack.c.b16 %v3401, %v3397
    %v4150 = vpack.c.b16 %v3406, %v3402
    %v4151 = vpack.c.b16 %v3407, %v3403
    %v4152 = vpack.c.b16 %v3408, %v3404
    %v4153 = vpack.c.b16 %v3409, %v3405
    %v4154 = vpack.c.b16 %v3414, %v3410
    %v4155 = vpack.c.b16 %v3415, %v3411
    %v4156 = vpack.c.b16 %v3416, %v3412
    %v4157 = vpack.c.b16 %v3417, %v3413
    %v4158 = vpack.c.b16 %v3422, %v3418
    %v4159 = vpack.c.b16 %v3423, %v3419
    %v4160 = vpack.c.b16 %v3424, %v3420
    %v4161 = vpack.c.b16 %v3425, %v3421
    %v4162 = vpack.c.b16 %v3430, %v3426
    %v4163 = vpack.c.b16 %v3431, %v3427
    %v4164 = vpack.c.b16 %v3432, %v3428
    %v4165 = vpack.c.b16 %v3433, %v3429
    %v4166 = vpack.c.b16 %v3438, %v3434
    %v4167 = vpack.c.b16 %v3439, %v3435
    %v4168 = vpack.c.b16 %v3440, %v3436
    %v4169 = vpack.c.b16 %v3441, %v3437
    %v4170 = vpack.c.b16 %v3446, %v3442
    %v4171 = vpack.c.b16 %v3447, %v3443
    %v4172 = vpack.c.b16 %v3448, %v3444
    %v4173 = vpack.c.b16 %v3449, %v3445
    %v4174 = vpack.c.b16 %v3454, %v3450
    %v4175 = vpack.c.b16 %v3455, %v3451
    %v4176 = vpack.c.b16 %v3456, %v3452
    %v4177 = vpack.c.b16 %v3457, %v3453
    %v4178 = vpack.c.b16 %v3462, %v3458
    %v4179 = vpack.c.b16 %v3463, %v3459
    %v4180 = vpack.c.b16 %v3464, %v3460
    %v4181 = vpack.c.b16 %v3465, %v3461
    %v4182 = vpack.c.b16 %v3470, %v3466
    %v4183 = vpack.c.b16 %v3471, %v3467
    %v4184 = vpack.c.b16 %v3472, %v3468
    %v4185 = vpack.c.b16 %v3473, %v3469
    %v4186 = vpack.c.b16 %v3478, %v3474
    %v4187 = vpack.c.b16 %v3479, %v3475
    %v4188 = vpack.c.b16 %v3480, %v3476
    %v4189 = vpack.c.b16 %v3481, %v3477
    %v4190 = vpack.c.b16 %v3486, %v3482
    %v4191 = vpack.c.b16 %v3487, %v3483
    %v4192 = vpack.c.b16 %v3488, %v3484
    %v4193 = vpack.c.b16 %v3489, %v3485
    %v4194 = vpack.c.b16 %v3494, %v3490
    %v4195 = vpack.c.b16 %v3495, %v3491
    %v4196 = vpack.c.b16 %v3496, %v3492
    %v4197 = vpack.c.b16 %v3497, %v3493
    %v4198 = vpack.c.b16 %v3502, %v3498
    %v4199 = vpack.c.b16 %v3503, %v3499
    %v4200 = vpack.c.b16 %v3504, %v3500
    %v4201 = vpack.c.b16 %v3505, %v3501
    %v4202 = vpack.c.b16 %v3510, %v3506
    %v4203 = vpack.c.b16 %v3511, %v3507
    %v4204 = vpack.c.b16 %v3512, %v3508
    %v4205 = vpack.c.b16 %v3513, %v3509
    %v4206 = vpack.c.b16 %v3518, %v3514
    %v4207 = vpack.c.b16 %v3519, %v3515
    %v4208 = vpack.c.b16 %v3520, %v3516
    %v4209 = vpack.c.b16 %v3521, %v3517
    %v4210 = vpack.c.b16 %v3526, %v3522
    %v4211 = vpack.c.b16 %v3527, %v3523
    %v4212 = vpack.c.b16 %v3528, %v3524
    %v4213 = vpack.c.b16 %v3529, %v3525
    %v4214 = vpack.c.b16 %v3534, %v3530
    %v4215 = vpack.c.b16 %v3535, %v3531
    %v4216 = vpack.c.b16 %v3536, %v3532
    %v4217 = vpack.c.b16 %v3537, %v3533
    %v4218 = vpack.c.b16 %v3542, %v3538
    %v4219 = vpack.c.b16 %v3543, %v3539
    %v4220 = vpack.c.b16 %v3544, %v3540
    %v4221 = vpack.c.b16 %v3545, %v3541
    %v4222 = vpack.c.b16 %v3550, %v3546
    %v4223 = vpack.c.b16 %v3551, %v3547
    %v4224 = vpack.c.b16 %v3552, %v3548
    %v4225 = vpack.c.b16 %v3553, %v3549
    %v4226 = vpack.c.b16 %v3558, %v3554
    %v4227 = vpack.c.b16 %v3559, %v3555
    %v4228 = vpack.c.b16 %v3560, %v3556
    %v4229 = vpack.c.b16 %v3561, %v3557
    %v4230 = vpack.c.b16 %v3566, %v3562
    %v4231 = vpack.c.b16 %v3567, %v3563
    %v4232 = vpack.c.b16 %v3568, %v3564
    %v4233 = vpack.c.b16 %v3569, %v3565
    %v4234 = vpack.c.b16 %v3574, %v3570
    %v4235 = vpack.c.b16 %v3575, %v3571
    %v4236 = vpack.c.b16 %v3576, %v3572
    %v4237 = vpack.c.b16 %v3577, %v3573
    %v4238 = vpack.c.b16 %v3582, %v3578
    %v4239 = vpack.c.b16 %v3583, %v3579
    %v4240 = vpack.c.b16 %v3584, %v3580
    %v4241 = vpack.c.b16 %v3585, %v3581
    %v4242 = vpack.c.b16 %v3590, %v3586
    %v4243 = vpack.c.b16 %v3591, %v3587
    %v4244 = vpack.c.b16 %v3592, %v3588
    %v4245 = vpack.c.b16 %v3593, %v3589
    %v4246 = vpack.c.b16 %v3598, %v3594
    %v4247 = vpack.c.b16 %v3599, %v3595
    %v4248 = vpack.c.b16 %v3600, %v3596
    %v4249 = vpack.c.b16 %v3601, %v3597
    %v4250 = vpack.c.b16 %v3606, %v3602
    %v4251 = vpack.c.b16 %v3607, %v3603
    %v4252 = vpack.c.b16 %v3608, %v3604
    %v4253 = vpack.c.b16 %v3609, %v3605
    %v4254 = vpack.c.b16 %v3614, %v3610
    %v4255 = vpack.c.b16 %v3615, %v3611
    %v4256 = vpack.c.b16 %v3616, %v3612
    %v4257 = vpack.c.b16 %v3617, %v3613
    %v4258 = vpack.c.b16 %v3622, %v3618
    %v4259 = vpack.c.b16 %v3623, %v3619
    %v4260 = vpack.c.b16 %v3624, %v3620
    %v4261 = vpack.c.b16 %v3625, %v3621
    %v4262 = vpack.c.b16 %v3630, %v3626
    %v4263 = vpack.c.b16 %v3631, %v3627
    %v4264 = vpack.c.b16 %v3632, %v3628
    %v4265 = vpack.c.b16 %v3633, %v3629
    %v4266 = vpack.c.b16 %v3638, %v3634
    %v4267 = vpack.c.b16 %v3639, %v3635
    %v4268 = vpack.c.b16 %v3640, %v3636
    %v4269 = vpack.c.b16 %v3641, %v3637
    %v4270 = vpack.c.b16 %v3646, %v3642
    %v4271 = vpack.c.b16 %v3647, %v3643
    %v4272 = vpack.c.b16 %v3648, %v3644
    %v4273 = vpack.c.b16 %v3649, %v3645
    %v4274 = vpack.c.b16 %v3654, %v3650
    %v4275 = vpack.c.b16 %v3655, %v3651
    %v4276 = vpack.c.b16 %v3656, %v3652
    %v4277 = vpack.c.b16 %v3657, %v3653
    %v4278 = vpack.c.b16 %v3662, %v3658
    %v4279 = vpack.c.b16 %v3663, %v3659
    %v4280 = vpack.c.b16 %v3664, %v3660
    %v4281 = vpack.c.b16 %v3665, %v3661
    %v4282 = vpack.c.b16 %v3670, %v3666
    %v4283 = vpack.c.b16 %v3671, %v3667
    %v4284 = vpack.c.b16 %v3672, %v3668
    %v4285 = vpack.c.b16 %v3673, %v3669
    %v4286 = vpack.c.b16 %v3678, %v3674
    %v4287 = vpack.c.b16 %v3679, %v3675
    %v4288 = vpack.c.b16 %v3680, %v3676
    %v4289 = vpack.c.b16 %v3681, %v3677
    %v4290 = vpack.c.b16 %v3686, %v3682
    %v4291 = vpack.c.b16 %v3687, %v3683
    %v4292 = vpack.c.b16 %v3688, %v3684
    %v4293 = vpack.c.b16 %v3689, %v3685
    %v4294 = vpack.c.b16 %v3694, %v3690
    %v4295 = vpack.c.b16 %v3695, %v3691
    %v4296 = vpack.c.b16 %v3696, %v3692
    %v4297 = vpack.c.b16 %v3697, %v3693
    %v4298 = vpack.c.b16 %v3702, %v3698
    %v4299 = vpack.c.b16 %v3703, %v3699
    %v4300 = vpack.c.b16 %v3704, %v3700
    %v4301 = vpack.c.b16 %v3705, %v3701
    %v4302 = vpack.c.b16 %v3710, %v3706
    %v4303 = vpack.c.b16 %v3711, %v3707
    %v4304 = vpack.c.b16 %v3712, %v3708
    %v4305 = vpack.c.b16 %v3713, %v3709
    %v4306 = vpack.c.b16 %v3718, %v3714
    %v4307 = vpack.c.b16 %v3719, %v3715
    %v4308 = vpack.c.b16 %v3720, %v3716
    %v4309 = vpack.c.b16 %v3721, %v3717
    %v4310 = vpack.c.b16 %v3726, %v3722
    %v4311 = vpack.c.b16 %v3727, %v3723
    %v4312 = vpack.c.b16 %v3728, %v3724
    %v4313 = vpack.c.b16 %v3729, %v3725
    %v4314 = vpack.c.b16 %v3734, %v3730
    %v4315 = vpack.c.b16 %v3735, %v3731
    %v4316 = vpack.c.b16 %v3736, %v3732
    %v4317 = vpack.c.b16 %v3737, %v3733
    %v4318 = vpack.c.b16 %v3742, %v3738
    %v4319 = vpack.c.b16 %v3743, %v3739
    %v4320 = vpack.c.b16 %v3744, %v3740
    %v4321 = vpack.c.b16 %v3745, %v3741
    %v4322 = vpack.c.b16 %v3750, %v3746
    %v4323 = vpack.c.b16 %v3751, %v3747
    %v4324 = vpack.c.b16 %v3752, %v3748
    %v4325 = vpack.c.b16 %v3753, %v3749
    %v4326 = vpack.c.b16 %v3758, %v3754
    %v4327 = vpack.c.b16 %v3759, %v3755
    %v4328 = vpack.c.b16 %v3760, %v3756
    %v4329 = vpack.c.b16 %v3761, %v3757
    %v4330 = vpack.c.b16 %v3766, %v3762
    %v4331 = vpack.c.b16 %v3767, %v3763
    %v4332 = vpack.c.b16 %v3768, %v3764
    %v4333 = vpack.c.b16 %v3769, %v3765
    %v4334 = vpack.c.b16 %v3774, %v3770
    %v4335 = vpack.c.b16 %v3775, %v3771
    %v4336 = vpack.c.b16 %v3776, %v3772
    %v4337 = vpack.c.b16 %v3777, %v3773
    %v4338 = vpack.c.b16 %v3782, %v3778
    %v4339 = vpack.c.b16 %v3783, %v3779
    %v4340 = vpack.c.b16 %v3784, %v3780
    %v4341 = vpack.c.b16 %v3785, %v3781
    %v4342 = vpack.c.b16 %v3790, %v3786
    %v4343 = vpack.c.b16 %v3791, %v3787
    %v4344 = vpack.c.b16 %v3792, %v3788
    %v4345 = vpack.c.b16 %v3793, %v3789
    %v4346 = vpack.c.b16 %v3798, %v3794
    %v4347 = vpack.c.b16 %v3799, %v3795
    %v4348 = vpack.c.b16 %v3800, %v3796
    %v4349 = vpack.c.b16 %v3801, %v3797
    %v4350 = vpack.c.b16 %v3806, %v3802
    %v4351 = vpack.c.b16 %v3807, %v3803
    %v4352 = vpack.c.b16 %v3808, %v3804
    %v4353 = vpack.c.b16 %v3809, %v3805
    %v4354 = vpack.c.b16 %v3814, %v3810
    %v4355 = vpack.c.b16 %v3815, %v3811
    %v4356 = vpack.c.b16 %v3816, %v3812
    %v4357 = vpack.c.b16 %v3817, %v3813
    %v4358 = vpack.c.b16 %v3822, %v3818
    %v4359 = vpack.c.b16 %v3823, %v3819
    %v4360 = vpack.c.b16 %v3824, %v3820
    %v4361 = vpack.c.b16 %v3825, %v3821
    %v4362 = vpack.c.b16 %v3830, %v3826
    %v4363 = vpack.c.b16 %v3831, %v3827
    %v4364 = vpack.c.b16 %v3832, %v3828
    %v4365 = vpack.c.b16 %v3833, %v3829
    %v4366 = vpack.c.b16 %v3838, %v3834
    %v4367 = vpack.c.b16 %v3839, %v3835
    %v4368 = vpack.c.b16 %v3840, %v3836
    %v4369 = vpack.c.b16 %v3841, %v3837
    %v4370 = vpack.c.b16 %v3846, %v3842
    %v4371 = vpack.c.b16 %v3847, %v3843
    %v4372 = vpack.c.b16 %v3848, %v3844
    %v4373 = vpack.c.b16 %v3849, %v3845
    %v4374 = vpack.c.b16 %v3854, %v3850
    %v4375 = vpack.c.b16 %v3855, %v3851
    %v4376 = vpack.c.b16 %v3856, %v3852
    %v4377 = vpack.c.b16 %v3857, %v3853
    %v4378 = vpack.c.b16 %v3862, %v3858
    %v4379 = vpack.c.b16 %v3863, %v3859
    %v4380 = vpack.c.b16 %v3864, %v3860
    %v4381 = vpack.c.b16 %v3865, %v3861
    %v4382 = vpack.c.b16 %v3870, %v3866
    %v4383 = vpack.c.b16 %v3871, %v3867
    %v4384 = vpack.c.b16 %v3872, %v3868
    %v4385 = vpack.c.b16 %v3873, %v3869
    %v4386 = vpack.c.b16 %v3878, %v3874
    %v4387 = vpack.c.b16 %v3879, %v3875
    %v4388 = vpack.c.b16 %v3880, %v3876
    %v4389 = vpack.c.b16 %v3881, %v3877
    %v4390 = vpack.c.b16 %v3886, %v3882
    %v4391 = vpack.c.b16 %v3887, %v3883
    %v4392 = vpack.c.b16 %v3888, %v3884
    %v4393 = vpack.c.b16 %v3889, %v3885
    %v4394 = vpack.c.b16 %v3894, %v3890
    %v4395 = vpack.c.b16 %v3895, %v3891
    %v4396 = vpack.c.b16 %v3896, %v3892
    %v4397 = vpack.c.b16 %v3897, %v3893
    %v4398 = vpack.c.b16 %v3902, %v3898
    %v4399 = vpack.c.b16 %v3903, %v3899
    %v4400 = vpack.c.b16 %v3904, %v3900
    %v4401 = vpack.c.b16 %v3905, %v3901
    %v4402 = vpack.c.b16 %v3910, %v3906
    %v4403 = vpack.c.b16 %v3911, %v3907
    %v4404 = vpack.c.b16 %v3912, %v3908
    %v4405 = vpack.c.b16 %v3913, %v3909
    %v4406 = vpack.c.b16 %v3918, %v3914
    %v4407 = vpack.c.b16 %v3919, %v3915
    %v4408 = vpack.c.b16 %v3920, %v3916
    %v4409 = vpack.c.b16 %v3921, %v3917
    %v4410 = vpack.c.b16 %v3926, %v3922
    %v4411 = vpack.c.b16 %v3927, %v3923
    %v4412 = vpack.c.b16 %v3928, %v3924
    %v4413 = vpack.c.b16 %v3929, %v3925
    %v4414 = vpack.c.b16 %v3934, %v3930
    %v4415 = vpack.c.b16 %v3935, %v3931
    %v4416 = vpack.c.b16 %v3936, %v3932
    %v4417 = vpack.c.b16 %v3937, %v3933
    %4898 = vmatprep.subr.bf16.mxu0 %v3967
    %4899 = vmatpush1.bf16.msra.mxu0 %v3966
    %4900 = vmatprep.subr.bf16.mxu0 %v3963
    %4901 = vmatpush1.bf16.msra.mxu0 %v3962
    %4902 = vmatprep.subr.bf16.mxu0 %v3959
    %4903 = vmatpush1.bf16.msra.mxu0 %v3958
    %4904 = vmatprep.subr.bf16.mxu0 %v3955
    %4905 = vmatpush1.bf16.msra.mxu0 %v3954
    %4906 = vmatprep.subr.bf16.mxu0 %v3951
    %4907 = vmatpush1.bf16.msra.mxu0 %v3950
    %4908 = vmatprep.subr.bf16.mxu0 %v3947
    %4909 = vmatpush1.bf16.msra.mxu0 %v3946
    %4910 = vmatprep.subr.bf16.mxu0 %v3943
    %4911 = vmatpush1.bf16.msra.mxu0 %v3942
    %4912 = vmatprep.subr.bf16.mxu0 %v3939
    %4913 = vmatpush1.bf16.msra.mxu0 %v3938
    %4914 = vmatprep.subr.bf16.mxu0 %v3999
    %4915 = vmatpush2.bf16.msra.mxu0 %v3998
    %4916 = vmatprep.subr.bf16.mxu0 %v3995
    %4917 = vmatpush2.bf16.msra.mxu0 %v3994
    %4918 = vmatprep.subr.bf16.mxu0 %v3991
    %4919 = vmatpush2.bf16.msra.mxu0 %v3990
    %4920 = vmatprep.subr.bf16.mxu0 %v3987
    %4921 = vmatpush2.bf16.msra.mxu0 %v3986
    %4922 = vmatprep.subr.bf16.mxu0 %v3983
    %4923 = vmatpush2.bf16.msra.mxu0 %v3982
    %4924 = vmatprep.subr.bf16.mxu0 %v3979
    %4925 = vmatpush2.bf16.msra.mxu0 %v3978
    %4926 = vmatprep.subr.bf16.mxu0 %v3975
    %4927 = vmatpush2.bf16.msra.mxu0 %v3974
    %4928 = vmatprep.subr.bf16.mxu0 %v3971
    %4929 = vmatpush2.bf16.msra.mxu0 %v3970
    %4930 = vmatprep.mubr.bf16.mxu0 %v1982
    %4931 = vmatmul.mubr.bf16.gmra.mxu0 %v1981
    %v4932 = vpop.f32.mrf.mxu0
    %v4933 = vadd.f32 %v2481, %v4932
    %v4934 = vpop.f32.mrf.mxu0
    %v4935 = vadd.f32 %v2485, %v4934
    %v4936 = vpop.f32.mrf.mxu0
    %v4937 = vpop.f32.mrf.mxu0
    %4938 = vdwg.mxu0
    %4939 = vmatprep.subr.bf16.mxu0 %v4031
    %4940 = vmatpush1.bf16.msra.mxu0 %v4030
    %4941 = vmatprep.subr.bf16.mxu0 %v4027
    %4942 = vmatpush1.bf16.msra.mxu0 %v4026
    %4943 = vmatprep.subr.bf16.mxu0 %v4023
    %4944 = vmatpush1.bf16.msra.mxu0 %v4022
    %4945 = vmatprep.subr.bf16.mxu0 %v4019
    %4946 = vmatpush1.bf16.msra.mxu0 %v4018
    %4947 = vmatprep.subr.bf16.mxu0 %v4015
    %4948 = vmatpush1.bf16.msra.mxu0 %v4014
    %4949 = vmatprep.subr.bf16.mxu0 %v4011
    %4950 = vmatpush1.bf16.msra.mxu0 %v4010
    %4951 = vmatprep.subr.bf16.mxu0 %v4007
    %4952 = vmatpush1.bf16.msra.mxu0 %v4006
    %4953 = vmatprep.subr.bf16.mxu0 %v4003
    %4954 = vmatpush1.bf16.msra.mxu0 %v4002
    %4955 = vmatprep.subr.bf16.mxu0 %v4063
    %4956 = vmatpush2.bf16.msra.mxu0 %v4062
    %4957 = vmatprep.subr.bf16.mxu0 %v4059
    %4958 = vmatpush2.bf16.msra.mxu0 %v4058
    %4959 = vmatprep.subr.bf16.mxu0 %v4055
    %4960 = vmatpush2.bf16.msra.mxu0 %v4054
    %4961 = vmatprep.subr.bf16.mxu0 %v4051
    %4962 = vmatpush2.bf16.msra.mxu0 %v4050
    %4963 = vmatprep.subr.bf16.mxu0 %v4047
    %4964 = vmatpush2.bf16.msra.mxu0 %v4046
    %4965 = vmatprep.subr.bf16.mxu0 %v4043
    %4966 = vmatpush2.bf16.msra.mxu0 %v4042
    %4967 = vmatprep.subr.bf16.mxu0 %v4039
    %4968 = vmatpush2.bf16.msra.mxu0 %v4038
    %4969 = vmatprep.subr.bf16.mxu0 %v4035
    %4970 = vmatpush2.bf16.msra.mxu0 %v4034
    %4971 = vmatprep.mubr.bf16.mxu0 %v1984
    %4972 = vmatmul.mubr.bf16.gmra.mxu0 %v1983
    %v4973 = vpop.f32.mrf.mxu0
    %v4974 = vadd.f32 %v4933, %v4973
    %v4975 = vpop.f32.mrf.mxu0
    %v4976 = vadd.f32 %v4935, %v4975
    %v4977 = vpop.f32.mrf.mxu0
    %v4978 = vpop.f32.mrf.mxu0
    %4979 = vdwg.mxu0
    %4980 = vmatprep.subr.bf16.mxu0 %v4095
    %4981 = vmatpush1.bf16.msra.mxu0 %v4094
    %4982 = vmatprep.subr.bf16.mxu0 %v4091
    %4983 = vmatpush1.bf16.msra.mxu0 %v4090
    %4984 = vmatprep.subr.bf16.mxu0 %v4087
    %4985 = vmatpush1.bf16.msra.mxu0 %v4086
    %4986 = vmatprep.subr.bf16.mxu0 %v4083
    %4987 = vmatpush1.bf16.msra.mxu0 %v4082
    %4988 = vmatprep.subr.bf16.mxu0 %v4079
    %4989 = vmatpush1.bf16.msra.mxu0 %v4078
    %4990 = vmatprep.subr.bf16.mxu0 %v4075
    %4991 = vmatpush1.bf16.msra.mxu0 %v4074
    %4992 = vmatprep.subr.bf16.mxu0 %v4071
    %4993 = vmatpush1.bf16.msra.mxu0 %v4070
    %4994 = vmatprep.subr.bf16.mxu0 %v4067
    %4995 = vmatpush1.bf16.msra.mxu0 %v4066
    %4996 = vmatprep.subr.bf16.mxu0 %v4127
    %4997 = vmatpush2.bf16.msra.mxu0 %v4126
    %4998 = vmatprep.subr.bf16.mxu0 %v4123
    %4999 = vmatpush2.bf16.msra.mxu0 %v4122
    %5000 = vmatprep.subr.bf16.mxu0 %v4119
    %5001 = vmatpush2.bf16.msra.mxu0 %v4118
    %5002 = vmatprep.subr.bf16.mxu0 %v4115
    %5003 = vmatpush2.bf16.msra.mxu0 %v4114
    %5004 = vmatprep.subr.bf16.mxu0 %v4111
    %5005 = vmatpush2.bf16.msra.mxu0 %v4110
    %5006 = vmatprep.subr.bf16.mxu0 %v4107
    %5007 = vmatpush2.bf16.msra.mxu0 %v4106
    %5008 = vmatprep.subr.bf16.mxu0 %v4103
    %5009 = vmatpush2.bf16.msra.mxu0 %v4102
    %5010 = vmatprep.subr.bf16.mxu0 %v4099
    %5011 = vmatpush2.bf16.msra.mxu0 %v4098
    %5012 = vmatprep.mubr.bf16.mxu0 %v1986
    %5013 = vmatmul.mubr.bf16.gmra.mxu0 %v1985
    %v5014 = vpop.f32.mrf.mxu0
    %v5015 = vadd.f32 %v4974, %v5014
    %v5016 = vpop.f32.mrf.mxu0
    %v5017 = vadd.f32 %v4976, %v5016
    %v5018 = vpop.f32.mrf.mxu0
    %v5019 = vpop.f32.mrf.mxu0
    %5020 = vdwg.mxu0
    %5021 = vmatprep.subr.bf16.mxu0 %v4159
    %5022 = vmatpush1.bf16.msra.mxu0 %v4158
    %5023 = vmatprep.subr.bf16.mxu0 %v4155
    %5024 = vmatpush1.bf16.msra.mxu0 %v4154
    %5025 = vmatprep.subr.bf16.mxu0 %v4151
    %5026 = vmatpush1.bf16.msra.mxu0 %v4150
    %5027 = vmatprep.subr.bf16.mxu0 %v4147
    %5028 = vmatpush1.bf16.msra.mxu0 %v4146
    %5029 = vmatprep.subr.bf16.mxu0 %v4143
    %5030 = vmatpush1.bf16.msra.mxu0 %v4142
    %5031 = vmatprep.subr.bf16.mxu0 %v4139
    %5032 = vmatpush1.bf16.msra.mxu0 %v4138
    %5033 = vmatprep.subr.bf16.mxu0 %v4135
    %5034 = vmatpush1.bf16.msra.mxu0 %v4134
    %5035 = vmatprep.subr.bf16.mxu0 %v4131
    %5036 = vmatpush1.bf16.msra.mxu0 %v4130
    %5037 = vmatprep.subr.bf16.mxu0 %v4191
    %5038 = vmatpush2.bf16.msra.mxu0 %v4190
    %5039 = vmatprep.subr.bf16.mxu0 %v4187
    %5040 = vmatpush2.bf16.msra.mxu0 %v4186
    %5041 = vmatprep.subr.bf16.mxu0 %v4183
    %5042 = vmatpush2.bf16.msra.mxu0 %v4182
    %5043 = vmatprep.subr.bf16.mxu0 %v4179
    %5044 = vmatpush2.bf16.msra.mxu0 %v4178
    %5045 = vmatprep.subr.bf16.mxu0 %v4175
    %5046 = vmatpush2.bf16.msra.mxu0 %v4174
    %5047 = vmatprep.subr.bf16.mxu0 %v4171
    %5048 = vmatpush2.bf16.msra.mxu0 %v4170
    %5049 = vmatprep.subr.bf16.mxu0 %v4167
    %5050 = vmatpush2.bf16.msra.mxu0 %v4166
    %5051 = vmatprep.subr.bf16.mxu0 %v4163
    %5052 = vmatpush2.bf16.msra.mxu0 %v4162
    %5053 = vmatprep.mubr.bf16.mxu0 %v1988
    %5054 = vmatmul.mubr.bf16.gmra.mxu0 %v1987
    %v5055 = vpop.f32.mrf.mxu0
    %v5056 = vadd.f32 %v5015, %v5055
    %v5057 = vpop.f32.mrf.mxu0
    %v5058 = vadd.f32 %v5017, %v5057
    %v5059 = vpop.f32.mrf.mxu0
    %v5060 = vpop.f32.mrf.mxu0
    %5061 = vdwg.mxu0
    %5062 = vmatprep.subr.bf16.mxu0 %v4223
    %5063 = vmatpush1.bf16.msra.mxu0 %v4222
    %5064 = vmatprep.subr.bf16.mxu0 %v4219
    %5065 = vmatpush1.bf16.msra.mxu0 %v4218
    %5066 = vmatprep.subr.bf16.mxu0 %v4215
    %5067 = vmatpush1.bf16.msra.mxu0 %v4214
    %5068 = vmatprep.subr.bf16.mxu0 %v4211
    %5069 = vmatpush1.bf16.msra.mxu0 %v4210
    %5070 = vmatprep.subr.bf16.mxu0 %v4207
    %5071 = vmatpush1.bf16.msra.mxu0 %v4206
    %5072 = vmatprep.subr.bf16.mxu0 %v4203
    %5073 = vmatpush1.bf16.msra.mxu0 %v4202
    %5074 = vmatprep.subr.bf16.mxu0 %v4199
    %5075 = vmatpush1.bf16.msra.mxu0 %v4198
    %5076 = vmatprep.subr.bf16.mxu0 %v4195
    %5077 = vmatpush1.bf16.msra.mxu0 %v4194
    %5078 = vmatprep.subr.bf16.mxu0 %v4255
    %5079 = vmatpush2.bf16.msra.mxu0 %v4254
    %5080 = vmatprep.subr.bf16.mxu0 %v4251
    %5081 = vmatpush2.bf16.msra.mxu0 %v4250
    %5082 = vmatprep.subr.bf16.mxu0 %v4247
    %5083 = vmatpush2.bf16.msra.mxu0 %v4246
    %5084 = vmatprep.subr.bf16.mxu0 %v4243
    %5085 = vmatpush2.bf16.msra.mxu0 %v4242
    %5086 = vmatprep.subr.bf16.mxu0 %v4239
    %5087 = vmatpush2.bf16.msra.mxu0 %v4238
    %5088 = vmatprep.subr.bf16.mxu0 %v4235
    %5089 = vmatpush2.bf16.msra.mxu0 %v4234
    %5090 = vmatprep.subr.bf16.mxu0 %v4231
    %5091 = vmatpush2.bf16.msra.mxu0 %v4230
    %5092 = vmatprep.subr.bf16.mxu0 %v4227
    %5093 = vmatpush2.bf16.msra.mxu0 %v4226
    %5094 = vmatprep.mubr.bf16.mxu0 %v1990
    %5095 = vmatmul.mubr.bf16.gmra.mxu0 %v1989
    %v5096 = vpop.f32.mrf.mxu0
    %v5097 = vadd.f32 %v5056, %v5096
    %v5098 = vpop.f32.mrf.mxu0
    %v5099 = vadd.f32 %v5058, %v5098
    %v5100 = vpop.f32.mrf.mxu0
    %v5101 = vpop.f32.mrf.mxu0
    %5102 = vdwg.mxu0
    %5103 = vmatprep.subr.bf16.mxu0 %v4287
    %5104 = vmatpush1.bf16.msra.mxu0 %v4286
    %5105 = vmatprep.subr.bf16.mxu0 %v4283
    %5106 = vmatpush1.bf16.msra.mxu0 %v4282
    %5107 = vmatprep.subr.bf16.mxu0 %v4279
    %5108 = vmatpush1.bf16.msra.mxu0 %v4278
    %5109 = vmatprep.subr.bf16.mxu0 %v4275
    %5110 = vmatpush1.bf16.msra.mxu0 %v4274
    %5111 = vmatprep.subr.bf16.mxu0 %v4271
    %5112 = vmatpush1.bf16.msra.mxu0 %v4270
    %5113 = vmatprep.subr.bf16.mxu0 %v4267
    %5114 = vmatpush1.bf16.msra.mxu0 %v4266
    %5115 = vmatprep.subr.bf16.mxu0 %v4263
    %5116 = vmatpush1.bf16.msra.mxu0 %v4262
    %5117 = vmatprep.subr.bf16.mxu0 %v4259
    %5118 = vmatpush1.bf16.msra.mxu0 %v4258
    %5119 = vmatprep.subr.bf16.mxu0 %v4319
    %5120 = vmatpush2.bf16.msra.mxu0 %v4318
    %5121 = vmatprep.subr.bf16.mxu0 %v4315
    %5122 = vmatpush2.bf16.msra.mxu0 %v4314
    %5123 = vmatprep.subr.bf16.mxu0 %v4311
    %5124 = vmatpush2.bf16.msra.mxu0 %v4310
    %5125 = vmatprep.subr.bf16.mxu0 %v4307
    %5126 = vmatpush2.bf16.msra.mxu0 %v4306
    %5127 = vmatprep.subr.bf16.mxu0 %v4303
    %5128 = vmatpush2.bf16.msra.mxu0 %v4302
    %5129 = vmatprep.subr.bf16.mxu0 %v4299
    %5130 = vmatpush2.bf16.msra.mxu0 %v4298
    %5131 = vmatprep.subr.bf16.mxu0 %v4295
    %5132 = vmatpush2.bf16.msra.mxu0 %v4294
    %5133 = vmatprep.subr.bf16.mxu0 %v4291
    %5134 = vmatpush2.bf16.msra.mxu0 %v4290
    %5135 = vmatprep.mubr.bf16.mxu0 %v1992
    %5136 = vmatmul.mubr.bf16.gmra.mxu0 %v1991
    %v5137 = vpop.f32.mrf.mxu0
    %v5138 = vadd.f32 %v5097, %v5137
    %v5139 = vpop.f32.mrf.mxu0
    %v5140 = vadd.f32 %v5099, %v5139
    %v5141 = vpop.f32.mrf.mxu0
    %v5142 = vpop.f32.mrf.mxu0
    %5143 = vdwg.mxu0
    %5144 = vmatprep.subr.bf16.mxu0 %v4351
    %5145 = vmatpush1.bf16.msra.mxu0 %v4350
    %5146 = vmatprep.subr.bf16.mxu0 %v4347
    %5147 = vmatpush1.bf16.msra.mxu0 %v4346
    %5148 = vmatprep.subr.bf16.mxu0 %v4343
    %5149 = vmatpush1.bf16.msra.mxu0 %v4342
    %5150 = vmatprep.subr.bf16.mxu0 %v4339
    %5151 = vmatpush1.bf16.msra.mxu0 %v4338
    %5152 = vmatprep.subr.bf16.mxu0 %v4335
    %5153 = vmatpush1.bf16.msra.mxu0 %v4334
    %5154 = vmatprep.subr.bf16.mxu0 %v4331
    %5155 = vmatpush1.bf16.msra.mxu0 %v4330
    %5156 = vmatprep.subr.bf16.mxu0 %v4327
    %5157 = vmatpush1.bf16.msra.mxu0 %v4326
    %5158 = vmatprep.subr.bf16.mxu0 %v4323
    %5159 = vmatpush1.bf16.msra.mxu0 %v4322
    %5160 = vmatprep.subr.bf16.mxu0 %v4383
    %5161 = vmatpush2.bf16.msra.mxu0 %v4382
    %5162 = vmatprep.subr.bf16.mxu0 %v4379
    %5163 = vmatpush2.bf16.msra.mxu0 %v4378
    %5164 = vmatprep.subr.bf16.mxu0 %v4375
    %5165 = vmatpush2.bf16.msra.mxu0 %v4374
    %5166 = vmatprep.subr.bf16.mxu0 %v4371
    %5167 = vmatpush2.bf16.msra.mxu0 %v4370
    %5168 = vmatprep.subr.bf16.mxu0 %v4367
    %5169 = vmatpush2.bf16.msra.mxu0 %v4366
    %5170 = vmatprep.subr.bf16.mxu0 %v4363
    %5171 = vmatpush2.bf16.msra.mxu0 %v4362
    %5172 = vmatprep.subr.bf16.mxu0 %v4359
    %5173 = vmatpush2.bf16.msra.mxu0 %v4358
    %5174 = vmatprep.subr.bf16.mxu0 %v4355
    %5175 = vmatpush2.bf16.msra.mxu0 %v4354
    %5176 = vmatprep.mubr.bf16.mxu0 %v1994
    %5177 = vmatmul.mubr.bf16.gmra.mxu0 %v1993
    %v5178 = vpop.f32.mrf.mxu0
    %v5179 = vadd.f32 %v5138, %v5178
    %v5180 = vpop.f32.mrf.mxu0
    %v5181 = vadd.f32 %v5140, %v5180
    %v5182 = vpop.f32.mrf.mxu0
    %v5183 = vpop.f32.mrf.mxu0
    %5184 = vdwg.mxu0
    %5185 = vmatprep.subr.bf16.mxu0 %v4415
    %5186 = vmatpush1.bf16.msra.mxu0 %v4414
    %5187 = vmatprep.subr.bf16.mxu0 %v4411
    %5188 = vmatpush1.bf16.msra.mxu0 %v4410
    %5189 = vmatprep.subr.bf16.mxu0 %v4407
    %5190 = vmatpush1.bf16.msra.mxu0 %v4406
    %5191 = vmatprep.subr.bf16.mxu0 %v4403
    %5192 = vmatpush1.bf16.msra.mxu0 %v4402
    %5193 = vmatprep.subr.bf16.mxu0 %v4399
    %5194 = vmatpush1.bf16.msra.mxu0 %v4398
    %5195 = vmatprep.subr.bf16.mxu0 %v4395
    %5196 = vmatpush1.bf16.msra.mxu0 %v4394
    %5197 = vmatprep.subr.bf16.mxu0 %v4391
    %5198 = vmatpush1.bf16.msra.mxu0 %v4390
    %5199 = vmatprep.subr.bf16.mxu0 %v4387
    %5200 = vmatpush1.bf16.msra.mxu0 %v4386
    %5201 = vmatprep.subr.bf16.mxu0 0
    %5202 = vmatpush2.bf16.msra.mxu0 0
    %5203 = vmatprep.subr.bf16.mxu0 0
    %5204 = vmatpush2.bf16.msra.mxu0 0
    %5205 = vmatprep.subr.bf16.mxu0 0
    %5206 = vmatpush2.bf16.msra.mxu0 0
    %5207 = vmatprep.subr.bf16.mxu0 0
    %5208 = vmatpush2.bf16.msra.mxu0 0
    %5209 = vmatprep.subr.bf16.mxu0 0
    %5210 = vmatpush2.bf16.msra.mxu0 0
    %5211 = vmatprep.subr.bf16.mxu0 0
    %5212 = vmatpush2.bf16.msra.mxu0 0
    %5213 = vmatprep.subr.bf16.mxu0 0
    %5214 = vmatpush2.bf16.msra.mxu0 0
    %5215 = vmatprep.subr.bf16.mxu0 0
    %5216 = vmatpush2.bf16.msra.mxu0 0
    %5217 = vmatprep.mubr.bf16.mxu0 0
    %5218 = vmatmul.mubr.bf16.gmra.mxu0 %v1995
    %v5219 = vpop.f32.mrf.mxu0
    %v5220 = vadd.f32 %v5179, %v5219
    %v5221 = vpop.f32.mrf.mxu0
    %v5222 = vadd.f32 %v5181, %v5221
    %v5223 = vpop.f32.mrf.mxu0
    %v5224 = vpop.f32.mrf.mxu0
    %5225 = vdwg.mxu0
    %5226 = vmatprep.subr.bf16.mxu0 %v3969
    %5227 = vmatpush1.bf16.msra.mxu0 %v3968
    %5228 = vmatprep.subr.bf16.mxu0 %v3965
    %5229 = vmatpush1.bf16.msra.mxu0 %v3964
    %5230 = vmatprep.subr.bf16.mxu0 %v3961
    %5231 = vmatpush1.bf16.msra.mxu0 %v3960
    %5232 = vmatprep.subr.bf16.mxu0 %v3957
    %5233 = vmatpush1.bf16.msra.mxu0 %v3956
    %5234 = vmatprep.subr.bf16.mxu0 %v3953
    %5235 = vmatpush1.bf16.msra.mxu0 %v3952
    %5236 = vmatprep.subr.bf16.mxu0 %v3949
    %5237 = vmatpush1.bf16.msra.mxu0 %v3948
    %5238 = vmatprep.subr.bf16.mxu0 %v3945
    %5239 = vmatpush1.bf16.msra.mxu0 %v3944
    %5240 = vmatprep.subr.bf16.mxu0 %v3941
    %5241 = vmatpush1.bf16.msra.mxu0 %v3940
    %5242 = vmatprep.subr.bf16.mxu0 %v4001
    %5243 = vmatpush2.bf16.msra.mxu0 %v4000
    %5244 = vmatprep.subr.bf16.mxu0 %v3997
    %5245 = vmatpush2.bf16.msra.mxu0 %v3996
    %5246 = vmatprep.subr.bf16.mxu0 %v3993
    %5247 = vmatpush2.bf16.msra.mxu0 %v3992
    %5248 = vmatprep.subr.bf16.mxu0 %v3989
    %5249 = vmatpush2.bf16.msra.mxu0 %v3988
    %5250 = vmatprep.subr.bf16.mxu0 %v3985
    %5251 = vmatpush2.bf16.msra.mxu0 %v3984
    %5252 = vmatprep.subr.bf16.mxu0 %v3981
    %5253 = vmatpush2.bf16.msra.mxu0 %v3980
    %5254 = vmatprep.subr.bf16.mxu0 %v3977
    %5255 = vmatpush2.bf16.msra.mxu0 %v3976
    %5256 = vmatprep.subr.bf16.mxu0 %v3973
    %5257 = vmatpush2.bf16.msra.mxu0 %v3972
    %5258 = vmatprep.mubr.bf16.mxu0 %v1982
    %5259 = vmatmul.mubr.bf16.gmra.mxu0 %v1981
    %v5260 = vpop.f32.mrf.mxu0
    %v5261 = vadd.f32 %v2489, %v5260
    %v5262 = vpop.f32.mrf.mxu0
    %v5263 = vadd.f32 %v2493, %v5262
    %v5264 = vpop.f32.mrf.mxu0
    %v5265 = vpop.f32.mrf.mxu0
    %5266 = vdwg.mxu0
    %5267 = vmatprep.subr.bf16.mxu0 %v4033
    %5268 = vmatpush1.bf16.msra.mxu0 %v4032
    %5269 = vmatprep.subr.bf16.mxu0 %v4029
    %5270 = vmatpush1.bf16.msra.mxu0 %v4028
    %5271 = vmatprep.subr.bf16.mxu0 %v4025
    %5272 = vmatpush1.bf16.msra.mxu0 %v4024
    %5273 = vmatprep.subr.bf16.mxu0 %v4021
    %5274 = vmatpush1.bf16.msra.mxu0 %v4020
    %5275 = vmatprep.subr.bf16.mxu0 %v4017
    %5276 = vmatpush1.bf16.msra.mxu0 %v4016
    %5277 = vmatprep.subr.bf16.mxu0 %v4013
    %5278 = vmatpush1.bf16.msra.mxu0 %v4012
    %5279 = vmatprep.subr.bf16.mxu0 %v4009
    %5280 = vmatpush1.bf16.msra.mxu0 %v4008
    %5281 = vmatprep.subr.bf16.mxu0 %v4005
    %5282 = vmatpush1.bf16.msra.mxu0 %v4004
    %5283 = vmatprep.subr.bf16.mxu0 %v4065
    %5284 = vmatpush2.bf16.msra.mxu0 %v4064
    %5285 = vmatprep.subr.bf16.mxu0 %v4061
    %5286 = vmatpush2.bf16.msra.mxu0 %v4060
    %5287 = vmatprep.subr.bf16.mxu0 %v4057
    %5288 = vmatpush2.bf16.msra.mxu0 %v4056
    %5289 = vmatprep.subr.bf16.mxu0 %v4053
    %5290 = vmatpush2.bf16.msra.mxu0 %v4052
    %5291 = vmatprep.subr.bf16.mxu0 %v4049
    %5292 = vmatpush2.bf16.msra.mxu0 %v4048
    %5293 = vmatprep.subr.bf16.mxu0 %v4045
    %5294 = vmatpush2.bf16.msra.mxu0 %v4044
    %5295 = vmatprep.subr.bf16.mxu0 %v4041
    %5296 = vmatpush2.bf16.msra.mxu0 %v4040
    %5297 = vmatprep.subr.bf16.mxu0 %v4037
    %5298 = vmatpush2.bf16.msra.mxu0 %v4036
    %5299 = vmatprep.mubr.bf16.mxu0 %v1984
    %5300 = vmatmul.mubr.bf16.gmra.mxu0 %v1983
    %v5301 = vpop.f32.mrf.mxu0
    %v5302 = vadd.f32 %v5261, %v5301
    %v5303 = vpop.f32.mrf.mxu0
    %v5304 = vadd.f32 %v5263, %v5303
    %v5305 = vpop.f32.mrf.mxu0
    %v5306 = vpop.f32.mrf.mxu0
    %5307 = vdwg.mxu0
    %5308 = vmatprep.subr.bf16.mxu0 %v4097
    %5309 = vmatpush1.bf16.msra.mxu0 %v4096
    %5310 = vmatprep.subr.bf16.mxu0 %v4093
    %5311 = vmatpush1.bf16.msra.mxu0 %v4092
    %5312 = vmatprep.subr.bf16.mxu0 %v4089
    %5313 = vmatpush1.bf16.msra.mxu0 %v4088
    %5314 = vmatprep.subr.bf16.mxu0 %v4085
    %5315 = vmatpush1.bf16.msra.mxu0 %v4084
    %5316 = vmatprep.subr.bf16.mxu0 %v4081
    %5317 = vmatpush1.bf16.msra.mxu0 %v4080
    %5318 = vmatprep.subr.bf16.mxu0 %v4077
    %5319 = vmatpush1.bf16.msra.mxu0 %v4076
    %5320 = vmatprep.subr.bf16.mxu0 %v4073
    %5321 = vmatpush1.bf16.msra.mxu0 %v4072
    %5322 = vmatprep.subr.bf16.mxu0 %v4069
    %5323 = vmatpush1.bf16.msra.mxu0 %v4068
    %5324 = vmatprep.subr.bf16.mxu0 %v4129
    %5325 = vmatpush2.bf16.msra.mxu0 %v4128
    %5326 = vmatprep.subr.bf16.mxu0 %v4125
    %5327 = vmatpush2.bf16.msra.mxu0 %v4124
    %5328 = vmatprep.subr.bf16.mxu0 %v4121
    %5329 = vmatpush2.bf16.msra.mxu0 %v4120
    %5330 = vmatprep.subr.bf16.mxu0 %v4117
    %5331 = vmatpush2.bf16.msra.mxu0 %v4116
    %5332 = vmatprep.subr.bf16.mxu0 %v4113
    %5333 = vmatpush2.bf16.msra.mxu0 %v4112
    %5334 = vmatprep.subr.bf16.mxu0 %v4109
    %5335 = vmatpush2.bf16.msra.mxu0 %v4108
    %5336 = vmatprep.subr.bf16.mxu0 %v4105
    %5337 = vmatpush2.bf16.msra.mxu0 %v4104
    %5338 = vmatprep.subr.bf16.mxu0 %v4101
    %5339 = vmatpush2.bf16.msra.mxu0 %v4100
    %5340 = vmatprep.mubr.bf16.mxu0 %v1986
    %5341 = vmatmul.mubr.bf16.gmra.mxu0 %v1985
    %v5342 = vpop.f32.mrf.mxu0
    %v5343 = vadd.f32 %v5302, %v5342
    %v5344 = vpop.f32.mrf.mxu0
    %v5345 = vadd.f32 %v5304, %v5344
    %v5346 = vpop.f32.mrf.mxu0
    %v5347 = vpop.f32.mrf.mxu0
    %5348 = vdwg.mxu0
    %5349 = vmatprep.subr.bf16.mxu0 %v4161
    %5350 = vmatpush1.bf16.msra.mxu0 %v4160
    %5351 = vmatprep.subr.bf16.mxu0 %v4157
    %5352 = vmatpush1.bf16.msra.mxu0 %v4156
    %5353 = vmatprep.subr.bf16.mxu0 %v4153
    %5354 = vmatpush1.bf16.msra.mxu0 %v4152
    %5355 = vmatprep.subr.bf16.mxu0 %v4149
    %5356 = vmatpush1.bf16.msra.mxu0 %v4148
    %5357 = vmatprep.subr.bf16.mxu0 %v4145
    %5358 = vmatpush1.bf16.msra.mxu0 %v4144
    %5359 = vmatprep.subr.bf16.mxu0 %v4141
    %5360 = vmatpush1.bf16.msra.mxu0 %v4140
    %5361 = vmatprep.subr.bf16.mxu0 %v4137
    %5362 = vmatpush1.bf16.msra.mxu0 %v4136
    %5363 = vmatprep.subr.bf16.mxu0 %v4133
    %5364 = vmatpush1.bf16.msra.mxu0 %v4132
    %5365 = vmatprep.subr.bf16.mxu0 %v4193
    %5366 = vmatpush2.bf16.msra.mxu0 %v4192
    %5367 = vmatprep.subr.bf16.mxu0 %v4189
    %5368 = vmatpush2.bf16.msra.mxu0 %v4188
    %5369 = vmatprep.subr.bf16.mxu0 %v4185
    %5370 = vmatpush2.bf16.msra.mxu0 %v4184
    %5371 = vmatprep.subr.bf16.mxu0 %v4181
    %5372 = vmatpush2.bf16.msra.mxu0 %v4180
    %5373 = vmatprep.subr.bf16.mxu0 %v4177
    %5374 = vmatpush2.bf16.msra.mxu0 %v4176
    %5375 = vmatprep.subr.bf16.mxu0 %v4173
    %5376 = vmatpush2.bf16.msra.mxu0 %v4172
    %5377 = vmatprep.subr.bf16.mxu0 %v4169
    %5378 = vmatpush2.bf16.msra.mxu0 %v4168
    %5379 = vmatprep.subr.bf16.mxu0 %v4165
    %5380 = vmatpush2.bf16.msra.mxu0 %v4164
    %5381 = vmatprep.mubr.bf16.mxu0 %v1988
    %5382 = vmatmul.mubr.bf16.gmra.mxu0 %v1987
    %v5383 = vpop.f32.mrf.mxu0
    %v5384 = vadd.f32 %v5343, %v5383
    %v5385 = vpop.f32.mrf.mxu0
    %v5386 = vadd.f32 %v5345, %v5385
    %v5387 = vpop.f32.mrf.mxu0
    %v5388 = vpop.f32.mrf.mxu0
    %5389 = vdwg.mxu0
    %5390 = vmatprep.subr.bf16.mxu0 %v4225
    %5391 = vmatpush1.bf16.msra.mxu0 %v4224
    %5392 = vmatprep.subr.bf16.mxu0 %v4221
    %5393 = vmatpush1.bf16.msra.mxu0 %v4220
    %5394 = vmatprep.subr.bf16.mxu0 %v4217
    %5395 = vmatpush1.bf16.msra.mxu0 %v4216
    %5396 = vmatprep.subr.bf16.mxu0 %v4213
    %5397 = vmatpush1.bf16.msra.mxu0 %v4212
    %5398 = vmatprep.subr.bf16.mxu0 %v4209
    %5399 = vmatpush1.bf16.msra.mxu0 %v4208
    %5400 = vmatprep.subr.bf16.mxu0 %v4205
    %5401 = vmatpush1.bf16.msra.mxu0 %v4204
    %5402 = vmatprep.subr.bf16.mxu0 %v4201
    %5403 = vmatpush1.bf16.msra.mxu0 %v4200
    %5404 = vmatprep.subr.bf16.mxu0 %v4197
    %5405 = vmatpush1.bf16.msra.mxu0 %v4196
    %5406 = vmatprep.subr.bf16.mxu0 %v4257
    %5407 = vmatpush2.bf16.msra.mxu0 %v4256
    %5408 = vmatprep.subr.bf16.mxu0 %v4253
    %5409 = vmatpush2.bf16.msra.mxu0 %v4252
    %5410 = vmatprep.subr.bf16.mxu0 %v4249
    %5411 = vmatpush2.bf16.msra.mxu0 %v4248
    %5412 = vmatprep.subr.bf16.mxu0 %v4245
    %5413 = vmatpush2.bf16.msra.mxu0 %v4244
    %5414 = vmatprep.subr.bf16.mxu0 %v4241
    %5415 = vmatpush2.bf16.msra.mxu0 %v4240
    %5416 = vmatprep.subr.bf16.mxu0 %v4237
    %5417 = vmatpush2.bf16.msra.mxu0 %v4236
    %5418 = vmatprep.subr.bf16.mxu0 %v4233
    %5419 = vmatpush2.bf16.msra.mxu0 %v4232
    %5420 = vmatprep.subr.bf16.mxu0 %v4229
    %5421 = vmatpush2.bf16.msra.mxu0 %v4228
    %5422 = vmatprep.mubr.bf16.mxu0 %v1990
    %5423 = vmatmul.mubr.bf16.gmra.mxu0 %v1989
    %v5424 = vpop.f32.mrf.mxu0
    %v5425 = vadd.f32 %v5384, %v5424
    %v5426 = vpop.f32.mrf.mxu0
    %v5427 = vadd.f32 %v5386, %v5426
    %v5428 = vpop.f32.mrf.mxu0
    %v5429 = vpop.f32.mrf.mxu0
    %5430 = vdwg.mxu0
    %5431 = vmatprep.subr.bf16.mxu0 %v4289
    %5432 = vmatpush1.bf16.msra.mxu0 %v4288
    %5433 = vmatprep.subr.bf16.mxu0 %v4285
    %5434 = vmatpush1.bf16.msra.mxu0 %v4284
    %5435 = vmatprep.subr.bf16.mxu0 %v4281
    %5436 = vmatpush1.bf16.msra.mxu0 %v4280
    %5437 = vmatprep.subr.bf16.mxu0 %v4277
    %5438 = vmatpush1.bf16.msra.mxu0 %v4276
    %5439 = vmatprep.subr.bf16.mxu0 %v4273
    %5440 = vmatpush1.bf16.msra.mxu0 %v4272
    %5441 = vmatprep.subr.bf16.mxu0 %v4269
    %5442 = vmatpush1.bf16.msra.mxu0 %v4268
    %5443 = vmatprep.subr.bf16.mxu0 %v4265
    %5444 = vmatpush1.bf16.msra.mxu0 %v4264
    %5445 = vmatprep.subr.bf16.mxu0 %v4261
    %5446 = vmatpush1.bf16.msra.mxu0 %v4260
    %5447 = vmatprep.subr.bf16.mxu0 %v4321
    %5448 = vmatpush2.bf16.msra.mxu0 %v4320
    %5449 = vmatprep.subr.bf16.mxu0 %v4317
    %5450 = vmatpush2.bf16.msra.mxu0 %v4316
    %5451 = vmatprep.subr.bf16.mxu0 %v4313
    %5452 = vmatpush2.bf16.msra.mxu0 %v4312
    %5453 = vmatprep.subr.bf16.mxu0 %v4309
    %5454 = vmatpush2.bf16.msra.mxu0 %v4308
    %5455 = vmatprep.subr.bf16.mxu0 %v4305
    %5456 = vmatpush2.bf16.msra.mxu0 %v4304
    %5457 = vmatprep.subr.bf16.mxu0 %v4301
    %5458 = vmatpush2.bf16.msra.mxu0 %v4300
    %5459 = vmatprep.subr.bf16.mxu0 %v4297
    %5460 = vmatpush2.bf16.msra.mxu0 %v4296
    %5461 = vmatprep.subr.bf16.mxu0 %v4293
    %5462 = vmatpush2.bf16.msra.mxu0 %v4292
    %5463 = vmatprep.mubr.bf16.mxu0 %v1992
    %5464 = vmatmul.mubr.bf16.gmra.mxu0 %v1991
    %v5465 = vpop.f32.mrf.mxu0
    %v5466 = vadd.f32 %v5425, %v5465
    %v5467 = vpop.f32.mrf.mxu0
    %v5468 = vadd.f32 %v5427, %v5467
    %v5469 = vpop.f32.mrf.mxu0
    %v5470 = vpop.f32.mrf.mxu0
    %5471 = vdwg.mxu0
    %5472 = vmatprep.subr.bf16.mxu0 %v4353
    %5473 = vmatpush1.bf16.msra.mxu0 %v4352
    %5474 = vmatprep.subr.bf16.mxu0 %v4349
    %5475 = vmatpush1.bf16.msra.mxu0 %v4348
    %5476 = vmatprep.subr.bf16.mxu0 %v4345
    %5477 = vmatpush1.bf16.msra.mxu0 %v4344
    %5478 = vmatprep.subr.bf16.mxu0 %v4341
    %5479 = vmatpush1.bf16.msra.mxu0 %v4340
    %5480 = vmatprep.subr.bf16.mxu0 %v4337
    %5481 = vmatpush1.bf16.msra.mxu0 %v4336
    %5482 = vmatprep.subr.bf16.mxu0 %v4333
    %5483 = vmatpush1.bf16.msra.mxu0 %v4332
    %5484 = vmatprep.subr.bf16.mxu0 %v4329
    %5485 = vmatpush1.bf16.msra.mxu0 %v4328
    %5486 = vmatprep.subr.bf16.mxu0 %v4325
    %5487 = vmatpush1.bf16.msra.mxu0 %v4324
    %5488 = vmatprep.subr.bf16.mxu0 %v4385
    %5489 = vmatpush2.bf16.msra.mxu0 %v4384
    %5490 = vmatprep.subr.bf16.mxu0 %v4381
    %5491 = vmatpush2.bf16.msra.mxu0 %v4380
    %5492 = vmatprep.subr.bf16.mxu0 %v4377
    %5493 = vmatpush2.bf16.msra.mxu0 %v4376
    %5494 = vmatprep.subr.bf16.mxu0 %v4373
    %5495 = vmatpush2.bf16.msra.mxu0 %v4372
    %5496 = vmatprep.subr.bf16.mxu0 %v4369
    %5497 = vmatpush2.bf16.msra.mxu0 %v4368
    %5498 = vmatprep.subr.bf16.mxu0 %v4365
    %5499 = vmatpush2.bf16.msra.mxu0 %v4364
    %5500 = vmatprep.subr.bf16.mxu0 %v4361
    %5501 = vmatpush2.bf16.msra.mxu0 %v4360
    %5502 = vmatprep.subr.bf16.mxu0 %v4357
    %5503 = vmatpush2.bf16.msra.mxu0 %v4356
    %5504 = vmatprep.mubr.bf16.mxu0 %v1994
    %5505 = vmatmul.mubr.bf16.gmra.mxu0 %v1993
    %v5506 = vpop.f32.mrf.mxu0
    %v5507 = vadd.f32 %v5466, %v5506
    %v5508 = vpop.f32.mrf.mxu0
    %v5509 = vadd.f32 %v5468, %v5508
    %v5510 = vpop.f32.mrf.mxu0
    %v5511 = vpop.f32.mrf.mxu0
    %5512 = vdwg.mxu0
    %5513 = vmatprep.subr.bf16.mxu0 %v4417
    %5514 = vmatpush1.bf16.msra.mxu0 %v4416
    %5515 = vmatprep.subr.bf16.mxu0 %v4413
    %5516 = vmatpush1.bf16.msra.mxu0 %v4412
    %5517 = vmatprep.subr.bf16.mxu0 %v4409
    %5518 = vmatpush1.bf16.msra.mxu0 %v4408
    %5519 = vmatprep.subr.bf16.mxu0 %v4405
    %5520 = vmatpush1.bf16.msra.mxu0 %v4404
    %5521 = vmatprep.subr.bf16.mxu0 %v4401
    %5522 = vmatpush1.bf16.msra.mxu0 %v4400
    %5523 = vmatprep.subr.bf16.mxu0 %v4397
    %5524 = vmatpush1.bf16.msra.mxu0 %v4396
    %5525 = vmatprep.subr.bf16.mxu0 %v4393
    %5526 = vmatpush1.bf16.msra.mxu0 %v4392
    %5527 = vmatprep.subr.bf16.mxu0 %v4389
    %5528 = vmatpush1.bf16.msra.mxu0 %v4388
    %5529 = vmatprep.subr.bf16.mxu0 0
    %5530 = vmatpush2.bf16.msra.mxu0 0
    %5531 = vmatprep.subr.bf16.mxu0 0
    %5532 = vmatpush2.bf16.msra.mxu0 0
    %5533 = vmatprep.subr.bf16.mxu0 0
    %5534 = vmatpush2.bf16.msra.mxu0 0
    %5535 = vmatprep.subr.bf16.mxu0 0
    %5536 = vmatpush2.bf16.msra.mxu0 0
    %5537 = vmatprep.subr.bf16.mxu0 0
    %5538 = vmatpush2.bf16.msra.mxu0 0
    %5539 = vmatprep.subr.bf16.mxu0 0
    %5540 = vmatpush2.bf16.msra.mxu0 0
    %5541 = vmatprep.subr.bf16.mxu0 0
    %5542 = vmatpush2.bf16.msra.mxu0 0
    %5543 = vmatprep.subr.bf16.mxu0 0
    %5544 = vmatpush2.bf16.msra.mxu0 0
    %5545 = vmatprep.mubr.bf16.mxu0 0
    %5546 = vmatmul.mubr.bf16.gmra.mxu0 %v1995
    %v5547 = vpop.f32.mrf.mxu0
    %v5548 = vadd.f32 %v5507, %v5547
    %v5549 = vpop.f32.mrf.mxu0
    %v5550 = vadd.f32 %v5509, %v5549
    %v5551 = vpop.f32.mrf.mxu0
    %v5552 = vpop.f32.mrf.mxu0
    %5553 = vdwg.mxu0
    %v5554 = vmax.f32 %v5220, 0.0
    %v5555 = vmax.f32 %v5222, 0.0
    %v5556 = vmax.f32 %v5548, 0.0
    %v5557 = vmax.f32 %v5550, 0.0
    %v5558 = vpack.c.bf16 %v5554, %v5554
    %v5559 = vpack.c.bf16 %v5555, %v5555
    %v5560 = vpack.c.bf16 %v5556, %v5556
    %v5561 = vpack.c.bf16 %v5557, %v5557
    %v5562 = vld [vmem:[#allocation10] sm:$0xff]
    %v5563 = vld [vmem:[#allocation10 + $0x8] sm:$0xff]
    %v5564 = vld [vmem:[#allocation10 + $0x10] sm:$0xff]
    %v5565 = vld [vmem:[#allocation10 + $0x18] sm:$0xff]
    %v5566 = vld [vmem:[#allocation10 + $0x20] sm:$0xff]
    %v5567 = vld [vmem:[#allocation10 + $0x28] sm:$0xff]
    %v5568 = vld [vmem:[#allocation10 + $0x30] sm:$0xff]
    %v5569 = vld [vmem:[#allocation10 + $0x38] sm:$0xff]
    %v5570 = vld [vmem:[#allocation10 + $0x40] sm:$0xff]
    %v5571 = vld [vmem:[#allocation10 + $0x48] sm:$0xff]
    %v5572 = vld [vmem:[#allocation10 + $0x50] sm:$0xff]
    %v5573 = vld [vmem:[#allocation10 + $0x58] sm:$0xff]
    %v5574 = vld [vmem:[#allocation10 + $0x60] sm:$0xff]
    %v5575 = vld [vmem:[#allocation10 + $0x68] sm:$0xff]
    %v5576 = vld [vmem:[#allocation10 + $0x70] sm:$0xff]
    %v5577 = vld [vmem:[#allocation10 + $0x78] sm:$0xff]
    %v5578 = vld [vmem:[#allocation10 + $0x80] sm:$0xff]
    %v5579 = vld [vmem:[#allocation10 + $0x88] sm:$0xff]
    %v5580 = vld [vmem:[#allocation10 + $0x90] sm:$0xff]
    %v5581 = vld [vmem:[#allocation10 + $0x98] sm:$0xff]
    %v5582 = vld [vmem:[#allocation10 + $0xa0] sm:$0xff]
    %v5583 = vld [vmem:[#allocation10 + $0xa8] sm:$0xff]
    %v5584 = vld [vmem:[#allocation10 + $0xb0] sm:$0xff]
    %v5585 = vld [vmem:[#allocation10 + $0xb8] sm:$0xff]
    %v5586 = vld [vmem:[#allocation10 + $0xc0] sm:$0xff]
    %v5587 = vld [vmem:[#allocation10 + $0xc8] sm:$0xff]
    %v5588 = vld [vmem:[#allocation10 + $0xd0] sm:$0xff]
    %v5589 = vld [vmem:[#allocation10 + $0xd8] sm:$0xff]
    %v5590 = vld [vmem:[#allocation10 + $0xe0] sm:$0xff]
    %v5591 = vld [vmem:[#allocation10 + $0xe8] sm:$0xff]
    %v5592 = vld [vmem:[#allocation10 + $0xf0] sm:$0xff]
    %v5593 = vld [vmem:[#allocation10 + $0xf8] sm:$0xff]
    %v5594 = vld [vmem:[#allocation10 + $0x100] sm:$0xff]
    %v5595 = vld [vmem:[#allocation10 + $0x108] sm:$0xff]
    %v5596 = vld [vmem:[#allocation10 + $0x110] sm:$0xff]
    %v5597 = vld [vmem:[#allocation10 + $0x118] sm:$0xff]
    %v5598 = vld [vmem:[#allocation10 + $0x120] sm:$0xff]
    %v5599 = vld [vmem:[#allocation10 + $0x128] sm:$0xff]
    %v5600 = vld [vmem:[#allocation10 + $0x130] sm:$0xff]
    %v5601 = vld [vmem:[#allocation10 + $0x138] sm:$0xff]
    %v5602 = vld [vmem:[#allocation10 + $0x140] sm:$0xff]
    %v5603 = vld [vmem:[#allocation10 + $0x148] sm:$0xff]
    %v5604 = vld [vmem:[#allocation10 + $0x150] sm:$0xff]
    %v5605 = vld [vmem:[#allocation10 + $0x158] sm:$0xff]
    %v5606 = vld [vmem:[#allocation10 + $0x160] sm:$0xff]
    %v5607 = vld [vmem:[#allocation10 + $0x168] sm:$0xff]
    %v5608 = vld [vmem:[#allocation10 + $0x170] sm:$0xff]
    %v5609 = vld [vmem:[#allocation10 + $0x178] sm:$0xff]
    %v5610 = vld [vmem:[#allocation10 + $0x180] sm:$0xff]
    %v5611 = vld [vmem:[#allocation10 + $0x188] sm:$0xff]
    %v5612 = vld [vmem:[#allocation10 + $0x190] sm:$0xff]
    %v5613 = vld [vmem:[#allocation10 + $0x198] sm:$0xff]
    %v5614 = vld [vmem:[#allocation10 + $0x1a0] sm:$0xff]
    %v5615 = vld [vmem:[#allocation10 + $0x1a8] sm:$0xff]
    %v5616 = vld [vmem:[#allocation10 + $0x1b0] sm:$0xff]
    %v5617 = vld [vmem:[#allocation10 + $0x1b8] sm:$0xff]
    %v5618 = vld [vmem:[#allocation10 + $0x1c0] sm:$0xff]
    %v5619 = vld [vmem:[#allocation10 + $0x1c8] sm:$0xff]
    %v5620 = vld [vmem:[#allocation10 + $0x1d0] sm:$0xff]
    %v5621 = vld [vmem:[#allocation10 + $0x1d8] sm:$0xff]
    %v5622 = vld [vmem:[#allocation10 + $0x1e0] sm:$0xff]
    %v5623 = vld [vmem:[#allocation10 + $0x1e8] sm:$0xff]
    %v5624 = vld [vmem:[#allocation10 + $0x1f0] sm:$0xff]
    %v5625 = vld [vmem:[#allocation10 + $0x1f8] sm:$0xff]
    %v5626 = vld [vmem:[#allocation10 + $0x200] sm:$0xff]
    %v5627 = vld [vmem:[#allocation10 + $0x208] sm:$0xff]
    %v5628 = vld [vmem:[#allocation10 + $0x210] sm:$0xff]
    %v5629 = vld [vmem:[#allocation10 + $0x218] sm:$0xff]
    %v5630 = vld [vmem:[#allocation10 + $0x220] sm:$0xff]
    %v5631 = vld [vmem:[#allocation10 + $0x228] sm:$0xff]
    %v5632 = vld [vmem:[#allocation10 + $0x230] sm:$0xff]
    %v5633 = vld [vmem:[#allocation10 + $0x238] sm:$0xff]
    %v5634 = vld [vmem:[#allocation10 + $0x240] sm:$0xff]
    %v5635 = vld [vmem:[#allocation10 + $0x248] sm:$0xff]
    %v5636 = vld [vmem:[#allocation10 + $0x250] sm:$0xff]
    %v5637 = vld [vmem:[#allocation10 + $0x258] sm:$0xff]
    %v5638 = vld [vmem:[#allocation10 + $0x260] sm:$0xff]
    %v5639 = vld [vmem:[#allocation10 + $0x268] sm:$0xff]
    %v5640 = vld [vmem:[#allocation10 + $0x270] sm:$0xff]
    %v5641 = vld [vmem:[#allocation10 + $0x278] sm:$0xff]
    %v5642 = vld [vmem:[#allocation10 + $0x280] sm:$0xff]
    %v5643 = vld [vmem:[#allocation10 + $0x288] sm:$0xff]
    %v5644 = vld [vmem:[#allocation10 + $0x290] sm:$0xff]
    %v5645 = vld [vmem:[#allocation10 + $0x298] sm:$0xff]
    %v5646 = vld [vmem:[#allocation10 + $0x2a0] sm:$0xff]
    %v5647 = vld [vmem:[#allocation10 + $0x2a8] sm:$0xff]
    %v5648 = vld [vmem:[#allocation10 + $0x2b0] sm:$0xff]
    %v5649 = vld [vmem:[#allocation10 + $0x2b8] sm:$0xff]
    %v5650 = vld [vmem:[#allocation10 + $0x2c0] sm:$0xff]
    %v5651 = vld [vmem:[#allocation10 + $0x2c8] sm:$0xff]
    %v5652 = vld [vmem:[#allocation10 + $0x2d0] sm:$0xff]
    %v5653 = vld [vmem:[#allocation10 + $0x2d8] sm:$0xff]
    %v5654 = vld [vmem:[#allocation10 + $0x2e0] sm:$0xff]
    %v5655 = vld [vmem:[#allocation10 + $0x2e8] sm:$0xff]
    %v5656 = vld [vmem:[#allocation10 + $0x2f0] sm:$0xff]
    %v5657 = vld [vmem:[#allocation10 + $0x2f8] sm:$0xff]
    %v5658 = vld [vmem:[#allocation10 + $0x300] sm:$0xff]
    %v5659 = vld [vmem:[#allocation10 + $0x308] sm:$0xff]
    %v5660 = vld [vmem:[#allocation10 + $0x310] sm:$0xff]
    %v5661 = vld [vmem:[#allocation10 + $0x318] sm:$0xff]
    %v5662 = vld [vmem:[#allocation10 + $0x320] sm:$0xff]
    %v5663 = vld [vmem:[#allocation10 + $0x328] sm:$0xff]
    %v5664 = vld [vmem:[#allocation10 + $0x330] sm:$0xff]
    %v5665 = vld [vmem:[#allocation10 + $0x338] sm:$0xff]
    %v5666 = vld [vmem:[#allocation10 + $0x340] sm:$0xff]
    %v5667 = vld [vmem:[#allocation10 + $0x348] sm:$0xff]
    %v5668 = vld [vmem:[#allocation10 + $0x350] sm:$0xff]
    %v5669 = vld [vmem:[#allocation10 + $0x358] sm:$0xff]
    %v5670 = vld [vmem:[#allocation10 + $0x360] sm:$0xff]
    %v5671 = vld [vmem:[#allocation10 + $0x368] sm:$0xff]
    %v5672 = vld [vmem:[#allocation10 + $0x370] sm:$0xff]
    %v5673 = vld [vmem:[#allocation10 + $0x378] sm:$0xff]
    %v5674 = vld [vmem:[#allocation10 + $0x380] sm:$0xff]
    %v5675 = vld [vmem:[#allocation10 + $0x388] sm:$0xff]
    %v5676 = vld [vmem:[#allocation10 + $0x390] sm:$0xff]
    %v5677 = vld [vmem:[#allocation10 + $0x398] sm:$0xff]
    %v5678 = vld [vmem:[#allocation10 + $0x3a0] sm:$0xff]
    %v5679 = vld [vmem:[#allocation10 + $0x3a8] sm:$0xff]
    %v5680 = vld [vmem:[#allocation10 + $0x3b0] sm:$0xff]
    %v5681 = vld [vmem:[#allocation10 + $0x3b8] sm:$0xff]
    %v5682 = vld [vmem:[#allocation10 + $0x3c0] sm:$0xff]
    %v5683 = vld [vmem:[#allocation10 + $0x3c8] sm:$0xff]
    %v5684 = vld [vmem:[#allocation10 + $0x3d0] sm:$0xff]
    %v5685 = vld [vmem:[#allocation10 + $0x3d8] sm:$0xff]
    %v5686 = vld [vmem:[#allocation10 + $0x3e0] sm:$0xff]
    %v5687 = vld [vmem:[#allocation10 + $0x3e8] sm:$0xff]
    %v5688 = vld [vmem:[#allocation10 + $0x3f0] sm:$0xff]
    %v5689 = vld [vmem:[#allocation10 + $0x3f8] sm:$0xff]
    %v5690 = vld [vmem:[#allocation11] sm:$0xf]
    %v5692 = vlaneseq
    %v5693 = vshrl.u32 %v5692, 7
    %v5694 = vsub.s32 0, %v5693
    %v5695 = vrot.slane %v5690, %v5694
    %v5696 = vlaneseq
    %v5697 = vshrl.u32 %v5696, 7
    %v5698 = vsub.s32 1, %v5697
    %v5699 = vrot.slane %v5690, %v5698
    %v5700 = vlaneseq
    %v5701 = vshrl.u32 %v5700, 7
    %v5702 = vsub.s32 2, %v5701
    %v5703 = vrot.slane %v5690, %v5702
    %v5704 = vlaneseq
    %v5705 = vshrl.u32 %v5704, 7
    %v5706 = vsub.s32 3, %v5705
    %v5707 = vrot.slane %v5690, %v5706
    %v5840 = vunpack.c.l.b16 %v5562
    %v5841 = vunpack.c.h.b16 %v5562
    %v5842 = vunpack.c.l.b16 %v5563
    %v5843 = vunpack.c.h.b16 %v5563
    %v5844 = vunpack.c.l.b16 %v5564
    %v5845 = vunpack.c.h.b16 %v5564
    %v5846 = vunpack.c.l.b16 %v5565
    %v5847 = vunpack.c.h.b16 %v5565
    %v5848 = vunpack.c.l.b16 %v5566
    %v5849 = vunpack.c.h.b16 %v5566
    %v5850 = vunpack.c.l.b16 %v5567
    %v5851 = vunpack.c.h.b16 %v5567
    %v5852 = vunpack.c.l.b16 %v5568
    %v5853 = vunpack.c.h.b16 %v5568
    %v5854 = vunpack.c.l.b16 %v5569
    %v5855 = vunpack.c.h.b16 %v5569
    %v5856 = vunpack.c.l.b16 %v5570
    %v5857 = vunpack.c.h.b16 %v5570
    %v5858 = vunpack.c.l.b16 %v5571
    %v5859 = vunpack.c.h.b16 %v5571
    %v5860 = vunpack.c.l.b16 %v5572
    %v5861 = vunpack.c.h.b16 %v5572
    %v5862 = vunpack.c.l.b16 %v5573
    %v5863 = vunpack.c.h.b16 %v5573
    %v5864 = vunpack.c.l.b16 %v5574
    %v5865 = vunpack.c.h.b16 %v5574
    %v5866 = vunpack.c.l.b16 %v5575
    %v5867 = vunpack.c.h.b16 %v5575
    %v5868 = vunpack.c.l.b16 %v5576
    %v5869 = vunpack.c.h.b16 %v5576
    %v5870 = vunpack.c.l.b16 %v5577
    %v5871 = vunpack.c.h.b16 %v5577
    %v5872 = vunpack.c.l.b16 %v5578
    %v5873 = vunpack.c.h.b16 %v5578
    %v5874 = vunpack.c.l.b16 %v5579
    %v5875 = vunpack.c.h.b16 %v5579
    %v5876 = vunpack.c.l.b16 %v5580
    %v5877 = vunpack.c.h.b16 %v5580
    %v5878 = vunpack.c.l.b16 %v5581
    %v5879 = vunpack.c.h.b16 %v5581
    %v5880 = vunpack.c.l.b16 %v5582
    %v5881 = vunpack.c.h.b16 %v5582
    %v5882 = vunpack.c.l.b16 %v5583
    %v5883 = vunpack.c.h.b16 %v5583
    %v5884 = vunpack.c.l.b16 %v5584
    %v5885 = vunpack.c.h.b16 %v5584
    %v5886 = vunpack.c.l.b16 %v5585
    %v5887 = vunpack.c.h.b16 %v5585
    %v5888 = vunpack.c.l.b16 %v5586
    %v5889 = vunpack.c.h.b16 %v5586
    %v5890 = vunpack.c.l.b16 %v5587
    %v5891 = vunpack.c.h.b16 %v5587
    %v5892 = vunpack.c.l.b16 %v5588
    %v5893 = vunpack.c.h.b16 %v5588
    %v5894 = vunpack.c.l.b16 %v5589
    %v5895 = vunpack.c.h.b16 %v5589
    %v5896 = vunpack.c.l.b16 %v5590
    %v5897 = vunpack.c.h.b16 %v5590
    %v5898 = vunpack.c.l.b16 %v5591
    %v5899 = vunpack.c.h.b16 %v5591
    %v5900 = vunpack.c.l.b16 %v5592
    %v5901 = vunpack.c.h.b16 %v5592
    %v5902 = vunpack.c.l.b16 %v5593
    %v5903 = vunpack.c.h.b16 %v5593
    %v5904 = vunpack.c.l.b16 %v5594
    %v5905 = vunpack.c.h.b16 %v5594
    %v5906 = vunpack.c.l.b16 %v5595
    %v5907 = vunpack.c.h.b16 %v5595
    %v5908 = vunpack.c.l.b16 %v5596
    %v5909 = vunpack.c.h.b16 %v5596
    %v5910 = vunpack.c.l.b16 %v5597
    %v5911 = vunpack.c.h.b16 %v5597
    %v5912 = vunpack.c.l.b16 %v5598
    %v5913 = vunpack.c.h.b16 %v5598
    %v5914 = vunpack.c.l.b16 %v5599
    %v5915 = vunpack.c.h.b16 %v5599
    %v5916 = vunpack.c.l.b16 %v5600
    %v5917 = vunpack.c.h.b16 %v5600
    %v5918 = vunpack.c.l.b16 %v5601
    %v5919 = vunpack.c.h.b16 %v5601
    %v5920 = vunpack.c.l.b16 %v5602
    %v5921 = vunpack.c.h.b16 %v5602
    %v5922 = vunpack.c.l.b16 %v5603
    %v5923 = vunpack.c.h.b16 %v5603
    %v5924 = vunpack.c.l.b16 %v5604
    %v5925 = vunpack.c.h.b16 %v5604
    %v5926 = vunpack.c.l.b16 %v5605
    %v5927 = vunpack.c.h.b16 %v5605
    %v5928 = vunpack.c.l.b16 %v5606
    %v5929 = vunpack.c.h.b16 %v5606
    %v5930 = vunpack.c.l.b16 %v5607
    %v5931 = vunpack.c.h.b16 %v5607
    %v5932 = vunpack.c.l.b16 %v5608
    %v5933 = vunpack.c.h.b16 %v5608
    %v5934 = vunpack.c.l.b16 %v5609
    %v5935 = vunpack.c.h.b16 %v5609
    %v5936 = vunpack.c.l.b16 %v5610
    %v5937 = vunpack.c.h.b16 %v5610
    %v5938 = vunpack.c.l.b16 %v5611
    %v5939 = vunpack.c.h.b16 %v5611
    %v5940 = vunpack.c.l.b16 %v5612
    %v5941 = vunpack.c.h.b16 %v5612
    %v5942 = vunpack.c.l.b16 %v5613
    %v5943 = vunpack.c.h.b16 %v5613
    %v5944 = vunpack.c.l.b16 %v5614
    %v5945 = vunpack.c.h.b16 %v5614
    %v5946 = vunpack.c.l.b16 %v5615
    %v5947 = vunpack.c.h.b16 %v5615
    %v5948 = vunpack.c.l.b16 %v5616
    %v5949 = vunpack.c.h.b16 %v5616
    %v5950 = vunpack.c.l.b16 %v5617
    %v5951 = vunpack.c.h.b16 %v5617
    %v5952 = vunpack.c.l.b16 %v5618
    %v5953 = vunpack.c.h.b16 %v5618
    %v5954 = vunpack.c.l.b16 %v5619
    %v5955 = vunpack.c.h.b16 %v5619
    %v5956 = vunpack.c.l.b16 %v5620
    %v5957 = vunpack.c.h.b16 %v5620
    %v5958 = vunpack.c.l.b16 %v5621
    %v5959 = vunpack.c.h.b16 %v5621
    %v5960 = vunpack.c.l.b16 %v5622
    %v5961 = vunpack.c.h.b16 %v5622
    %v5962 = vunpack.c.l.b16 %v5623
    %v5963 = vunpack.c.h.b16 %v5623
    %v5964 = vunpack.c.l.b16 %v5624
    %v5965 = vunpack.c.h.b16 %v5624
    %v5966 = vunpack.c.l.b16 %v5625
    %v5967 = vunpack.c.h.b16 %v5625
    %v5968 = vunpack.c.l.b16 %v5626
    %v5969 = vunpack.c.h.b16 %v5626
    %v5970 = vunpack.c.l.b16 %v5627
    %v5971 = vunpack.c.h.b16 %v5627
    %v5972 = vunpack.c.l.b16 %v5628
    %v5973 = vunpack.c.h.b16 %v5628
    %v5974 = vunpack.c.l.b16 %v5629
    %v5975 = vunpack.c.h.b16 %v5629
    %v5976 = vunpack.c.l.b16 %v5630
    %v5977 = vunpack.c.h.b16 %v5630
    %v5978 = vunpack.c.l.b16 %v5631
    %v5979 = vunpack.c.h.b16 %v5631
    %v5980 = vunpack.c.l.b16 %v5632
    %v5981 = vunpack.c.h.b16 %v5632
    %v5982 = vunpack.c.l.b16 %v5633
    %v5983 = vunpack.c.h.b16 %v5633
    %v5984 = vunpack.c.l.b16 %v5634
    %v5985 = vunpack.c.h.b16 %v5634
    %v5986 = vunpack.c.l.b16 %v5635
    %v5987 = vunpack.c.h.b16 %v5635
    %v5988 = vunpack.c.l.b16 %v5636
    %v5989 = vunpack.c.h.b16 %v5636
    %v5990 = vunpack.c.l.b16 %v5637
    %v5991 = vunpack.c.h.b16 %v5637
    %v5992 = vunpack.c.l.b16 %v5638
    %v5993 = vunpack.c.h.b16 %v5638
    %v5994 = vunpack.c.l.b16 %v5639
    %v5995 = vunpack.c.h.b16 %v5639
    %v5996 = vunpack.c.l.b16 %v5640
    %v5997 = vunpack.c.h.b16 %v5640
    %v5998 = vunpack.c.l.b16 %v5641
    %v5999 = vunpack.c.h.b16 %v5641
    %v6000 = vunpack.c.l.b16 %v5642
    %v6001 = vunpack.c.h.b16 %v5642
    %v6002 = vunpack.c.l.b16 %v5643
    %v6003 = vunpack.c.h.b16 %v5643
    %v6004 = vunpack.c.l.b16 %v5644
    %v6005 = vunpack.c.h.b16 %v5644
    %v6006 = vunpack.c.l.b16 %v5645
    %v6007 = vunpack.c.h.b16 %v5645
    %v6008 = vunpack.c.l.b16 %v5646
    %v6009 = vunpack.c.h.b16 %v5646
    %v6010 = vunpack.c.l.b16 %v5647
    %v6011 = vunpack.c.h.b16 %v5647
    %v6012 = vunpack.c.l.b16 %v5648
    %v6013 = vunpack.c.h.b16 %v5648
    %v6014 = vunpack.c.l.b16 %v5649
    %v6015 = vunpack.c.h.b16 %v5649
    %v6016 = vunpack.c.l.b16 %v5650
    %v6017 = vunpack.c.h.b16 %v5650
    %v6018 = vunpack.c.l.b16 %v5651
    %v6019 = vunpack.c.h.b16 %v5651
    %v6020 = vunpack.c.l.b16 %v5652
    %v6021 = vunpack.c.h.b16 %v5652
    %v6022 = vunpack.c.l.b16 %v5653
    %v6023 = vunpack.c.h.b16 %v5653
    %v6024 = vunpack.c.l.b16 %v5654
    %v6025 = vunpack.c.h.b16 %v5654
    %v6026 = vunpack.c.l.b16 %v5655
    %v6027 = vunpack.c.h.b16 %v5655
    %v6028 = vunpack.c.l.b16 %v5656
    %v6029 = vunpack.c.h.b16 %v5656
    %v6030 = vunpack.c.l.b16 %v5657
    %v6031 = vunpack.c.h.b16 %v5657
    %v6032 = vunpack.c.l.b16 %v5658
    %v6033 = vunpack.c.h.b16 %v5658
    %v6034 = vunpack.c.l.b16 %v5659
    %v6035 = vunpack.c.h.b16 %v5659
    %v6036 = vunpack.c.l.b16 %v5660
    %v6037 = vunpack.c.h.b16 %v5660
    %v6038 = vunpack.c.l.b16 %v5661
    %v6039 = vunpack.c.h.b16 %v5661
    %v6040 = vunpack.c.l.b16 %v5662
    %v6041 = vunpack.c.h.b16 %v5662
    %v6042 = vunpack.c.l.b16 %v5663
    %v6043 = vunpack.c.h.b16 %v5663
    %v6044 = vunpack.c.l.b16 %v5664
    %v6045 = vunpack.c.h.b16 %v5664
    %v6046 = vunpack.c.l.b16 %v5665
    %v6047 = vunpack.c.h.b16 %v5665
    %v6048 = vunpack.c.l.b16 %v5666
    %v6049 = vunpack.c.h.b16 %v5666
    %v6050 = vunpack.c.l.b16 %v5667
    %v6051 = vunpack.c.h.b16 %v5667
    %v6052 = vunpack.c.l.b16 %v5668
    %v6053 = vunpack.c.h.b16 %v5668
    %v6054 = vunpack.c.l.b16 %v5669
    %v6055 = vunpack.c.h.b16 %v5669
    %v6056 = vunpack.c.l.b16 %v5670
    %v6057 = vunpack.c.h.b16 %v5670
    %v6058 = vunpack.c.l.b16 %v5671
    %v6059 = vunpack.c.h.b16 %v5671
    %v6060 = vunpack.c.l.b16 %v5672
    %v6061 = vunpack.c.h.b16 %v5672
    %v6062 = vunpack.c.l.b16 %v5673
    %v6063 = vunpack.c.h.b16 %v5673
    %v6064 = vunpack.c.l.b16 %v5674
    %v6065 = vunpack.c.h.b16 %v5674
    %v6066 = vunpack.c.l.b16 %v5675
    %v6067 = vunpack.c.h.b16 %v5675
    %v6068 = vunpack.c.l.b16 %v5676
    %v6069 = vunpack.c.h.b16 %v5676
    %v6070 = vunpack.c.l.b16 %v5677
    %v6071 = vunpack.c.h.b16 %v5677
    %v6072 = vunpack.c.l.b16 %v5678
    %v6073 = vunpack.c.h.b16 %v5678
    %v6074 = vunpack.c.l.b16 %v5679
    %v6075 = vunpack.c.h.b16 %v5679
    %v6076 = vunpack.c.l.b16 %v5680
    %v6077 = vunpack.c.h.b16 %v5680
    %v6078 = vunpack.c.l.b16 %v5681
    %v6079 = vunpack.c.h.b16 %v5681
    %v6080 = vunpack.c.l.b16 %v5682
    %v6081 = vunpack.c.h.b16 %v5682
    %v6082 = vunpack.c.l.b16 %v5683
    %v6083 = vunpack.c.h.b16 %v5683
    %v6084 = vunpack.c.l.b16 %v5684
    %v6085 = vunpack.c.h.b16 %v5684
    %v6086 = vunpack.c.l.b16 %v5685
    %v6087 = vunpack.c.h.b16 %v5685
    %v6088 = vunpack.c.l.b16 %v5686
    %v6089 = vunpack.c.h.b16 %v5686
    %v6090 = vunpack.c.l.b16 %v5687
    %v6091 = vunpack.c.h.b16 %v5687
    %v6092 = vunpack.c.l.b16 %v5688
    %v6093 = vunpack.c.h.b16 %v5688
    %v6094 = vunpack.c.l.b16 %v5689
    %v6095 = vunpack.c.h.b16 %v5689
    %v6096 = vpack.c.b16 %v5844, %v5840
    %v6097 = vpack.c.b16 %v5845, %v5841
    %v6098 = vpack.c.b16 %v5846, %v5842
    %v6099 = vpack.c.b16 %v5847, %v5843
    %v6100 = vpack.c.b16 %v5852, %v5848
    %v6101 = vpack.c.b16 %v5853, %v5849
    %v6102 = vpack.c.b16 %v5854, %v5850
    %v6103 = vpack.c.b16 %v5855, %v5851
    %v6104 = vpack.c.b16 %v5860, %v5856
    %v6105 = vpack.c.b16 %v5861, %v5857
    %v6106 = vpack.c.b16 %v5862, %v5858
    %v6107 = vpack.c.b16 %v5863, %v5859
    %v6108 = vpack.c.b16 %v5868, %v5864
    %v6109 = vpack.c.b16 %v5869, %v5865
    %v6110 = vpack.c.b16 %v5870, %v5866
    %v6111 = vpack.c.b16 %v5871, %v5867
    %v6112 = vpack.c.b16 %v5876, %v5872
    %v6113 = vpack.c.b16 %v5877, %v5873
    %v6114 = vpack.c.b16 %v5878, %v5874
    %v6115 = vpack.c.b16 %v5879, %v5875
    %v6116 = vpack.c.b16 %v5884, %v5880
    %v6117 = vpack.c.b16 %v5885, %v5881
    %v6118 = vpack.c.b16 %v5886, %v5882
    %v6119 = vpack.c.b16 %v5887, %v5883
    %v6120 = vpack.c.b16 %v5892, %v5888
    %v6121 = vpack.c.b16 %v5893, %v5889
    %v6122 = vpack.c.b16 %v5894, %v5890
    %v6123 = vpack.c.b16 %v5895, %v5891
    %v6124 = vpack.c.b16 %v5900, %v5896
    %v6125 = vpack.c.b16 %v5901, %v5897
    %v6126 = vpack.c.b16 %v5902, %v5898
    %v6127 = vpack.c.b16 %v5903, %v5899
    %v6128 = vpack.c.b16 %v5908, %v5904
    %v6129 = vpack.c.b16 %v5909, %v5905
    %v6130 = vpack.c.b16 %v5910, %v5906
    %v6131 = vpack.c.b16 %v5911, %v5907
    %v6132 = vpack.c.b16 %v5916, %v5912
    %v6133 = vpack.c.b16 %v5917, %v5913
    %v6134 = vpack.c.b16 %v5918, %v5914
    %v6135 = vpack.c.b16 %v5919, %v5915
    %v6136 = vpack.c.b16 %v5924, %v5920
    %v6137 = vpack.c.b16 %v5925, %v5921
    %v6138 = vpack.c.b16 %v5926, %v5922
    %v6139 = vpack.c.b16 %v5927, %v5923
    %v6140 = vpack.c.b16 %v5932, %v5928
    %v6141 = vpack.c.b16 %v5933, %v5929
    %v6142 = vpack.c.b16 %v5934, %v5930
    %v6143 = vpack.c.b16 %v5935, %v5931
    %v6144 = vpack.c.b16 %v5940, %v5936
    %v6145 = vpack.c.b16 %v5941, %v5937
    %v6146 = vpack.c.b16 %v5942, %v5938
    %v6147 = vpack.c.b16 %v5943, %v5939
    %v6148 = vpack.c.b16 %v5948, %v5944
    %v6149 = vpack.c.b16 %v5949, %v5945
    %v6150 = vpack.c.b16 %v5950, %v5946
    %v6151 = vpack.c.b16 %v5951, %v5947
    %v6152 = vpack.c.b16 %v5956, %v5952
    %v6153 = vpack.c.b16 %v5957, %v5953
    %v6154 = vpack.c.b16 %v5958, %v5954
    %v6155 = vpack.c.b16 %v5959, %v5955
    %v6156 = vpack.c.b16 %v5964, %v5960
    %v6157 = vpack.c.b16 %v5965, %v5961
    %v6158 = vpack.c.b16 %v5966, %v5962
    %v6159 = vpack.c.b16 %v5967, %v5963
    %v6160 = vpack.c.b16 %v5972, %v5968
    %v6161 = vpack.c.b16 %v5973, %v5969
    %v6162 = vpack.c.b16 %v5974, %v5970
    %v6163 = vpack.c.b16 %v5975, %v5971
    %v6164 = vpack.c.b16 %v5980, %v5976
    %v6165 = vpack.c.b16 %v5981, %v5977
    %v6166 = vpack.c.b16 %v5982, %v5978
    %v6167 = vpack.c.b16 %v5983, %v5979
    %v6168 = vpack.c.b16 %v5988, %v5984
    %v6169 = vpack.c.b16 %v5989, %v5985
    %v6170 = vpack.c.b16 %v5990, %v5986
    %v6171 = vpack.c.b16 %v5991, %v5987
    %v6172 = vpack.c.b16 %v5996, %v5992
    %v6173 = vpack.c.b16 %v5997, %v5993
    %v6174 = vpack.c.b16 %v5998, %v5994
    %v6175 = vpack.c.b16 %v5999, %v5995
    %v6176 = vpack.c.b16 %v6004, %v6000
    %v6177 = vpack.c.b16 %v6005, %v6001
    %v6178 = vpack.c.b16 %v6006, %v6002
    %v6179 = vpack.c.b16 %v6007, %v6003
    %v6180 = vpack.c.b16 %v6012, %v6008
    %v6181 = vpack.c.b16 %v6013, %v6009
    %v6182 = vpack.c.b16 %v6014, %v6010
    %v6183 = vpack.c.b16 %v6015, %v6011
    %v6184 = vpack.c.b16 %v6020, %v6016
    %v6185 = vpack.c.b16 %v6021, %v6017
    %v6186 = vpack.c.b16 %v6022, %v6018
    %v6187 = vpack.c.b16 %v6023, %v6019
    %v6188 = vpack.c.b16 %v6028, %v6024
    %v6189 = vpack.c.b16 %v6029, %v6025
    %v6190 = vpack.c.b16 %v6030, %v6026
    %v6191 = vpack.c.b16 %v6031, %v6027
    %v6192 = vpack.c.b16 %v6036, %v6032
    %v6193 = vpack.c.b16 %v6037, %v6033
    %v6194 = vpack.c.b16 %v6038, %v6034
    %v6195 = vpack.c.b16 %v6039, %v6035
    %v6196 = vpack.c.b16 %v6044, %v6040
    %v6197 = vpack.c.b16 %v6045, %v6041
    %v6198 = vpack.c.b16 %v6046, %v6042
    %v6199 = vpack.c.b16 %v6047, %v6043
    %v6200 = vpack.c.b16 %v6052, %v6048
    %v6201 = vpack.c.b16 %v6053, %v6049
    %v6202 = vpack.c.b16 %v6054, %v6050
    %v6203 = vpack.c.b16 %v6055, %v6051
    %v6204 = vpack.c.b16 %v6060, %v6056
    %v6205 = vpack.c.b16 %v6061, %v6057
    %v6206 = vpack.c.b16 %v6062, %v6058
    %v6207 = vpack.c.b16 %v6063, %v6059
    %v6208 = vpack.c.b16 %v6068, %v6064
    %v6209 = vpack.c.b16 %v6069, %v6065
    %v6210 = vpack.c.b16 %v6070, %v6066
    %v6211 = vpack.c.b16 %v6071, %v6067
    %v6212 = vpack.c.b16 %v6076, %v6072
    %v6213 = vpack.c.b16 %v6077, %v6073
    %v6214 = vpack.c.b16 %v6078, %v6074
    %v6215 = vpack.c.b16 %v6079, %v6075
    %v6216 = vpack.c.b16 %v6084, %v6080
    %v6217 = vpack.c.b16 %v6085, %v6081
    %v6218 = vpack.c.b16 %v6086, %v6082
    %v6219 = vpack.c.b16 %v6087, %v6083
    %v6220 = vpack.c.b16 %v6092, %v6088
    %v6221 = vpack.c.b16 %v6093, %v6089
    %v6222 = vpack.c.b16 %v6094, %v6090
    %v6223 = vpack.c.b16 %v6095, %v6091
    %6352 = vmatprep.subr.bf16.mxu0 %v6125
    %6353 = vmatpush1.bf16.msra.mxu0 %v6124
    %6354 = vmatprep.subr.bf16.mxu0 %v6121
    %6355 = vmatpush1.bf16.msra.mxu0 %v6120
    %6356 = vmatprep.subr.bf16.mxu0 %v6117
    %6357 = vmatpush1.bf16.msra.mxu0 %v6116
    %6358 = vmatprep.subr.bf16.mxu0 %v6113
    %6359 = vmatpush1.bf16.msra.mxu0 %v6112
    %6360 = vmatprep.subr.bf16.mxu0 %v6109
    %6361 = vmatpush1.bf16.msra.mxu0 %v6108
    %6362 = vmatprep.subr.bf16.mxu0 %v6105
    %6363 = vmatpush1.bf16.msra.mxu0 %v6104
    %6364 = vmatprep.subr.bf16.mxu0 %v6101
    %6365 = vmatpush1.bf16.msra.mxu0 %v6100
    %6366 = vmatprep.subr.bf16.mxu0 %v6097
    %6367 = vmatpush1.bf16.msra.mxu0 %v6096
    %6368 = vmatprep.subr.bf16.mxu0 %v6157
    %6369 = vmatpush2.bf16.msra.mxu0 %v6156
    %6370 = vmatprep.subr.bf16.mxu0 %v6153
    %6371 = vmatpush2.bf16.msra.mxu0 %v6152
    %6372 = vmatprep.subr.bf16.mxu0 %v6149
    %6373 = vmatpush2.bf16.msra.mxu0 %v6148
    %6374 = vmatprep.subr.bf16.mxu0 %v6145
    %6375 = vmatpush2.bf16.msra.mxu0 %v6144
    %6376 = vmatprep.subr.bf16.mxu0 %v6141
    %6377 = vmatpush2.bf16.msra.mxu0 %v6140
    %6378 = vmatprep.subr.bf16.mxu0 %v6137
    %6379 = vmatpush2.bf16.msra.mxu0 %v6136
    %6380 = vmatprep.subr.bf16.mxu0 %v6133
    %6381 = vmatpush2.bf16.msra.mxu0 %v6132
    %6382 = vmatprep.subr.bf16.mxu0 %v6129
    %6383 = vmatpush2.bf16.msra.mxu0 %v6128
    %6384 = vmatprep.mubr.bf16.mxu0 %v5559
    %6385 = vmatmul.mubr.bf16.gmra.mxu0 %v5558
    %v6386 = vpop.f32.mrf.mxu0
    %v6387 = vadd.f32 %v5695, %v6386
    %v6388 = vpop.f32.mrf.mxu0
    %v6389 = vadd.f32 %v5699, %v6388
    %v6390 = vpop.f32.mrf.mxu0
    %v6391 = vpop.f32.mrf.mxu0
    %6392 = vdwg.mxu0
    %6393 = vmatprep.subr.bf16.mxu0 %v6189
    %6394 = vmatpush1.bf16.msra.mxu0 %v6188
    %6395 = vmatprep.subr.bf16.mxu0 %v6185
    %6396 = vmatpush1.bf16.msra.mxu0 %v6184
    %6397 = vmatprep.subr.bf16.mxu0 %v6181
    %6398 = vmatpush1.bf16.msra.mxu0 %v6180
    %6399 = vmatprep.subr.bf16.mxu0 %v6177
    %6400 = vmatpush1.bf16.msra.mxu0 %v6176
    %6401 = vmatprep.subr.bf16.mxu0 %v6173
    %6402 = vmatpush1.bf16.msra.mxu0 %v6172
    %6403 = vmatprep.subr.bf16.mxu0 %v6169
    %6404 = vmatpush1.bf16.msra.mxu0 %v6168
    %6405 = vmatprep.subr.bf16.mxu0 %v6165
    %6406 = vmatpush1.bf16.msra.mxu0 %v6164
    %6407 = vmatprep.subr.bf16.mxu0 %v6161
    %6408 = vmatpush1.bf16.msra.mxu0 %v6160
    %6409 = vmatprep.subr.bf16.mxu0 %v6221
    %6410 = vmatpush2.bf16.msra.mxu0 %v6220
    %6411 = vmatprep.subr.bf16.mxu0 %v6217
    %6412 = vmatpush2.bf16.msra.mxu0 %v6216
    %6413 = vmatprep.subr.bf16.mxu0 %v6213
    %6414 = vmatpush2.bf16.msra.mxu0 %v6212
    %6415 = vmatprep.subr.bf16.mxu0 %v6209
    %6416 = vmatpush2.bf16.msra.mxu0 %v6208
    %6417 = vmatprep.subr.bf16.mxu0 %v6205
    %6418 = vmatpush2.bf16.msra.mxu0 %v6204
    %6419 = vmatprep.subr.bf16.mxu0 %v6201
    %6420 = vmatpush2.bf16.msra.mxu0 %v6200
    %6421 = vmatprep.subr.bf16.mxu0 %v6197
    %6422 = vmatpush2.bf16.msra.mxu0 %v6196
    %6423 = vmatprep.subr.bf16.mxu0 %v6193
    %6424 = vmatpush2.bf16.msra.mxu0 %v6192
    %6425 = vmatprep.mubr.bf16.mxu0 %v5561
    %6426 = vmatmul.mubr.bf16.gmra.mxu0 %v5560
    %v6427 = vpop.f32.mrf.mxu0
    %v6428 = vadd.f32 %v6387, %v6427
    %v6429 = vpop.f32.mrf.mxu0
    %v6430 = vadd.f32 %v6389, %v6429
    %v6431 = vpop.f32.mrf.mxu0
    %v6432 = vpop.f32.mrf.mxu0
    %6433 = vdwg.mxu0
    %6434 = vmatprep.subr.bf16.mxu0 %v6127
    %6435 = vmatpush1.bf16.msra.mxu0 %v6126
    %6436 = vmatprep.subr.bf16.mxu0 %v6123
    %6437 = vmatpush1.bf16.msra.mxu0 %v6122
    %6438 = vmatprep.subr.bf16.mxu0 %v6119
    %6439 = vmatpush1.bf16.msra.mxu0 %v6118
    %6440 = vmatprep.subr.bf16.mxu0 %v6115
    %6441 = vmatpush1.bf16.msra.mxu0 %v6114
    %6442 = vmatprep.subr.bf16.mxu0 %v6111
    %6443 = vmatpush1.bf16.msra.mxu0 %v6110
    %6444 = vmatprep.subr.bf16.mxu0 %v6107
    %6445 = vmatpush1.bf16.msra.mxu0 %v6106
    %6446 = vmatprep.subr.bf16.mxu0 %v6103
    %6447 = vmatpush1.bf16.msra.mxu0 %v6102
    %6448 = vmatprep.subr.bf16.mxu0 %v6099
    %6449 = vmatpush1.bf16.msra.mxu0 %v6098
    %6450 = vmatprep.subr.bf16.mxu0 %v6159
    %6451 = vmatpush2.bf16.msra.mxu0 %v6158
    %6452 = vmatprep.subr.bf16.mxu0 %v6155
    %6453 = vmatpush2.bf16.msra.mxu0 %v6154
    %6454 = vmatprep.subr.bf16.mxu0 %v6151
    %6455 = vmatpush2.bf16.msra.mxu0 %v6150
    %6456 = vmatprep.subr.bf16.mxu0 %v6147
    %6457 = vmatpush2.bf16.msra.mxu0 %v6146
    %6458 = vmatprep.subr.bf16.mxu0 %v6143
    %6459 = vmatpush2.bf16.msra.mxu0 %v6142
    %6460 = vmatprep.subr.bf16.mxu0 %v6139
    %6461 = vmatpush2.bf16.msra.mxu0 %v6138
    %6462 = vmatprep.subr.bf16.mxu0 %v6135
    %6463 = vmatpush2.bf16.msra.mxu0 %v6134
    %6464 = vmatprep.subr.bf16.mxu0 %v6131
    %6465 = vmatpush2.bf16.msra.mxu0 %v6130
    %6466 = vmatprep.mubr.bf16.mxu0 %v5559
    %6467 = vmatmul.mubr.bf16.gmra.mxu0 %v5558
    %v6468 = vpop.f32.mrf.mxu0
    %v6469 = vadd.f32 %v5703, %v6468
    %v6470 = vpop.f32.mrf.mxu0
    %v6471 = vadd.f32 %v5707, %v6470
    %v6472 = vpop.f32.mrf.mxu0
    %v6473 = vpop.f32.mrf.mxu0
    %6474 = vdwg.mxu0
    %6475 = vmatprep.subr.bf16.mxu0 %v6191
    %6476 = vmatpush1.bf16.msra.mxu0 %v6190
    %6477 = vmatprep.subr.bf16.mxu0 %v6187
    %6478 = vmatpush1.bf16.msra.mxu0 %v6186
    %6479 = vmatprep.subr.bf16.mxu0 %v6183
    %6480 = vmatpush1.bf16.msra.mxu0 %v6182
    %6481 = vmatprep.subr.bf16.mxu0 %v6179
    %6482 = vmatpush1.bf16.msra.mxu0 %v6178
    %6483 = vmatprep.subr.bf16.mxu0 %v6175
    %6484 = vmatpush1.bf16.msra.mxu0 %v6174
    %6485 = vmatprep.subr.bf16.mxu0 %v6171
    %6486 = vmatpush1.bf16.msra.mxu0 %v6170
    %6487 = vmatprep.subr.bf16.mxu0 %v6167
    %6488 = vmatpush1.bf16.msra.mxu0 %v6166
    %6489 = vmatprep.subr.bf16.mxu0 %v6163
    %6490 = vmatpush1.bf16.msra.mxu0 %v6162
    %6491 = vmatprep.subr.bf16.mxu0 %v6223
    %6492 = vmatpush2.bf16.msra.mxu0 %v6222
    %6493 = vmatprep.subr.bf16.mxu0 %v6219
    %6494 = vmatpush2.bf16.msra.mxu0 %v6218
    %6495 = vmatprep.subr.bf16.mxu0 %v6215
    %6496 = vmatpush2.bf16.msra.mxu0 %v6214
    %6497 = vmatprep.subr.bf16.mxu0 %v6211
    %6498 = vmatpush2.bf16.msra.mxu0 %v6210
    %6499 = vmatprep.subr.bf16.mxu0 %v6207
    %6500 = vmatpush2.bf16.msra.mxu0 %v6206
    %6501 = vmatprep.subr.bf16.mxu0 %v6203
    %6502 = vmatpush2.bf16.msra.mxu0 %v6202
    %6503 = vmatprep.subr.bf16.mxu0 %v6199
    %6504 = vmatpush2.bf16.msra.mxu0 %v6198
    %6505 = vmatprep.subr.bf16.mxu0 %v6195
    %6506 = vmatpush2.bf16.msra.mxu0 %v6194
    %6507 = vmatprep.mubr.bf16.mxu0 %v5561
    %6508 = vmatmul.mubr.bf16.gmra.mxu0 %v5560
    %v6509 = vpop.f32.mrf.mxu0
    %v6510 = vadd.f32 %v6469, %v6509
    %v6511 = vpop.f32.mrf.mxu0
    %v6512 = vadd.f32 %v6471, %v6511
    %v6513 = vpop.f32.mrf.mxu0
    %v6514 = vpop.f32.mrf.mxu0
    %6515 = vdwg.mxu0
    %v6516 = vmax.f32 %v6428, 0.0
    %v6517 = vmax.f32 %v6430, 0.0
    %v6518 = vmax.f32 %v6510, 0.0
    %v6519 = vmax.f32 %v6512, 0.0
    %v6520 = vpack.c.bf16 %v6516, %v6516
    %v6521 = vpack.c.bf16 %v6517, %v6517
    %v6522 = vpack.c.bf16 %v6518, %v6518
    %v6523 = vpack.c.bf16 %v6519, %v6519
    %v6524 = vld [vmem:[#allocation13] sm:$0xf]
    %v6525 = vld [vmem:[#allocation13 + $0x4] sm:$0xf]
    %v6526 = vld [vmem:[#allocation13 + $0x8] sm:$0xf]
    %v6527 = vld [vmem:[#allocation13 + $0xc] sm:$0xf]
    %v6528 = vld [vmem:[#allocation13 + $0x10] sm:$0xf]
    %v6529 = vld [vmem:[#allocation13 + $0x14] sm:$0xf]
    %v6530 = vld [vmem:[#allocation13 + $0x18] sm:$0xf]
    %v6531 = vld [vmem:[#allocation13 + $0x1c] sm:$0xf]
    %v6532 = vld [vmem:[#allocation13 + $0x20] sm:$0xf]
    %v6533 = vld [vmem:[#allocation13 + $0x24] sm:$0xf]
    %v6534 = vld [vmem:[#allocation13 + $0x28] sm:$0xf]
    %v6535 = vld [vmem:[#allocation13 + $0x2c] sm:$0xf]
    %v6536 = vld [vmem:[#allocation13 + $0x30] sm:$0xf]
    %v6537 = vld [vmem:[#allocation13 + $0x34] sm:$0xf]
    %v6538 = vld [vmem:[#allocation13 + $0x38] sm:$0xf]
    %v6539 = vld [vmem:[#allocation13 + $0x3c] sm:$0xf]
    %v6540 = vld [vmem:[#allocation13 + $0x40] sm:$0xf]
    %v6541 = vld [vmem:[#allocation13 + $0x44] sm:$0xf]
    %v6542 = vld [vmem:[#allocation13 + $0x48] sm:$0xf]
    %v6543 = vld [vmem:[#allocation13 + $0x4c] sm:$0xf]
    %v6544 = vld [vmem:[#allocation13 + $0x50] sm:$0xf]
    %v6545 = vld [vmem:[#allocation13 + $0x54] sm:$0xf]
    %v6546 = vld [vmem:[#allocation13 + $0x58] sm:$0xf]
    %v6547 = vld [vmem:[#allocation13 + $0x5c] sm:$0xf]
    %v6548 = vld [vmem:[#allocation13 + $0x60] sm:$0xf]
    %v6549 = vld [vmem:[#allocation13 + $0x64] sm:$0xf]
    %v6550 = vld [vmem:[#allocation13 + $0x68] sm:$0xf]
    %v6551 = vld [vmem:[#allocation13 + $0x6c] sm:$0xf]
    %v6552 = vld [vmem:[#allocation13 + $0x70] sm:$0xf]
    %v6553 = vld [vmem:[#allocation13 + $0x74] sm:$0xf]
    %v6554 = vld [vmem:[#allocation13 + $0x78] sm:$0xf]
    %v6555 = vld [vmem:[#allocation13 + $0x7c] sm:$0xf]
    %v6556 = vld [vmem:[#allocation13 + $0x80] sm:$0xf]
    %v6557 = vld [vmem:[#allocation13 + $0x84] sm:$0xf]
    %v6558 = vld [vmem:[#allocation13 + $0x88] sm:$0xf]
    %v6559 = vld [vmem:[#allocation13 + $0x8c] sm:$0xf]
    %v6560 = vld [vmem:[#allocation13 + $0x90] sm:$0xf]
    %v6561 = vld [vmem:[#allocation13 + $0x94] sm:$0xf]
    %v6562 = vld [vmem:[#allocation13 + $0x98] sm:$0xf]
    %v6563 = vld [vmem:[#allocation13 + $0x9c] sm:$0xf]
    %v6564 = vld [vmem:[#allocation13 + $0xa0] sm:$0xf]
    %v6565 = vld [vmem:[#allocation13 + $0xa4] sm:$0xf]
    %v6566 = vld [vmem:[#allocation13 + $0xa8] sm:$0xf]
    %v6567 = vld [vmem:[#allocation13 + $0xac] sm:$0xf]
    %v6568 = vld [vmem:[#allocation13 + $0xb0] sm:$0xf]
    %v6569 = vld [vmem:[#allocation13 + $0xb4] sm:$0xf]
    %v6570 = vld [vmem:[#allocation13 + $0xb8] sm:$0xf]
    %v6571 = vld [vmem:[#allocation13 + $0xbc] sm:$0xf]
    %v6572 = vld [vmem:[#allocation13 + $0xc0] sm:$0xf]
    %v6573 = vld [vmem:[#allocation13 + $0xc4] sm:$0xf]
    %v6574 = vld [vmem:[#allocation13 + $0xc8] sm:$0xf]
    %v6575 = vld [vmem:[#allocation13 + $0xcc] sm:$0xf]
    %v6576 = vld [vmem:[#allocation13 + $0xd0] sm:$0xf]
    %v6577 = vld [vmem:[#allocation13 + $0xd4] sm:$0xf]
    %v6578 = vld [vmem:[#allocation13 + $0xd8] sm:$0xf]
    %v6579 = vld [vmem:[#allocation13 + $0xdc] sm:$0xf]
    %v6580 = vld [vmem:[#allocation13 + $0xe0] sm:$0xf]
    %v6581 = vld [vmem:[#allocation13 + $0xe4] sm:$0xf]
    %v6582 = vld [vmem:[#allocation13 + $0xe8] sm:$0xf]
    %v6583 = vld [vmem:[#allocation13 + $0xec] sm:$0xf]
    %v6584 = vld [vmem:[#allocation13 + $0xf0] sm:$0xf]
    %v6585 = vld [vmem:[#allocation13 + $0xf4] sm:$0xf]
    %v6586 = vld [vmem:[#allocation13 + $0xf8] sm:$0xf]
    %v6587 = vld [vmem:[#allocation13 + $0xfc] sm:$0xf]
    %v6588 = vld [vmem:[#allocation14] sm:$0x1]
    %v6590 = vlaneseq
    %v6591 = vshrl.u32 %v6590, 7
    %v6592 = vsub.s32 0, %v6591
    %v6593 = vrot.slane %v6588, %v6592
    %v6659 = vunpack.c.l.b16 %v6524
    %v6660 = vunpack.c.l.b16 %v6525
    %v6661 = vunpack.c.l.b16 %v6526
    %v6662 = vunpack.c.l.b16 %v6527
    %v6663 = vunpack.c.l.b16 %v6528
    %v6664 = vunpack.c.l.b16 %v6529
    %v6665 = vunpack.c.l.b16 %v6530
    %v6666 = vunpack.c.l.b16 %v6531
    %v6667 = vunpack.c.l.b16 %v6532
    %v6668 = vunpack.c.l.b16 %v6533
    %v6669 = vunpack.c.l.b16 %v6534
    %v6670 = vunpack.c.l.b16 %v6535
    %v6671 = vunpack.c.l.b16 %v6536
    %v6672 = vunpack.c.l.b16 %v6537
    %v6673 = vunpack.c.l.b16 %v6538
    %v6674 = vunpack.c.l.b16 %v6539
    %v6675 = vunpack.c.l.b16 %v6540
    %v6676 = vunpack.c.l.b16 %v6541
    %v6677 = vunpack.c.l.b16 %v6542
    %v6678 = vunpack.c.l.b16 %v6543
    %v6679 = vunpack.c.l.b16 %v6544
    %v6680 = vunpack.c.l.b16 %v6545
    %v6681 = vunpack.c.l.b16 %v6546
    %v6682 = vunpack.c.l.b16 %v6547
    %v6683 = vunpack.c.l.b16 %v6548
    %v6684 = vunpack.c.l.b16 %v6549
    %v6685 = vunpack.c.l.b16 %v6550
    %v6686 = vunpack.c.l.b16 %v6551
    %v6687 = vunpack.c.l.b16 %v6552
    %v6688 = vunpack.c.l.b16 %v6553
    %v6689 = vunpack.c.l.b16 %v6554
    %v6690 = vunpack.c.l.b16 %v6555
    %v6691 = vunpack.c.l.b16 %v6556
    %v6692 = vunpack.c.l.b16 %v6557
    %v6693 = vunpack.c.l.b16 %v6558
    %v6694 = vunpack.c.l.b16 %v6559
    %v6695 = vunpack.c.l.b16 %v6560
    %v6696 = vunpack.c.l.b16 %v6561
    %v6697 = vunpack.c.l.b16 %v6562
    %v6698 = vunpack.c.l.b16 %v6563
    %v6699 = vunpack.c.l.b16 %v6564
    %v6700 = vunpack.c.l.b16 %v6565
    %v6701 = vunpack.c.l.b16 %v6566
    %v6702 = vunpack.c.l.b16 %v6567
    %v6703 = vunpack.c.l.b16 %v6568
    %v6704 = vunpack.c.l.b16 %v6569
    %v6705 = vunpack.c.l.b16 %v6570
    %v6706 = vunpack.c.l.b16 %v6571
    %v6707 = vunpack.c.l.b16 %v6572
    %v6708 = vunpack.c.l.b16 %v6573
    %v6709 = vunpack.c.l.b16 %v6574
    %v6710 = vunpack.c.l.b16 %v6575
    %v6711 = vunpack.c.l.b16 %v6576
    %v6712 = vunpack.c.l.b16 %v6577
    %v6713 = vunpack.c.l.b16 %v6578
    %v6714 = vunpack.c.l.b16 %v6579
    %v6715 = vunpack.c.l.b16 %v6580
    %v6716 = vunpack.c.l.b16 %v6581
    %v6717 = vunpack.c.l.b16 %v6582
    %v6718 = vunpack.c.l.b16 %v6583
    %v6719 = vunpack.c.l.b16 %v6584
    %v6720 = vunpack.c.l.b16 %v6585
    %v6721 = vunpack.c.l.b16 %v6586
    %v6722 = vunpack.c.l.b16 %v6587
    %v6723 = vpack.c.b16 %v6660, %v6659
    %v6724 = vpack.c.b16 %v6662, %v6661
    %v6725 = vpack.c.b16 %v6664, %v6663
    %v6726 = vpack.c.b16 %v6666, %v6665
    %v6727 = vpack.c.b16 %v6668, %v6667
    %v6728 = vpack.c.b16 %v6670, %v6669
    %v6729 = vpack.c.b16 %v6672, %v6671
    %v6730 = vpack.c.b16 %v6674, %v6673
    %v6731 = vpack.c.b16 %v6676, %v6675
    %v6732 = vpack.c.b16 %v6678, %v6677
    %v6733 = vpack.c.b16 %v6680, %v6679
    %v6734 = vpack.c.b16 %v6682, %v6681
    %v6735 = vpack.c.b16 %v6684, %v6683
    %v6736 = vpack.c.b16 %v6686, %v6685
    %v6737 = vpack.c.b16 %v6688, %v6687
    %v6738 = vpack.c.b16 %v6690, %v6689
    %v6739 = vpack.c.b16 %v6692, %v6691
    %v6740 = vpack.c.b16 %v6694, %v6693
    %v6741 = vpack.c.b16 %v6696, %v6695
    %v6742 = vpack.c.b16 %v6698, %v6697
    %v6743 = vpack.c.b16 %v6700, %v6699
    %v6744 = vpack.c.b16 %v6702, %v6701
    %v6745 = vpack.c.b16 %v6704, %v6703
    %v6746 = vpack.c.b16 %v6706, %v6705
    %v6747 = vpack.c.b16 %v6708, %v6707
    %v6748 = vpack.c.b16 %v6710, %v6709
    %v6749 = vpack.c.b16 %v6712, %v6711
    %v6750 = vpack.c.b16 %v6714, %v6713
    %v6751 = vpack.c.b16 %v6716, %v6715
    %v6752 = vpack.c.b16 %v6718, %v6717
    %v6753 = vpack.c.b16 %v6720, %v6719
    %v6754 = vpack.c.b16 %v6722, %v6721
    %6787 = vmatprep.subr.bf16.mxu0 0
    %6788 = vmatpush1.bf16.msra.mxu0 %v6730
    %6789 = vmatprep.subr.bf16.mxu0 0
    %6790 = vmatpush1.bf16.msra.mxu0 %v6729
    %6791 = vmatprep.subr.bf16.mxu0 0
    %6792 = vmatpush1.bf16.msra.mxu0 %v6728
    %6793 = vmatprep.subr.bf16.mxu0 0
    %6794 = vmatpush1.bf16.msra.mxu0 %v6727
    %6795 = vmatprep.subr.bf16.mxu0 0
    %6796 = vmatpush1.bf16.msra.mxu0 %v6726
    %6797 = vmatprep.subr.bf16.mxu0 0
    %6798 = vmatpush1.bf16.msra.mxu0 %v6725
    %6799 = vmatprep.subr.bf16.mxu0 0
    %6800 = vmatpush1.bf16.msra.mxu0 %v6724
    %6801 = vmatprep.subr.bf16.mxu0 0
    %6802 = vmatpush1.bf16.msra.mxu0 %v6723
    %6803 = vmatprep.subr.bf16.mxu0 0
    %6804 = vmatpush2.bf16.msra.mxu0 %v6738
    %6805 = vmatprep.subr.bf16.mxu0 0
    %6806 = vmatpush2.bf16.msra.mxu0 %v6737
    %6807 = vmatprep.subr.bf16.mxu0 0
    %6808 = vmatpush2.bf16.msra.mxu0 %v6736
    %6809 = vmatprep.subr.bf16.mxu0 0
    %6810 = vmatpush2.bf16.msra.mxu0 %v6735
    %6811 = vmatprep.subr.bf16.mxu0 0
    %6812 = vmatpush2.bf16.msra.mxu0 %v6734
    %6813 = vmatprep.subr.bf16.mxu0 0
    %6814 = vmatpush2.bf16.msra.mxu0 %v6733
    %6815 = vmatprep.subr.bf16.mxu0 0
    %6816 = vmatpush2.bf16.msra.mxu0 %v6732
    %6817 = vmatprep.subr.bf16.mxu0 0
    %6818 = vmatpush2.bf16.msra.mxu0 %v6731
    %6819 = vmatprep.mubr.bf16.mxu0 %v6521
    %6820 = vmatmul.mubr.bf16.gmra.mxu0 %v6520
    %v6821 = vpop.f32.mrf.mxu0
    %v6822 = vadd.f32 %v6593, %v6821
    %v6823 = vpop.f32.mrf.mxu0
    %v6824 = vpop.f32.mrf.mxu0
    %v6825 = vpop.f32.mrf.mxu0
    %6826 = vdwg.mxu0
    %6827 = vmatprep.subr.bf16.mxu0 0
    %6828 = vmatpush1.bf16.msra.mxu0 %v6746
    %6829 = vmatprep.subr.bf16.mxu0 0
    %6830 = vmatpush1.bf16.msra.mxu0 %v6745
    %6831 = vmatprep.subr.bf16.mxu0 0
    %6832 = vmatpush1.bf16.msra.mxu0 %v6744
    %6833 = vmatprep.subr.bf16.mxu0 0
    %6834 = vmatpush1.bf16.msra.mxu0 %v6743
    %6835 = vmatprep.subr.bf16.mxu0 0
    %6836 = vmatpush1.bf16.msra.mxu0 %v6742
    %6837 = vmatprep.subr.bf16.mxu0 0
    %6838 = vmatpush1.bf16.msra.mxu0 %v6741
    %6839 = vmatprep.subr.bf16.mxu0 0
    %6840 = vmatpush1.bf16.msra.mxu0 %v6740
    %6841 = vmatprep.subr.bf16.mxu0 0
    %6842 = vmatpush1.bf16.msra.mxu0 %v6739
    %6843 = vmatprep.subr.bf16.mxu0 0
    %6844 = vmatpush2.bf16.msra.mxu0 %v6754
    %6845 = vmatprep.subr.bf16.mxu0 0
    %6846 = vmatpush2.bf16.msra.mxu0 %v6753
    %6847 = vmatprep.subr.bf16.mxu0 0
    %6848 = vmatpush2.bf16.msra.mxu0 %v6752
    %6849 = vmatprep.subr.bf16.mxu0 0
    %6850 = vmatpush2.bf16.msra.mxu0 %v6751
    %6851 = vmatprep.subr.bf16.mxu0 0
    %6852 = vmatpush2.bf16.msra.mxu0 %v6750
    %6853 = vmatprep.subr.bf16.mxu0 0
    %6854 = vmatpush2.bf16.msra.mxu0 %v6749
    %6855 = vmatprep.subr.bf16.mxu0 0
    %6856 = vmatpush2.bf16.msra.mxu0 %v6748
    %6857 = vmatprep.subr.bf16.mxu0 0
    %6858 = vmatpush2.bf16.msra.mxu0 %v6747
    %6859 = vmatprep.mubr.bf16.mxu0 %v6523
    %6860 = vmatmul.mubr.bf16.gmra.mxu0 %v6522
    %v6861 = vpop.f32.mrf.mxu0
    %v6862 = vadd.f32 %v6822, %v6861
    %v6863 = vpop.f32.mrf.mxu0
    %v6864 = vpop.f32.mrf.mxu0
    %v6865 = vpop.f32.mrf.mxu0
    %6866 = vdwg.mxu0
    %6867 = vst [vmem:[#allocation16] sm:$0x3] %v6862
    // Predicated region
    $region70: #{tpu_custom_call.1} parent=1 // pred_check
      _
    $region71: #{tpu_custom_call.1} parent=1 // pred_check_branch
      %6869 = sbr.rel (0) target = $region73
    $region72: #{tpu_custom_call.1} parent=1 // pred_region
      %s6871 = ssub.s32 32, 32
      %6872 = vsyncadd [#allocation4], %s6871
      %s6874 = sshll.u32 [#allocation16], 4
      %s6875 = int_to_ptr.vmem [resolvable:$true] %s6874
      %6877 = dma.vmem_to_hbm [thread:$0]  %s6875, 32, %s9, [#allocation4]
    $region73: #{tpu_custom_call.1} parent=1 // pred_fallthru
      _
    // Predicated region
    $region74: #{tpu_custom_call.1} parent=1 // pred_check
      _
    $region75: #{tpu_custom_call.1} parent=1 // pred_check_branch
      %6879 = sbr.rel (0) target = $region77
    $region76: #{tpu_custom_call.1} parent=1 // pred_region
      %6880 = dma.done [#allocation4], 32
    $region77: #{tpu_custom_call.1} parent=1 // pred_fallthru
      _
    %6881 = vsyncpa [#allocation3], 1
    %6882 = vsyncpa [#allocation6], 1
    %6883 = vsyncpa [#allocation9], 1
    %6884 = vsyncpa [#allocation12], 1
    %6885 = vsyncpa [#allocation15], 1
    %6886 = vsyncpa [#allocation4], 1

</llo_original>
